<compile_context>
chip_gen: v7x
topology: tpu7x:2x2x1
jax: 0.10.0
libtpu: 0.0.40
codegen_flags: <defaults>
</compile_context>

<pallas_src>
import jax
import jax.numpy as jnp
from jax import lax
from jax.experimental import pallas as pl
from jax.experimental.pallas import tpu as pltpu

KERNEL_SIZES = (5, 9, 13)      # the 5 -> 9 -> 13 partial-max reuse assumes these
PMAX = max(KERNEL_SIZES) // 2  # -inf halo rows above/below (= 6)
LPAD = 8                       # left -inf halo cols (>= 6, keeps the interior
                               # store sublane-aligned)


def _silu(z):
    return z * jax.nn.sigmoid(z)


def _round_up(x, m):
    return (x + m - 1) // m * m


# ---------------------------------------------------------------------------
# Fused kernel: one batch element per grid step.
# ---------------------------------------------------------------------------
def spp_fused_kernel(x_ref, w1_ref, s1_ref, b1_ref, w2_ref, s2_ref, b2_ref,
                     o_ref, ypad_ref):
    _, H, W, Cin = x_ref.shape
    Cr = w1_ref.shape[1]
    Cout = w2_ref.shape[1]
    HP, WL, _ = ypad_ref.shape           # HP = H + 2*PMAX, WL = LPAD + W + RPAD
    bf16 = jnp.bfloat16

    # ---- conv1: pointwise matmul (MXU, bf16 operands / f32 acc) + BN + SiLU.
    x2d = x_ref[0].reshape(H * W, Cin)                  # input already bf16
    z1 = jnp.dot(x2d, w1_ref[...], preferred_element_type=jnp.float32)
    y = _silu(z1 * s1_ref[...] + b1_ref[...])           # (H*W, Cr) f32
    yb = y.astype(bf16)                                 # conv2/pool precision

    # ---- fused conv2, branch 0 (identity): consume yb immediately so the f32
    # y value dies before the pooling branches start.
    w2 = w2_ref[...]                                    # weights already bf16
    acc = jnp.dot(yb, w2[0:Cr, :], preferred_element_type=jnp.float32)

    # ---- -inf halo: refill only the four border strips (the interior is fully
    # overwritten below).  Strip offsets/widths are sublane (8) aligned.
    ypad_ref[0:PMAX, :, :] = jnp.full((PMAX, WL, Cr), -jnp.inf, bf16)
    ypad_ref[PMAX + H:, :, :] = jnp.full((HP - PMAX - H, WL, Cr), -jnp.inf, bf16)
    ypad_ref[PMAX:PMAX + H, 0:LPAD, :] = jnp.full((H, LPAD, Cr), -jnp.inf, bf16)
    ypad_ref[PMAX:PMAX + H, LPAD + W:, :] = (
        jnp.full((H, WL - LPAD - W, Cr), -jnp.inf, bf16))
    ypad_ref[PMAX:PMAX + H, LPAD:LPAD + W, :] = yb.reshape(H, W, Cr)

    # ---- separable max pooling, row (H) pass.  Slices stream straight from
    # the VMEM scratch (no full (HP,WL,Cr) value kept live); 9/13 reuse the
    # 5-row partial maxima.
    r5 = ypad_ref[0:HP - 4]
    for dh in range(1, 5):
        r5 = jnp.maximum(r5, ypad_ref[dh:HP - 4 + dh])  # (H+8, WL, Cr)
    r9 = jnp.maximum(r5[0:HP - 8], r5[4:HP - 4])        # (H+4, WL, Cr)
    r13 = jnp.maximum(r9[0:HP - 12], r5[8:HP - 4])      # (H,   WL, Cr)
    rows = {5: r5[4:4 + H], 9: r9[2:2 + H], 13: r13}

    # ---- per-branch column (W) pass + matmul, interleaved so each branch's
    # temporaries die before the next branch starts (bounds live VMEM/vregs).
    def wmax(r, ks):
        p = ks // 2
        w0 = LPAD - p
        c5_len = W + 2 * p - 4
        c5 = r[:, w0:w0 + c5_len]
        for dw in range(1, 5):
            c5 = jnp.maximum(c5, r[:, w0 + dw:w0 + dw + c5_len])
        if ks == 5:
            return c5
        c9 = jnp.maximum(c5[:, 0:c5_len - 4], c5[:, 4:c5_len])
        if ks == 9:
            return c9
        return jnp.maximum(c9[:, 0:c5_len - 8], c5[:, 8:c5_len])

    for bi, ks in enumerate(KERNEL_SIZES):
        pooled = wmax(rows[ks], ks)                     # (H, W, Cr) bf16
        acc = acc + jnp.dot(pooled.reshape(H * W, Cr),
                            w2[(bi + 1) * Cr:(bi + 2) * Cr, :],
                            preferred_element_type=jnp.float32)

    # ---- conv2 epilogue: BN + SiLU in f32, write the output tile.
    z2 = acc * s2_ref[...] + b2_ref[...]
    o_ref[0] = _silu(z2).reshape(H, W, Cout)


def spp_block_nhwc(x_nhwc, w1, s1, b1, w2, s2, b2):
    N, H, W, Cin = x_nhwc.shape
    Cr = w1.shape[1]
    Cout = w2.shape[1]
    HP = H + 2 * PMAX
    WL = _round_up(LPAD + W + PMAX, 8)   # right halo >= PMAX, row-width aligned

    # Per-step scoped-VMEM budget: double-buffered I/O tiles + weights + the
    # bf16 padded scratch + pooling/accumulator temporaries, with 2x headroom,
    # clamped to [32 MiB, 64 MiB] so it never drops below the default scoped
    # limit (v5e 16 / v6e 32 / v7x 32 MiB) nor above v7x's physical VMEM.
    est = (2 * H * W * Cin * 2            # x tile (bf16, double buffered)
           + 2 * H * W * Cout * 4         # out tile (f32, double buffered)
           + HP * WL * Cr * 2             # padded-y scratch (bf16)
           + 2 * (Cin * Cr + 4 * Cr * Cout) * 2 + 4 * (Cr + Cout) * 4
           + 10 * HP * WL * Cr * 2        # pooling temporaries / live values
           + 3 * H * W * Cout * 4)        # f32 accumulator + conv2 temporaries
    vmem_budget = int(min(64 * 1024 * 1024, max(32 * 1024 * 1024, 2 * est)))

    return pl.pallas_call(
        spp_fused_kernel,
        out_shape=jax.ShapeDtypeStruct((N, H, W, Cout), jnp.float32),
        grid=(N,),
        in_specs=[
            pl.BlockSpec((1, H, W, Cin), lambda n: (n, 0, 0, 0)),
            pl.BlockSpec((Cin, Cr), lambda n: (0, 0)),
            pl.BlockSpec((1, Cr), lambda n: (0, 0)),
            pl.BlockSpec((1, Cr), lambda n: (0, 0)),
            pl.BlockSpec((4 * Cr, Cout), lambda n: (0, 0)),
            pl.BlockSpec((1, Cout), lambda n: (0, 0)),
            pl.BlockSpec((1, Cout), lambda n: (0, 0)),
        ],
        out_specs=pl.BlockSpec((1, H, W, Cout), lambda n: (n, 0, 0, 0)),
        scratch_shapes=[pltpu.VMEM((HP, WL, Cr), jnp.bfloat16)],
        compiler_params=pltpu.CompilerParams(
            dimension_semantics=("parallel",),  # batch shards across v7x's 2 TCs
            vmem_limit_bytes=vmem_budget,
        ),
    )(x_nhwc, w1, s1, b1, w2, s2, b2)


@jax.jit
def spp_block(x_nchw, params):
    w1, s1, b1, w2, s2, b2 = params
    # Boundary layout/precision only: NCHW -> NHWC, MXU operands pre-cast bf16.
    x_nhwc = jnp.transpose(x_nchw, (0, 2, 3, 1)).astype(jnp.bfloat16)
    out_nhwc = spp_block_nhwc(
        x_nhwc,
        w1.astype(jnp.bfloat16), s1.reshape(1, -1), b1.reshape(1, -1),
        w2.astype(jnp.bfloat16), s2.reshape(1, -1), b2.reshape(1, -1))
    return jnp.transpose(out_nhwc, (0, 3, 1, 2))          # back to NCHW


# ---------------------------------------------------------------------------
# Pure-JAX reference.  Mirrors the kernel's bf16 MXU-operand rounding but runs
# the dots themselves in f32, so it executes on backends whose dot thunk does
# not support BF16 x BF16 = F32 (this was the previous sandbox failure).
# ---------------------------------------------------------------------------
def ref_spp_block(x_nchw, params):
    w1, s1, b1, w2, s2, b2 = params

    def pw(x, wmat, scale, bias):
        xr = x.astype(jnp.bfloat16).astype(jnp.float32)
        wr = wmat.astype(jnp.bfloat16).astype(jnp.float32)
        z = jnp.einsum("nchw,cd->ndhw", xr, wr)
        z = z * scale[None, :, None, None] + bias[None, :, None, None]
        return z * jax.nn.sigmoid(z)

    y = pw(x_nchw, w1, s1, b1)
    pools = [y]
    for ks in KERNEL_SIZES:
        p = ks // 2
        pools.append(lax.reduce_window(
            y, -jnp.inf, lax.max,
            window_dimensions=(1, 1, ks, ks),
            window_strides=(1, 1, 1, 1),
            padding=((0, 0), (0, 0), (p, p), (p, p))))
    cat = jnp.concatenate(pools, axis=1)
    return pw(cat, w2, s2, b2)


# ---------------------------------------------------------------------------
# Deterministic parameters (BN folded into scale/bias, eval mode).
# ---------------------------------------------------------------------------
def make_params(key, in_channels, out_channels):
    cr = in_channels // 2
    cexp = cr * (len(KERNEL_SIZES) + 1)
    eps = 1e-3
    ks = jax.random.split(key, 10)

    def bn_fold(kg, kb, km, kv, c):
        gamma = 0.5 + jax.random.uniform(kg, (c,), jnp.float32)
        beta = 0.1 * jax.random.normal(kb, (c,), jnp.float32)
        mean = 0.1 * jax.random.normal(km, (c,), jnp.float32)
        var = 0.5 + jax.random.uniform(kv, (c,), jnp.float32)
        scale = gamma / jnp.sqrt(var + eps)
        bias = beta - mean * scale
        return scale, bias                     # 1-D (C,) — reshaped in wrappers

    w1 = 0.3 * jax.random.normal(ks[0], (in_channels, cr), jnp.float32)
    s1, b1 = bn_fold(ks[1], ks[2], ks[3], ks[4], cr)
    w2 = 0.3 * jax.random.normal(ks[5], (cexp, out_channels), jnp.float32)
    s2, b2 = bn_fold(ks[6], ks[7], ks[8], ks[9], out_channels)
    return (w1, s1, b1, w2, s2, b2)


if __name__ == "__main__":
    key = jax.random.PRNGKey(0)
    kx, kp = jax.random.split(key)

    N, CIN, COUT, H, W = 2, 4, 4, 16, 16
    x = jax.random.normal(kx, (N, CIN, H, W), jnp.float32)
    params = make_params(kp, CIN, COUT)

    out = jax.block_until_ready(spp_block(x, params))
    ref = jax.block_until_ready(ref_spp_block(x, params))

    assert out.shape == (N, COUT, H, W), out.shape
    err = jnp.abs(out - ref)
    max_err = float(jnp.max(err))
    mean_err = float(jnp.mean(err))
    # Both sides quantize the conv2 operands to bf16, so they normally agree to
    # a few f32 ULPs (tight mean-error check below).  The max-error bound is
    # looser because a value landing within ~1 ULP of a bf16 rounding boundary
    # can round differently under Mosaic's vs XLA's exp/sigmoid, and that
    # single bf16 step (~0.4% relative) is amplified through conv2.  Genuine
    # layout/pooling/fusion bugs produce errors of O(0.1 - 1) and a large mean.
    assert max_err < 2e-2, f"max abs err too large: {max_err}"
    assert mean_err < 1e-3, f"mean abs err too large: {mean_err}"
    print("KERNEL_OK")
</pallas_src>

<mosaic_0001>
module attributes {stable_mosaic.version = 11 : i64} {
  func.func @spp_fused_kernel(%arg0: i32, %arg1: memref<1x16x16x4xbf16, #tpu.memory_space<vmem>>, %arg2: memref<4x2xbf16, #tpu.memory_space<vmem>>, %arg3: memref<1x2xf32, #tpu.memory_space<vmem>>, %arg4: memref<1x2xf32, #tpu.memory_space<vmem>>, %arg5: memref<8x4xbf16, #tpu.memory_space<vmem>>, %arg6: memref<1x4xf32, #tpu.memory_space<vmem>>, %arg7: memref<1x4xf32, #tpu.memory_space<vmem>>, %arg8: memref<1x16x16x4xf32, #tpu.memory_space<vmem>>, %arg9: memref<28x32x2xbf16, #tpu.memory_space<vmem>>) attributes {dimension_semantics = [#tpu.dimension_semantics<parallel>], iteration_bounds = array<i64: 2>, scalar_prefetch = 0 : i64, scratch_operands = 1 : i64, tpu.core_type = #tpu.core_type<tc>, window_params = [{transform_indices = @transform_0, window_bounds = array<i64: 1, 16, 16, 4>}, {pipeline_mode = #tpu.pipeline_mode<synchronous>, transform_indices = @transform_1, window_bounds = array<i64: 4, 2>}, {pipeline_mode = #tpu.pipeline_mode<synchronous>, transform_indices = @transform_2, window_bounds = array<i64: 1, 2>}, {pipeline_mode = #tpu.pipeline_mode<synchronous>, transform_indices = @transform_3, window_bounds = array<i64: 1, 2>}, {pipeline_mode = #tpu.pipeline_mode<synchronous>, transform_indices = @transform_4, window_bounds = array<i64: 8, 4>}, {pipeline_mode = #tpu.pipeline_mode<synchronous>, transform_indices = @transform_5, window_bounds = array<i64: 1, 4>}, {pipeline_mode = #tpu.pipeline_mode<synchronous>, transform_indices = @transform_6, window_bounds = array<i64: 1, 4>}, {transform_indices = @transform_7, window_bounds = array<i64: 1, 16, 16, 4>}]} {
    %c0 = arith.constant 0 : index
    %c0_0 = arith.constant 0 : index
    %c0_1 = arith.constant 0 : index
    %c0_2 = arith.constant 0 : index
    %0 = vector.load %arg1[%c0, %c0_0, %c0_1, %c0_2] : memref<1x16x16x4xbf16, #tpu.memory_space<vmem>>, vector<1x16x16x4xbf16>
    %1 = vector.shape_cast %0 : vector<1x16x16x4xbf16> to vector<16x16x4xbf16>
    %2 = vector.shape_cast %1 : vector<16x16x4xbf16> to vector<256x4xbf16>
    %c0_3 = arith.constant 0 : index
    %c0_4 = arith.constant 0 : index
    %3 = vector.load %arg2[%c0_3, %c0_4] : memref<4x2xbf16, #tpu.memory_space<vmem>>, vector<4x2xbf16>
    %cst = arith.constant dense<0.000000e+00> : vector<256x2xf32>
    %4 = tpu.matmul %2, %3, %cst {dimension_numbers = #tpu.dot_dimension_numbers<[1], [0], [0], [1], [0, 0, 1, 1], [], []>} : vector<256x4xbf16>, vector<4x2xbf16>, vector<256x2xf32> -> vector<256x2xf32>
    %c0_5 = arith.constant 0 : index
    %c0_6 = arith.constant 0 : index
    %5 = vector.load %arg3[%c0_5, %c0_6] : memref<1x2xf32, #tpu.memory_space<vmem>>, vector<1x2xf32>
    %6 = vector.broadcast %5 : vector<1x2xf32> to vector<256x2xf32>
    %7 = arith.mulf %4, %6 : vector<256x2xf32>
    %c0_7 = arith.constant 0 : index
    %c0_8 = arith.constant 0 : index
    %8 = vector.load %arg4[%c0_7, %c0_8] : memref<1x2xf32, #tpu.memory_space<vmem>>, vector<1x2xf32>
    %9 = vector.broadcast %8 : vector<1x2xf32> to vector<256x2xf32>
    %10 = arith.addf %7, %9 : vector<256x2xf32>
    %11 = arith.negf %10 : vector<256x2xf32>
    %12 = math.exp %11 : vector<256x2xf32>
    %cst_9 = arith.constant 1.000000e+00 : f32
    %13 = vector.broadcast %cst_9 : f32 to vector<256x2xf32>
    %14 = arith.addf %13, %12 : vector<256x2xf32>
    %15 = arith.divf %13, %14 : vector<256x2xf32>
    %16 = arith.mulf %10, %15 : vector<256x2xf32>
    %17 = arith.truncf %16 : vector<256x2xf32> to vector<256x2xbf16>
    %c0_10 = arith.constant 0 : index
    %c0_11 = arith.constant 0 : index
    %18 = vector.load %arg5[%c0_10, %c0_11] : memref<8x4xbf16, #tpu.memory_space<vmem>>, vector<8x4xbf16>
    %19 = vector.extract_strided_slice %18 {offsets = [0, 0], sizes = [2, 4], strides = [1, 1]} : vector<8x4xbf16> to vector<2x4xbf16>
    %cst_12 = arith.constant dense<0.000000e+00> : vector<256x4xf32>
    %20 = tpu.matmul %17, %19, %cst_12 {dimension_numbers = #tpu.dot_dimension_numbers<[1], [0], [0], [1], [0, 0, 1, 1], [], []>} : vector<256x2xbf16>, vector<2x4xbf16>, vector<256x4xf32> -> vector<256x4xf32>
    %cst_13 = arith.constant 0xFF80 : bf16
    %21 = vector.broadcast %cst_13 : bf16 to vector<6x32x2xbf16>
    %c0_14 = arith.constant 0 : index
    %c0_15 = arith.constant 0 : index
    %c0_16 = arith.constant 0 : index
    %22 = vector.load %arg9[%c0_14, %c0_15, %c0_16] : memref<28x32x2xbf16, #tpu.memory_space<vmem>>, vector<6x32x2xbf16>
    tpu.vector_store %arg9[%c0_14, %c0_15, %c0_16], %21 {strides = array<i32>} : memref<28x32x2xbf16, #tpu.memory_space<vmem>>, vector<6x32x2xbf16>,
    %cst_17 = arith.constant 0xFF80 : bf16
    %23 = vector.broadcast %cst_17 : bf16 to vector<6x32x2xbf16>
    %c22 = arith.constant 22 : index
    %c0_18 = arith.constant 0 : index
    %c0_19 = arith.constant 0 : index
    %24 = vector.load %arg9[%c22, %c0_18, %c0_19] : memref<28x32x2xbf16, #tpu.memory_space<vmem>>, vector<6x32x2xbf16>
    tpu.vector_store %arg9[%c22, %c0_18, %c0_19], %23 {strides = array<i32>} : memref<28x32x2xbf16, #tpu.memory_space<vmem>>, vector<6x32x2xbf16>,
    %cst_20 = arith.constant 0xFF80 : bf16
    %25 = vector.broadcast %cst_20 : bf16 to vector<16x8x2xbf16>
    %c6 = arith.constant 6 : index
    %c0_21 = arith.constant 0 : index
    %c0_22 = arith.constant 0 : index
    %26 = vector.load %arg9[%c6, %c0_21, %c0_22] : memref<28x32x2xbf16, #tpu.memory_space<vmem>>, vector<16x8x2xbf16>
    tpu.vector_store %arg9[%c6, %c0_21, %c0_22], %25 {strides = array<i32>} : memref<28x32x2xbf16, #tpu.memory_space<vmem>>, vector<16x8x2xbf16>,
    %cst_23 = arith.constant 0xFF80 : bf16
    %27 = vector.broadcast %cst_23 : bf16 to vector<16x8x2xbf16>
    %c6_24 = arith.constant 6 : index
    %c24 = arith.constant 24 : index
    %c0_25 = arith.constant 0 : index
    %28 = vector.load %arg9[%c6_24, %c24, %c0_25] : memref<28x32x2xbf16, #tpu.memory_space<vmem>>, vector<16x8x2xbf16>
    tpu.vector_store %arg9[%c6_24, %c24, %c0_25], %27 {strides = array<i32>} : memref<28x32x2xbf16, #tpu.memory_space<vmem>>, vector<16x8x2xbf16>,
    %29 = vector.shape_cast %17 : vector<256x2xbf16> to vector<16x16x2xbf16>
    %c6_26 = arith.constant 6 : index
    %c8 = arith.constant 8 : index
    %c0_27 = arith.constant 0 : index
    %30 = vector.load %arg9[%c6_26, %c8, %c0_27] : memref<28x32x2xbf16, #tpu.memory_space<vmem>>, vector<16x16x2xbf16>
    tpu.vector_store %arg9[%c6_26, %c8, %c0_27], %29 {strides = array<i32>} : memref<28x32x2xbf16, #tpu.memory_space<vmem>>, vector<16x16x2xbf16>,
    %c0_28 = arith.constant 0 : index
    %c0_29 = arith.constant 0 : index
    %c0_30 = arith.constant 0 : index
    %31 = vector.load %arg9[%c0_28, %c0_29, %c0_30] : memref<28x32x2xbf16, #tpu.memory_space<vmem>>, vector<24x32x2xbf16>
    %c1 = arith.constant 1 : index
    %c0_31 = arith.constant 0 : index
    %c0_32 = arith.constant 0 : index
    %32 = vector.load %arg9[%c1, %c0_31, %c0_32] : memref<28x32x2xbf16, #tpu.memory_space<vmem>>, vector<24x32x2xbf16>
    %33 = arith.maximumf %31, %32 : vector<24x32x2xbf16>
    %c2 = arith.constant 2 : index
    %c0_33 = arith.constant 0 : index
    %c0_34 = arith.constant 0 : index
    %34 = vector.load %arg9[%c2, %c0_33, %c0_34] : memref<28x32x2xbf16, #tpu.memory_space<vmem>>, vector<24x32x2xbf16>
    %35 = arith.maximumf %33, %34 : vector<24x32x2xbf16>
    %c3 = arith.constant 3 : index
    %c0_35 = arith.constant 0 : index
    %c0_36 = arith.constant 0 : index
    %36 = vector.load %arg9[%c3, %c0_35, %c0_36] : memref<28x32x2xbf16, #tpu.memory_space<vmem>>, vector<24x32x2xbf16>
    %37 = arith.maximumf %35, %36 : vector<24x32x2xbf16>
    %c4 = arith.constant 4 : index
    %c0_37 = arith.constant 0 : index
    %c0_38 = arith.constant 0 : index
    %38 = vector.load %arg9[%c4, %c0_37, %c0_38] : memref<28x32x2xbf16, #tpu.memory_space<vmem>>, vector<24x32x2xbf16>
    %39 = arith.maximumf %37, %38 : vector<24x32x2xbf16>
    %40 = vector.extract_strided_slice %39 {offsets = [0, 0, 0], sizes = [20, 32, 2], strides = [1, 1, 1]} : vector<24x32x2xbf16> to vector<20x32x2xbf16>
    %41 = vector.extract_strided_slice %39 {offsets = [4, 0, 0], sizes = [20, 32, 2], strides = [1, 1, 1]} : vector<24x32x2xbf16> to vector<20x32x2xbf16>
    %42 = arith.maximumf %40, %41 : vector<20x32x2xbf16>
    %43 = vector.extract_strided_slice %42 {offsets = [0, 0, 0], sizes = [16, 32, 2], strides = [1, 1, 1]} : vector<20x32x2xbf16> to vector<16x32x2xbf16>
    %44 = vector.extract_strided_slice %39 {offsets = [8, 0, 0], sizes = [16, 32, 2], strides = [1, 1, 1]} : vector<24x32x2xbf16> to vector<16x32x2xbf16>
    %45 = arith.maximumf %43, %44 : vector<16x32x2xbf16>
    %46 = vector.extract_strided_slice %39 {offsets = [4, 0, 0], sizes = [16, 32, 2], strides = [1, 1, 1]} : vector<24x32x2xbf16> to vector<16x32x2xbf16>
    %47 = vector.extract_strided_slice %42 {offsets = [2, 0, 0], sizes = [16, 32, 2], strides = [1, 1, 1]} : vector<20x32x2xbf16> to vector<16x32x2xbf16>
    %48 = vector.extract_strided_slice %46 {offsets = [0, 6, 0], sizes = [16, 16, 2], strides = [1, 1, 1]} : vector<16x32x2xbf16> to vector<16x16x2xbf16>
    %49 = vector.extract_strided_slice %46 {offsets = [0, 7, 0], sizes = [16, 16, 2], strides = [1, 1, 1]} : vector<16x32x2xbf16> to vector<16x16x2xbf16>
    %50 = arith.maximumf %48, %49 : vector<16x16x2xbf16>
    %51 = vector.extract_strided_slice %46 {offsets = [0, 8, 0], sizes = [16, 16, 2], strides = [1, 1, 1]} : vector<16x32x2xbf16> to vector<16x16x2xbf16>
    %52 = arith.maximumf %50, %51 : vector<16x16x2xbf16>
    %53 = vector.extract_strided_slice %46 {offsets = [0, 9, 0], sizes = [16, 16, 2], strides = [1, 1, 1]} : vector<16x32x2xbf16> to vector<16x16x2xbf16>
    %54 = arith.maximumf %52, %53 : vector<16x16x2xbf16>
    %55 = vector.extract_strided_slice %46 {offsets = [0, 10, 0], sizes = [16, 16, 2], strides = [1, 1, 1]} : vector<16x32x2xbf16> to vector<16x16x2xbf16>
    %56 = arith.maximumf %54, %55 : vector<16x16x2xbf16>
    %57 = vector.shape_cast %56 : vector<16x16x2xbf16> to vector<256x2xbf16>
    %58 = vector.extract_strided_slice %18 {offsets = [2, 0], sizes = [2, 4], strides = [1, 1]} : vector<8x4xbf16> to vector<2x4xbf16>
    %cst_39 = arith.constant dense<0.000000e+00> : vector<256x4xf32>
    %59 = tpu.matmul %57, %58, %cst_39 {dimension_numbers = #tpu.dot_dimension_numbers<[1], [0], [0], [1], [0, 0, 1, 1], [], []>} : vector<256x2xbf16>, vector<2x4xbf16>, vector<256x4xf32> -> vector<256x4xf32>
    %60 = arith.addf %20, %59 : vector<256x4xf32>
    %61 = vector.extract_strided_slice %47 {offsets = [0, 4, 0], sizes = [16, 20, 2], strides = [1, 1, 1]} : vector<16x32x2xbf16> to vector<16x20x2xbf16>
    %62 = vector.extract_strided_slice %47 {offsets = [0, 5, 0], sizes = [16, 20, 2], strides = [1, 1, 1]} : vector<16x32x2xbf16> to vector<16x20x2xbf16>
    %63 = arith.maximumf %61, %62 : vector<16x20x2xbf16>
    %64 = vector.extract_strided_slice %47 {offsets = [0, 6, 0], sizes = [16, 20, 2], strides = [1, 1, 1]} : vector<16x32x2xbf16> to vector<16x20x2xbf16>
    %65 = arith.maximumf %63, %64 : vector<16x20x2xbf16>
    %66 = vector.extract_strided_slice %47 {offsets = [0, 7, 0], sizes = [16, 20, 2], strides = [1, 1, 1]} : vector<16x32x2xbf16> to vector<16x20x2xbf16>
    %67 = arith.maximumf %65, %66 : vector<16x20x2xbf16>
    %68 = vector.extract_strided_slice %47 {offsets = [0, 8, 0], sizes = [16, 20, 2], strides = [1, 1, 1]} : vector<16x32x2xbf16> to vector<16x20x2xbf16>
    %69 = arith.maximumf %67, %68 : vector<16x20x2xbf16>
    %70 = vector.extract_strided_slice %69 {offsets = [0, 0, 0], sizes = [16, 16, 2], strides = [1, 1, 1]} : vector<16x20x2xbf16> to vector<16x16x2xbf16>
    %71 = vector.extract_strided_slice %69 {offsets = [0, 4, 0], sizes = [16, 16, 2], strides = [1, 1, 1]} : vector<16x20x2xbf16> to vector<16x16x2xbf16>
    %72 = arith.maximumf %70, %71 : vector<16x16x2xbf16>
    %73 = vector.shape_cast %72 : vector<16x16x2xbf16> to vector<256x2xbf16>
    %74 = vector.extract_strided_slice %18 {offsets = [4, 0], sizes = [2, 4], strides = [1, 1]} : vector<8x4xbf16> to vector<2x4xbf16>
    %cst_40 = arith.constant dense<0.000000e+00> : vector<256x4xf32>
    %75 = tpu.matmul %73, %74, %cst_40 {dimension_numbers = #tpu.dot_dimension_numbers<[1], [0], [0], [1], [0, 0, 1, 1], [], []>} : vector<256x2xbf16>, vector<2x4xbf16>, vector<256x4xf32> -> vector<256x4xf32>
    %76 = arith.addf %60, %75 : vector<256x4xf32>
    %77 = vector.extract_strided_slice %45 {offsets = [0, 2, 0], sizes = [16, 24, 2], strides = [1, 1, 1]} : vector<16x32x2xbf16> to vector<16x24x2xbf16>
    %78 = vector.extract_strided_slice %45 {offsets = [0, 3, 0], sizes = [16, 24, 2], strides = [1, 1, 1]} : vector<16x32x2xbf16> to vector<16x24x2xbf16>
    %79 = arith.maximumf %77, %78 : vector<16x24x2xbf16>
    %80 = vector.extract_strided_slice %45 {offsets = [0, 4, 0], sizes = [16, 24, 2], strides = [1, 1, 1]} : vector<16x32x2xbf16> to vector<16x24x2xbf16>
    %81 = arith.maximumf %79, %80 : vector<16x24x2xbf16>
    %82 = vector.extract_strided_slice %45 {offsets = [0, 5, 0], sizes = [16, 24, 2], strides = [1, 1, 1]} : vector<16x32x2xbf16> to vector<16x24x2xbf16>
    %83 = arith.maximumf %81, %82 : vector<16x24x2xbf16>
    %84 = vector.extract_strided_slice %45 {offsets = [0, 6, 0], sizes = [16, 24, 2], strides = [1, 1, 1]} : vector<16x32x2xbf16> to vector<16x24x2xbf16>
    %85 = arith.maximumf %83, %84 : vector<16x24x2xbf16>
    %86 = vector.extract_strided_slice %85 {offsets = [0, 0, 0], sizes = [16, 20, 2], strides = [1, 1, 1]} : vector<16x24x2xbf16> to vector<16x20x2xbf16>
    %87 = vector.extract_strided_slice %85 {offsets = [0, 4, 0], sizes = [16, 20, 2], strides = [1, 1, 1]} : vector<16x24x2xbf16> to vector<16x20x2xbf16>
    %88 = arith.maximumf %86, %87 : vector<16x20x2xbf16>
    %89 = vector.extract_strided_slice %88 {offsets = [0, 0, 0], sizes = [16, 16, 2], strides = [1, 1, 1]} : vector<16x20x2xbf16> to vector<16x16x2xbf16>
    %90 = vector.extract_strided_slice %85 {offsets = [0, 8, 0], sizes = [16, 16, 2], strides = [1, 1, 1]} : vector<16x24x2xbf16> to vector<16x16x2xbf16>
    %91 = arith.maximumf %89, %90 : vector<16x16x2xbf16>
    %92 = vector.shape_cast %91 : vector<16x16x2xbf16> to vector<256x2xbf16>
    %93 = vector.extract_strided_slice %18 {offsets = [6, 0], sizes = [2, 4], strides = [1, 1]} : vector<8x4xbf16> to vector<2x4xbf16>
    %cst_41 = arith.constant dense<0.000000e+00> : vector<256x4xf32>
    %94 = tpu.matmul %92, %93, %cst_41 {dimension_numbers = #tpu.dot_dimension_numbers<[1], [0], [0], [1], [0, 0, 1, 1], [], []>} : vector<256x2xbf16>, vector<2x4xbf16>, vector<256x4xf32> -> vector<256x4xf32>
    %95 = arith.addf %76, %94 : vector<256x4xf32>
    %c0_42 = arith.constant 0 : index
    %c0_43 = arith.constant 0 : index
    %96 = vector.load %arg6[%c0_42, %c0_43] : memref<1x4xf32, #tpu.memory_space<vmem>>, vector<1x4xf32>
    %97 = vector.broadcast %96 : vector<1x4xf32> to vector<256x4xf32>
    %98 = arith.mulf %95, %97 : vector<256x4xf32>
    %c0_44 = arith.constant 0 : index
    %c0_45 = arith.constant 0 : index
    %99 = vector.load %arg7[%c0_44, %c0_45] : memref<1x4xf32, #tpu.memory_space<vmem>>, vector<1x4xf32>
    %100 = vector.broadcast %99 : vector<1x4xf32> to vector<256x4xf32>
    %101 = arith.addf %98, %100 : vector<256x4xf32>
    %102 = arith.negf %101 : vector<256x4xf32>
    %103 = math.exp %102 : vector<256x4xf32>
    %cst_46 = arith.constant 1.000000e+00 : f32
    %104 = vector.broadcast %cst_46 : f32 to vector<256x4xf32>
    %105 = arith.addf %104, %103 : vector<256x4xf32>
    %106 = arith.divf %104, %105 : vector<256x4xf32>
    %107 = arith.mulf %101, %106 : vector<256x4xf32>
    %108 = vector.shape_cast %107 : vector<256x4xf32> to vector<16x16x4xf32>
    %c0_47 = arith.constant 0 : index
    %c0_48 = arith.constant 0 : index
    %c0_49 = arith.constant 0 : index
    %c0_50 = arith.constant 0 : index
    %109 = vector.load %arg8[%c0_47, %c0_48, %c0_49, %c0_50] : memref<1x16x16x4xf32, #tpu.memory_space<vmem>>, vector<1x16x16x4xf32>
    %110 = vector.shape_cast %109 : vector<1x16x16x4xf32> to vector<16x16x4xf32>
    %111 = vector.shape_cast %108 : vector<16x16x4xf32> to vector<1x16x16x4xf32>
    tpu.vector_store %arg8[%c0_47, %c0_48, %c0_49, %c0_50], %111 {strides = array<i32>} : memref<1x16x16x4xf32, #tpu.memory_space<vmem>>, vector<1x16x16x4xf32>,
    return
  }
  func.func @transform_0(%arg0: i32) -> (i32, i32, i32, i32) {
    %c0_i32 = arith.constant 0 : i32
    %c0_i32_0 = arith.constant 0 : i32
    %c0_i32_1 = arith.constant 0 : i32
    %c0_i32_2 = arith.constant 0 : i32
    return %arg0, %c0_i32, %c0_i32_0, %c0_i32_1 : i32, i32, i32, i32
  }
  func.func @transform_1(%arg0: i32) -> (i32, i32) {
    %c0_i32 = arith.constant 0 : i32
    %c0_i32_0 = arith.constant 0 : i32
    %c0_i32_1 = arith.constant 0 : i32
    return %c0_i32, %c0_i32_0 : i32, i32
  }
  func.func @transform_2(%arg0: i32) -> (i32, i32) {
    %c0_i32 = arith.constant 0 : i32
    %c0_i32_0 = arith.constant 0 : i32
    %c0_i32_1 = arith.constant 0 : i32
    return %c0_i32, %c0_i32_0 : i32, i32
  }
  func.func @transform_3(%arg0: i32) -> (i32, i32) {
    %c0_i32 = arith.constant 0 : i32
    %c0_i32_0 = arith.constant 0 : i32
    %c0_i32_1 = arith.constant 0 : i32
    return %c0_i32, %c0_i32_0 : i32, i32
  }
  func.func @transform_4(%arg0: i32) -> (i32, i32) {
    %c0_i32 = arith.constant 0 : i32
    %c0_i32_0 = arith.constant 0 : i32
    %c0_i32_1 = arith.constant 0 : i32
    return %c0_i32, %c0_i32_0 : i32, i32
  }
  func.func @transform_5(%arg0: i32) -> (i32, i32) {
    %c0_i32 = arith.constant 0 : i32
    %c0_i32_0 = arith.constant 0 : i32
    %c0_i32_1 = arith.constant 0 : i32
    return %c0_i32, %c0_i32_0 : i32, i32
  }
  func.func @transform_6(%arg0: i32) -> (i32, i32) {
    %c0_i32 = arith.constant 0 : i32
    %c0_i32_0 = arith.constant 0 : i32
    %c0_i32_1 = arith.constant 0 : i32
    return %c0_i32, %c0_i32_0 : i32, i32
  }
  func.func @transform_7(%arg0: i32) -> (i32, i32, i32, i32) {
    %c0_i32 = arith.constant 0 : i32
    %c0_i32_0 = arith.constant 0 : i32
    %c0_i32_1 = arith.constant 0 : i32
    %c0_i32_2 = arith.constant 0 : i32
    return %arg0, %c0_i32, %c0_i32_0, %c0_i32_1 : i32, i32, i32, i32
  }
}

</mosaic_0001>

<llo_original>
// kernel: spp_block.1
$region0: #{spp_block.1}
  #allocation0 [shape = 'u32[]', space=smem, size = 0x4, offset = 0x4, fixed_abs, tag = 'smem constant byte address 0x4 - core index']
  #allocation1 [shape = 'u32[144,128]{1,0:T(1,128)}', space=vmem, size = 0x12000, scoped, tag = 'internal scratch']
  #allocation2 [shape = 'bf16[28,32,2]{2,1,0:T(16,128)(2,1)}', space=vmem, size = 0x38000, scoped, tag = 'scratch operand']
  %s0 = inlined_call_operand.vmem [shape: bf16[2,16,16,4], index: 0, kind: input, shape index: {}]
  %s1 = inlined_call_operand.vmem [shape: bf16[4,2], index: 1, kind: input, shape index: {}]
  %s2 = inlined_call_operand.vmem [shape: f32[1,2], index: 2, kind: input, shape index: {}]
  %s3 = inlined_call_operand.vmem [shape: f32[1,2], index: 3, kind: input, shape index: {}]
  %s4 = inlined_call_operand.vmem [shape: bf16[8,4], index: 4, kind: input, shape index: {}]
  %s5 = inlined_call_operand.vmem [shape: f32[1,4], index: 5, kind: input, shape index: {}]
  %s6 = inlined_call_operand.vmem [shape: f32[1,4], index: 6, kind: input, shape index: {}]
  %s7 = inlined_call_operand.vmem [shape: f32[2,16,16,4], index: 7, kind: output, shape index: {}]
  %s8 = sld [smem:[#allocation0]]
  $region61: #{spp_block.1} parent=0
    _
  %s10 = ssub.s32 1, %s8
  %s11 = scalar_select 0, %s10, %s8
  loop: start=0, step=1, limit=4
  $region2: #{spp_block.1} parent=0 // loop_pre_header
    _
  $region3: #{spp_block.1} parent=0 // loop_header
    %s13 = sphi 0, %s17
    %p14 = scmp.ge.s32.totalorder %s13, 4
    %s23 = sphi 0, %s25
    %s26 = sphi 0, %s23
    %s27 = sphi 0, %s26
    %s43 = sphi 0, %s27
    %s47 = sphi 0, %s47
    %s49 = sphi 0, %s47
    %s50 = sphi 0, %s49
    %s64 = sphi 0, %s50
    %s68 = sphi 0, %s68
    %s70 = sphi 0, %s68
    %s71 = sphi 0, %s70
    %s85 = sphi 0, %s71
    %s89 = sphi 0, %s89
    %s91 = sphi 0, %s89
    %s92 = sphi 0, %s91
    %s106 = sphi 0, %s92
    %s110 = sphi 0, %s110
    %s112 = sphi 0, %s110
    %s113 = sphi 0, %s112
    %s127 = sphi 0, %s113
    %s131 = sphi 0, %s131
    %s133 = sphi 0, %s131
    %s134 = sphi 0, %s133
    %s148 = sphi 0, %s134
    %s152 = sphi 0, %s152
    %s154 = sphi 0, %s152
    %s155 = sphi 0, %s154
    %s169 = sphi 0, %s155
    %s175 = sphi 0, %s177
    %s178 = sphi 0, %s175
    %s179 = sphi 0, %s178
    %s195 = sphi 0, %s179
  $region4: #{spp_block.1} parent=0 // loop_header_branch
    %16 = sbr.rel (%p14) target = $region8
  $region5: #{spp_block.1} parent=0 // loop_body
    %s18 = ssub.s32 %s13, 1
    %s19 = ssub.s32 %s13, 2
    %s20 = sadd.s32 %s13, 1
    %s21 = ssub.s32 %s13, %s20
    %p22 = scmp.eq.s32.totalorder %s21, 0
    %s24 = sadd.s32 %s23, 1
    %s25 = scalar_select %p22, %s23, %s24
    %p28 = pneg %p22
    %p29 = scmp.eq.s32.totalorder %s13, 1
    %p30 = por %p28, %p29
    %p31 = scmp.ne.s32.totalorder %s23, %s26
    %p32 = scmp.eq.s32.totalorder %s13, 0
    %p33 = por %p31, %p32
    %p34 = scmp.ne.s32.totalorder %s23, %s26
    %p35 = scmp.eq.s32.totalorder %s18, 1
    %p36 = por %p34, %p35
    %p37 = scmp.ne.s32.totalorder %s26, %s27
    %p38 = scmp.eq.s32.totalorder %s18, 0
    %p39 = por %p37, %p38
    %p40 = scmp.ne.s32.totalorder %s26, %s27
    %p41 = scmp.eq.s32.totalorder %s19, 1
    %p42 = por %p40, %p41
    %p44 = scmp.ne.s32.totalorder %s27, %s43
    %p45 = scmp.eq.s32.totalorder %s19, 0
    %p46 = por %p44, %p45
    %s48 = sadd.s32 %s47, 1
    %p51 = scmp.eq.s32.totalorder %s13, 1
    %p52 = scmp.ne.s32.totalorder %s47, %s49
    %p53 = scmp.eq.s32.totalorder %s13, 0
    %p54 = por %p52, %p53
    %p55 = scmp.ne.s32.totalorder %s47, %s49
    %p56 = scmp.eq.s32.totalorder %s18, 1
    %p57 = por %p55, %p56
    %p58 = scmp.ne.s32.totalorder %s49, %s50
    %p59 = scmp.eq.s32.totalorder %s18, 0
    %p60 = por %p58, %p59
    %p61 = scmp.ne.s32.totalorder %s49, %s50
    %p62 = scmp.eq.s32.totalorder %s19, 1
    %p63 = por %p61, %p62
    %p65 = scmp.ne.s32.totalorder %s50, %s64
    %p66 = scmp.eq.s32.totalorder %s19, 0
    %p67 = por %p65, %p66
    %s69 = sadd.s32 %s68, 1
    %p72 = scmp.eq.s32.totalorder %s13, 1
    %p73 = scmp.ne.s32.totalorder %s68, %s70
    %p74 = scmp.eq.s32.totalorder %s13, 0
    %p75 = por %p73, %p74
    %p76 = scmp.ne.s32.totalorder %s68, %s70
    %p77 = scmp.eq.s32.totalorder %s18, 1
    %p78 = por %p76, %p77
    %p79 = scmp.ne.s32.totalorder %s70, %s71
    %p80 = scmp.eq.s32.totalorder %s18, 0
    %p81 = por %p79, %p80
    %p82 = scmp.ne.s32.totalorder %s70, %s71
    %p83 = scmp.eq.s32.totalorder %s19, 1
    %p84 = por %p82, %p83
    %p86 = scmp.ne.s32.totalorder %s71, %s85
    %p87 = scmp.eq.s32.totalorder %s19, 0
    %p88 = por %p86, %p87
    %s90 = sadd.s32 %s89, 1
    %p93 = scmp.eq.s32.totalorder %s13, 1
    %p94 = scmp.ne.s32.totalorder %s89, %s91
    %p95 = scmp.eq.s32.totalorder %s13, 0
    %p96 = por %p94, %p95
    %p97 = scmp.ne.s32.totalorder %s89, %s91
    %p98 = scmp.eq.s32.totalorder %s18, 1
    %p99 = por %p97, %p98
    %p100 = scmp.ne.s32.totalorder %s91, %s92
    %p101 = scmp.eq.s32.totalorder %s18, 0
    %p102 = por %p100, %p101
    %p103 = scmp.ne.s32.totalorder %s91, %s92
    %p104 = scmp.eq.s32.totalorder %s19, 1
    %p105 = por %p103, %p104
    %p107 = scmp.ne.s32.totalorder %s92, %s106
    %p108 = scmp.eq.s32.totalorder %s19, 0
    %p109 = por %p107, %p108
    %s111 = sadd.s32 %s110, 1
    %p114 = scmp.eq.s32.totalorder %s13, 1
    %p115 = scmp.ne.s32.totalorder %s110, %s112
    %p116 = scmp.eq.s32.totalorder %s13, 0
    %p117 = por %p115, %p116
    %p118 = scmp.ne.s32.totalorder %s110, %s112
    %p119 = scmp.eq.s32.totalorder %s18, 1
    %p120 = por %p118, %p119
    %p121 = scmp.ne.s32.totalorder %s112, %s113
    %p122 = scmp.eq.s32.totalorder %s18, 0
    %p123 = por %p121, %p122
    %p124 = scmp.ne.s32.totalorder %s112, %s113
    %p125 = scmp.eq.s32.totalorder %s19, 1
    %p126 = por %p124, %p125
    %p128 = scmp.ne.s32.totalorder %s113, %s127
    %p129 = scmp.eq.s32.totalorder %s19, 0
    %p130 = por %p128, %p129
    %s132 = sadd.s32 %s131, 1
    %p135 = scmp.eq.s32.totalorder %s13, 1
    %p136 = scmp.ne.s32.totalorder %s131, %s133
    %p137 = scmp.eq.s32.totalorder %s13, 0
    %p138 = por %p136, %p137
    %p139 = scmp.ne.s32.totalorder %s131, %s133
    %p140 = scmp.eq.s32.totalorder %s18, 1
    %p141 = por %p139, %p140
    %p142 = scmp.ne.s32.totalorder %s133, %s134
    %p143 = scmp.eq.s32.totalorder %s18, 0
    %p144 = por %p142, %p143
    %p145 = scmp.ne.s32.totalorder %s133, %s134
    %p146 = scmp.eq.s32.totalorder %s19, 1
    %p147 = por %p145, %p146
    %p149 = scmp.ne.s32.totalorder %s134, %s148
    %p150 = scmp.eq.s32.totalorder %s19, 0
    %p151 = por %p149, %p150
    %s153 = sadd.s32 %s152, 1
    %p156 = scmp.eq.s32.totalorder %s13, 1
    %p157 = scmp.ne.s32.totalorder %s152, %s154
    %p158 = scmp.eq.s32.totalorder %s13, 0
    %p159 = por %p157, %p158
    %p160 = scmp.ne.s32.totalorder %s152, %s154
    %p161 = scmp.eq.s32.totalorder %s18, 1
    %p162 = por %p160, %p161
    %p163 = scmp.ne.s32.totalorder %s154, %s155
    %p164 = scmp.eq.s32.totalorder %s18, 0
    %p165 = por %p163, %p164
    %p166 = scmp.ne.s32.totalorder %s154, %s155
    %p167 = scmp.eq.s32.totalorder %s19, 1
    %p168 = por %p166, %p167
    %p170 = scmp.ne.s32.totalorder %s155, %s169
    %p171 = scmp.eq.s32.totalorder %s19, 0
    %p172 = por %p170, %p171
    %s173 = ssub.s32 %s13, %s20
    %p174 = scmp.eq.s32.totalorder %s173, 0
    %s176 = sadd.s32 %s175, 1
    %s177 = scalar_select %p174, %s175, %s176
    %p180 = pneg %p174
    %p181 = scmp.eq.s32.totalorder %s13, 1
    %p182 = por %p180, %p181
    %p183 = scmp.ne.s32.totalorder %s175, %s178
    %p184 = scmp.eq.s32.totalorder %s13, 0
    %p185 = por %p183, %p184
    %p186 = scmp.ne.s32.totalorder %s175, %s178
    %p187 = scmp.eq.s32.totalorder %s18, 1
    %p188 = por %p186, %p187
    %p189 = scmp.ne.s32.totalorder %s178, %s179
    %p190 = scmp.eq.s32.totalorder %s18, 0
    %p191 = por %p189, %p190
    %p192 = scmp.ne.s32.totalorder %s178, %s179
    %p193 = scmp.eq.s32.totalorder %s19, 1
    %p194 = por %p192, %p193
    %p196 = scmp.ne.s32.totalorder %s179, %s195
    %p197 = scmp.eq.s32.totalorder %s19, 0
    %p198 = por %p196, %p197
    %p199 = scmp.le.s32.totalorder 1, %s13
    %p200 = scmp.lt.s32.totalorder %s13, 3
    %p201 = pnand %p199, %p200
    %p202 = pneg %p201
    // Predicated region
    $region9: #{spp_block.1} parent=5 // pred_check
      _
    $region10: #{spp_block.1} parent=5 // pred_check_branch
      %204 = sbr.rel (%p201) target = $region12
    $region11: #{spp_block.1} parent=5 // pred_region
      %s205 = ssub.s32 %s13, 1
      // Predicated region
      $region13: #{spp_block.1} parent=11 // pred_check
        %p206 = pneg %p60
      $region14: #{spp_block.1} parent=11 // pred_check_branch
        %208 = sbr.rel (%p206) target = $region16
      $region15: #{spp_block.1} parent=11 // pred_region
        _
      $region16: #{spp_block.1} parent=11 // pred_fallthru
        _
      // Predicated region
      $region17: #{spp_block.1} parent=11 // pred_check
        %p209 = pneg %p81
      $region18: #{spp_block.1} parent=11 // pred_check_branch
        %211 = sbr.rel (%p209) target = $region20
      $region19: #{spp_block.1} parent=11 // pred_region
        _
      $region20: #{spp_block.1} parent=11 // pred_fallthru
        _
      // Predicated region
      $region21: #{spp_block.1} parent=11 // pred_check
        %p212 = pneg %p102
      $region22: #{spp_block.1} parent=11 // pred_check_branch
        %214 = sbr.rel (%p212) target = $region24
      $region23: #{spp_block.1} parent=11 // pred_region
        _
      $region24: #{spp_block.1} parent=11 // pred_fallthru
        _
      // Predicated region
      $region25: #{spp_block.1} parent=11 // pred_check
        %p215 = pneg %p123
      $region26: #{spp_block.1} parent=11 // pred_check_branch
        %217 = sbr.rel (%p215) target = $region28
      $region27: #{spp_block.1} parent=11 // pred_region
        _
      $region28: #{spp_block.1} parent=11 // pred_fallthru
        _
      // Predicated region
      $region29: #{spp_block.1} parent=11 // pred_check
        %p218 = pneg %p144
      $region30: #{spp_block.1} parent=11 // pred_check_branch
        %220 = sbr.rel (%p218) target = $region32
      $region31: #{spp_block.1} parent=11 // pred_region
        _
      $region32: #{spp_block.1} parent=11 // pred_fallthru
        _
      // Predicated region
      $region33: #{spp_block.1} parent=11 // pred_check
        %p221 = pneg %p165
      $region34: #{spp_block.1} parent=11 // pred_check_branch
        %223 = sbr.rel (%p221) target = $region36
      $region35: #{spp_block.1} parent=11 // pred_region
        _
      $region36: #{spp_block.1} parent=11 // pred_fallthru
        _
    $region12: #{spp_block.1} parent=5 // pred_fallthru
      _
    %p224 = scmp.lt.s32.totalorder %s13, 2
    // Predicated region
    $region37: #{spp_block.1} parent=5 // pred_check
      %p225 = pneg %p224
    $region38: #{spp_block.1} parent=5 // pred_check_branch
      %227 = sbr.rel (%p225) target = $region40
    $region39: #{spp_block.1} parent=5 // pred_region
      // Predicated region
      $region41: #{spp_block.1} parent=39 // pred_check
        %p228 = pneg %p33
      $region42: #{spp_block.1} parent=39 // pred_check_branch
        %230 = sbr.rel (%p228) target = $region44
      $region43: #{spp_block.1} parent=39 // pred_region
        %p231 = scmp.lt.s32.totalorder %s13, 1
        %s232 = scalar_select %p231, %s13, 1
        %s233 = smul.addr %s232, 32
        %s234 = smul.addr %s233, 4
        %s235 = scalar_lea.vmem %s0, %s234
      $region44: #{spp_block.1} parent=39 // pred_fallthru
        _
    $region40: #{spp_block.1} parent=5 // pred_fallthru
      _
    %p236 = scmp.le.s32.totalorder 1, %s13
    %p237 = scmp.lt.s32.totalorder %s13, 3
    %p238 = pnand %p236, %p237
    %p239 = pneg %p238
    // Predicated region
    $region45: #{spp_block.1} parent=5 // pred_check
      _
    $region46: #{spp_block.1} parent=5 // pred_check_branch
      %241 = sbr.rel (%p238) target = $region48
    $region47: #{spp_block.1} parent=5 // pred_region
      %s242 = ssub.s32 %s13, 1
      %p243 = scmp.lt.s32.totalorder %s18, 1
      %s244 = scalar_select %p243, %s18, 1
      %s245 = smul.addr %s244, 32
      %s246 = smul.addr %s245, 4
      %s247 = scalar_lea.vmem %s0, %s246
      %p248 = pneg %p39
      %p249 = pneg %p36
      %p250 = pneg %p60
      %p251 = pneg %p57
      %p252 = pneg %p81
      %p253 = pneg %p78
      %p254 = pneg %p102
      %p255 = pneg %p99
      %p256 = pneg %p123
      %p257 = pneg %p120
      %p258 = pneg %p144
      %p259 = pneg %p141
      %p260 = pneg %p165
      %p261 = pneg %p162
      %p262 = pneg %p191
      %p263 = pneg %p188
      %p264 = scmp.lt.s32.totalorder %s18, 1
      %s265 = scalar_select %p264, %s18, 1
      %s266 = smul.addr %s265, 32
      %s267 = smul.addr %s266, 8
      %s268 = scalar_lea.vmem %s7, %s267
      %p269 = scmp.lt.s32.totalorder %s18, 1
      %s270 = scalar_select %p269, %s18, 1
      %s271 = smul.addr %s270, 32
      %s272 = smul.addr %s271, 4
      %s273 = scalar_lea.vmem %s0, %s272
      %p274 = scmp.lt.s32.totalorder %s18, 1
      %s275 = scalar_select %p274, %s18, 1
      %s276 = smul.addr %s275, 32
      %s277 = smul.addr %s276, 8
      %s278 = scalar_lea.vmem %s7, %s277
      %v281 = vld [vmem:[%s273] sm:$0xf]
      %v282 = vld [vmem:[%s273 + $0x4] sm:$0xf]
      %v283 = vld [vmem:[%s273 + $0x8] sm:$0xf]
      %v284 = vld [vmem:[%s273 + $0xc] sm:$0xf]
      %v285 = vld [vmem:[%s273 + $0x10] sm:$0xf]
      %v286 = vld [vmem:[%s273 + $0x14] sm:$0xf]
      %v287 = vld [vmem:[%s273 + $0x18] sm:$0xf]
      %v288 = vld [vmem:[%s273 + $0x1c] sm:$0xf]
      %v289 = vld [vmem:[%s273 + $0x20] sm:$0xf]
      %v290 = vld [vmem:[%s273 + $0x24] sm:$0xf]
      %v291 = vld [vmem:[%s273 + $0x28] sm:$0xf]
      %v292 = vld [vmem:[%s273 + $0x2c] sm:$0xf]
      %v293 = vld [vmem:[%s273 + $0x30] sm:$0xf]
      %v294 = vld [vmem:[%s273 + $0x34] sm:$0xf]
      %v295 = vld [vmem:[%s273 + $0x38] sm:$0xf]
      %v296 = vld [vmem:[%s273 + $0x3c] sm:$0xf]
      %v297 = vld [vmem:[%s273 + $0x40] sm:$0xf]
      %v298 = vld [vmem:[%s273 + $0x44] sm:$0xf]
      %v299 = vld [vmem:[%s273 + $0x48] sm:$0xf]
      %v300 = vld [vmem:[%s273 + $0x4c] sm:$0xf]
      %v301 = vld [vmem:[%s273 + $0x50] sm:$0xf]
      %v302 = vld [vmem:[%s273 + $0x54] sm:$0xf]
      %v303 = vld [vmem:[%s273 + $0x58] sm:$0xf]
      %v304 = vld [vmem:[%s273 + $0x5c] sm:$0xf]
      %v305 = vld [vmem:[%s273 + $0x60] sm:$0xf]
      %v306 = vld [vmem:[%s273 + $0x64] sm:$0xf]
      %v307 = vld [vmem:[%s273 + $0x68] sm:$0xf]
      %v308 = vld [vmem:[%s273 + $0x6c] sm:$0xf]
      %v309 = vld [vmem:[%s273 + $0x70] sm:$0xf]
      %v310 = vld [vmem:[%s273 + $0x74] sm:$0xf]
      %v311 = vld [vmem:[%s273 + $0x78] sm:$0xf]
      %v312 = vld [vmem:[%s273 + $0x7c] sm:$0xf]
      %v313 = vld [vmem:[%s1] sm:$0x3]
      %v346 = vunpack.c.l.b16 %v281
      %v347 = vunpack.c.l.b16 %v282
      %v348 = vunpack.c.l.b16 %v283
      %v349 = vunpack.c.l.b16 %v284
      %v350 = vunpack.c.l.b16 %v285
      %v351 = vunpack.c.l.b16 %v286
      %v352 = vunpack.c.l.b16 %v287
      %v353 = vunpack.c.l.b16 %v288
      %v354 = vunpack.c.l.b16 %v289
      %v355 = vunpack.c.l.b16 %v290
      %v356 = vunpack.c.l.b16 %v291
      %v357 = vunpack.c.l.b16 %v292
      %v358 = vunpack.c.l.b16 %v293
      %v359 = vunpack.c.l.b16 %v294
      %v360 = vunpack.c.l.b16 %v295
      %v361 = vunpack.c.l.b16 %v296
      %v362 = vunpack.c.l.b16 %v297
      %v363 = vunpack.c.l.b16 %v298
      %v364 = vunpack.c.l.b16 %v299
      %v365 = vunpack.c.l.b16 %v300
      %v366 = vunpack.c.l.b16 %v301
      %v367 = vunpack.c.l.b16 %v302
      %v368 = vunpack.c.l.b16 %v303
      %v369 = vunpack.c.l.b16 %v304
      %v370 = vunpack.c.l.b16 %v305
      %v371 = vunpack.c.l.b16 %v306
      %v372 = vunpack.c.l.b16 %v307
      %v373 = vunpack.c.l.b16 %v308
      %v374 = vunpack.c.l.b16 %v309
      %v375 = vunpack.c.l.b16 %v310
      %v376 = vunpack.c.l.b16 %v311
      %v377 = vunpack.c.l.b16 %v312
      %v378 = vpack.c.b16 %v347, %v346
      %v379 = vpack.c.b16 %v349, %v348
      %v380 = vpack.c.b16 %v351, %v350
      %v381 = vpack.c.b16 %v353, %v352
      %v382 = vpack.c.b16 %v355, %v354
      %v383 = vpack.c.b16 %v357, %v356
      %v384 = vpack.c.b16 %v359, %v358
      %v385 = vpack.c.b16 %v361, %v360
      %v386 = vpack.c.b16 %v363, %v362
      %v387 = vpack.c.b16 %v365, %v364
      %v388 = vpack.c.b16 %v367, %v366
      %v389 = vpack.c.b16 %v369, %v368
      %v390 = vpack.c.b16 %v371, %v370
      %v391 = vpack.c.b16 %v373, %v372
      %v392 = vpack.c.b16 %v375, %v374
      %v393 = vpack.c.b16 %v377, %v376
      %vm394 = vcmask 31744
      %v396 = vsel %vm394, %v378, 0
      %v399 = vsel %vm394, %v379, 0
      %v402 = vsel %vm394, %v380, 0
      %v405 = vsel %vm394, %v381, 0
      %v408 = vsel %vm394, %v382, 0
      %v411 = vsel %vm394, %v383, 0
      %v414 = vsel %vm394, %v384, 0
      %v417 = vsel %vm394, %v385, 0
      %v420 = vsel %vm394, %v386, 0
      %v423 = vsel %vm394, %v387, 0
      %v426 = vsel %vm394, %v388, 0
      %v429 = vsel %vm394, %v389, 0
      %v432 = vsel %vm394, %v390, 0
      %v435 = vsel %vm394, %v391, 0
      %v438 = vsel %vm394, %v392, 0
      %v441 = vsel %vm394, %v393, 0
      %vm443 = vcmask 1041408
      %v445 = vsel %vm443, %v313, 0
      %447 = vmatprep.subr.bf16.mxu0 0
      %448 = vmatpush1.bf16.msra.mxu0 %v445
      %449 = vmatprep.subr.bf16.mxu0 0
      %450 = vmatpush1.bf16.msra.mxu0 0
      %451 = vmatprep.subr.bf16.mxu0 0
      %452 = vmatpush1.bf16.msra.mxu0 0
      %453 = vmatprep.subr.bf16.mxu0 0
      %454 = vmatpush1.bf16.msra.mxu0 0
      %455 = vmatprep.subr.bf16.mxu0 0
      %456 = vmatpush1.bf16.msra.mxu0 0
      %457 = vmatprep.subr.bf16.mxu0 0
      %458 = vmatpush1.bf16.msra.mxu0 0
      %459 = vmatprep.subr.bf16.mxu0 0
      %460 = vmatpush1.bf16.msra.mxu0 0
      %461 = vmatprep.subr.bf16.mxu0 0
      %462 = vmatpush1.bf16.msra.mxu0 0
      %463 = vmatprep.subr.bf16.mxu0 0
      %464 = vmatpush1.bf16.msra.mxu0 0
      %465 = vmatprep.subr.bf16.mxu0 0
      %466 = vmatpush1.bf16.msra.mxu0 0
      %467 = vmatprep.subr.bf16.mxu0 0
      %468 = vmatpush1.bf16.msra.mxu0 0
      %469 = vmatprep.subr.bf16.mxu0 0
      %470 = vmatpush1.bf16.msra.mxu0 0
      %471 = vmatprep.subr.bf16.mxu0 0
      %472 = vmatpush1.bf16.msra.mxu0 0
      %473 = vmatprep.subr.bf16.mxu0 0
      %474 = vmatpush1.bf16.msra.mxu0 0
      %475 = vmatprep.subr.bf16.mxu0 0
      %476 = vmatpush1.bf16.msra.mxu0 0
      %477 = vmatprep.subr.bf16.mxu0 0
      %478 = vmatpush1.bf16.msra.mxu0 0
      %479 = vmatprep.mubr.bf16.mxu0 0
      %480 = vmatmul.mubr.bf16.gmra.mrb[0].mxu0 %v396
      %v481 = vpop.f32.mrb[0].mxu0
      %v482 = vadd.f32 0.0, %v481
      %v483 = vpop.f32.mrb[0].mxu0
      %v484 = vpop.f32.mrb[0].mxu0
      %v485 = vadd.f32 0.0, %v484
      %v486 = vpop.f32.mrb[0].mxu0
      %487 = vmatprep.mubr.bf16.mxu0 0
      %488 = vmatmul.mubr.bf16.gmra.mrb[0].mxu0 %v399
      %v489 = vpop.f32.mrb[0].mxu0
      %v490 = vadd.f32 0.0, %v489
      %v491 = vpop.f32.mrb[0].mxu0
      %v492 = vpop.f32.mrb[0].mxu0
      %v493 = vadd.f32 0.0, %v492
      %v494 = vpop.f32.mrb[0].mxu0
      %495 = vmatprep.mubr.bf16.mxu0 0
      %496 = vmatmul.mubr.bf16.gmra.mrb[0].mxu0 %v402
      %v497 = vpop.f32.mrb[0].mxu0
      %v498 = vadd.f32 0.0, %v497
      %v499 = vpop.f32.mrb[0].mxu0
      %v500 = vpop.f32.mrb[0].mxu0
      %v501 = vadd.f32 0.0, %v500
      %v502 = vpop.f32.mrb[0].mxu0
      %503 = vmatprep.mubr.bf16.mxu0 0
      %504 = vmatmul.mubr.bf16.gmra.mrb[0].mxu0 %v405
      %v505 = vpop.f32.mrb[0].mxu0
      %v506 = vadd.f32 0.0, %v505
      %v507 = vpop.f32.mrb[0].mxu0
      %v508 = vpop.f32.mrb[0].mxu0
      %v509 = vadd.f32 0.0, %v508
      %v510 = vpop.f32.mrb[0].mxu0
      %511 = vmatprep.mubr.bf16.mxu0 0
      %512 = vmatmul.mubr.bf16.gmra.mrb[0].mxu0 %v408
      %v513 = vpop.f32.mrb[0].mxu0
      %v514 = vadd.f32 0.0, %v513
      %v515 = vpop.f32.mrb[0].mxu0
      %v516 = vpop.f32.mrb[0].mxu0
      %v517 = vadd.f32 0.0, %v516
      %v518 = vpop.f32.mrb[0].mxu0
      %519 = vmatprep.mubr.bf16.mxu0 0
      %520 = vmatmul.mubr.bf16.gmra.mrb[0].mxu0 %v411
      %v521 = vpop.f32.mrb[0].mxu0
      %v522 = vadd.f32 0.0, %v521
      %v523 = vpop.f32.mrb[0].mxu0
      %v524 = vpop.f32.mrb[0].mxu0
      %v525 = vadd.f32 0.0, %v524
      %v526 = vpop.f32.mrb[0].mxu0
      %527 = vmatprep.mubr.bf16.mxu0 0
      %528 = vmatmul.mubr.bf16.gmra.mrb[0].mxu0 %v414
      %v529 = vpop.f32.mrb[0].mxu0
      %v530 = vadd.f32 0.0, %v529
      %v531 = vpop.f32.mrb[0].mxu0
      %v532 = vpop.f32.mrb[0].mxu0
      %v533 = vadd.f32 0.0, %v532
      %v534 = vpop.f32.mrb[0].mxu0
      %535 = vmatprep.mubr.bf16.mxu0 0
      %536 = vmatmul.mubr.bf16.gmra.mrb[0].mxu0 %v417
      %v537 = vpop.f32.mrb[0].mxu0
      %v538 = vadd.f32 0.0, %v537
      %v539 = vpop.f32.mrb[0].mxu0
      %v540 = vpop.f32.mrb[0].mxu0
      %v541 = vadd.f32 0.0, %v540
      %v542 = vpop.f32.mrb[0].mxu0
      %543 = vmatprep.mubr.bf16.mxu0 0
      %544 = vmatmul.mubr.bf16.gmra.mrb[0].mxu0 %v420
      %v545 = vpop.f32.mrb[0].mxu0
      %v546 = vadd.f32 0.0, %v545
      %v547 = vpop.f32.mrb[0].mxu0
      %v548 = vpop.f32.mrb[0].mxu0
      %v549 = vadd.f32 0.0, %v548
      %v550 = vpop.f32.mrb[0].mxu0
      %551 = vmatprep.mubr.bf16.mxu0 0
      %552 = vmatmul.mubr.bf16.gmra.mrb[0].mxu0 %v423
      %v553 = vpop.f32.mrb[0].mxu0
      %v554 = vadd.f32 0.0, %v553
      %v555 = vpop.f32.mrb[0].mxu0
      %v556 = vpop.f32.mrb[0].mxu0
      %v557 = vadd.f32 0.0, %v556
      %v558 = vpop.f32.mrb[0].mxu0
      %559 = vmatprep.mubr.bf16.mxu0 0
      %560 = vmatmul.mubr.bf16.gmra.mrb[0].mxu0 %v426
      %v561 = vpop.f32.mrb[0].mxu0
      %v562 = vadd.f32 0.0, %v561
      %v563 = vpop.f32.mrb[0].mxu0
      %v564 = vpop.f32.mrb[0].mxu0
      %v565 = vadd.f32 0.0, %v564
      %v566 = vpop.f32.mrb[0].mxu0
      %567 = vmatprep.mubr.bf16.mxu0 0
      %568 = vmatmul.mubr.bf16.gmra.mrb[0].mxu0 %v429
      %v569 = vpop.f32.mrb[0].mxu0
      %v570 = vadd.f32 0.0, %v569
      %v571 = vpop.f32.mrb[0].mxu0
      %v572 = vpop.f32.mrb[0].mxu0
      %v573 = vadd.f32 0.0, %v572
      %v574 = vpop.f32.mrb[0].mxu0
      %575 = vmatprep.mubr.bf16.mxu0 0
      %576 = vmatmul.mubr.bf16.gmra.mrb[0].mxu0 %v432
      %v577 = vpop.f32.mrb[0].mxu0
      %v578 = vadd.f32 0.0, %v577
      %v579 = vpop.f32.mrb[0].mxu0
      %v580 = vpop.f32.mrb[0].mxu0
      %v581 = vadd.f32 0.0, %v580
      %v582 = vpop.f32.mrb[0].mxu0
      %583 = vmatprep.mubr.bf16.mxu0 0
      %584 = vmatmul.mubr.bf16.gmra.mrb[0].mxu0 %v435
      %v585 = vpop.f32.mrb[0].mxu0
      %v586 = vadd.f32 0.0, %v585
      %v587 = vpop.f32.mrb[0].mxu0
      %v588 = vpop.f32.mrb[0].mxu0
      %v589 = vadd.f32 0.0, %v588
      %v590 = vpop.f32.mrb[0].mxu0
      %591 = vmatprep.mubr.bf16.mxu0 0
      %592 = vmatmul.mubr.bf16.gmra.mrb[0].mxu0 %v438
      %v593 = vpop.f32.mrb[0].mxu0
      %v594 = vadd.f32 0.0, %v593
      %v595 = vpop.f32.mrb[0].mxu0
      %v596 = vpop.f32.mrb[0].mxu0
      %v597 = vadd.f32 0.0, %v596
      %v598 = vpop.f32.mrb[0].mxu0
      %599 = vmatprep.mubr.bf16.mxu0 0
      %600 = vmatmul.mubr.bf16.gmra.mrb[0].mxu0 %v441
      %v601 = vpop.f32.mrb[0].mxu0
      %v602 = vadd.f32 0.0, %v601
      %v603 = vpop.f32.mrb[0].mxu0
      %v604 = vpop.f32.mrb[0].mxu0
      %v605 = vadd.f32 0.0, %v604
      %v606 = vpop.f32.mrb[0].mxu0
      %607 = vdwg.mxu0
      %v608 = vld [vmem:[%s2] sm:$0x1]
      %v610 = vlaneseq
      %v611 = vshrl.u32 %v610, 7
      %v612 = vsub.s32 0, %v611
      %v613 = vrot.slane %v608, %v612
      %v615 = vmul.f32 %v482, %v613
      %v616 = vmul.f32 %v485, %v613
      %v617 = vmul.f32 %v490, %v613
      %v618 = vmul.f32 %v493, %v613
      %v619 = vmul.f32 %v498, %v613
      %v620 = vmul.f32 %v501, %v613
      %v621 = vmul.f32 %v506, %v613
      %v622 = vmul.f32 %v509, %v613
      %v623 = vmul.f32 %v514, %v613
      %v624 = vmul.f32 %v517, %v613
      %v625 = vmul.f32 %v522, %v613
      %v626 = vmul.f32 %v525, %v613
      %v627 = vmul.f32 %v530, %v613
      %v628 = vmul.f32 %v533, %v613
      %v629 = vmul.f32 %v538, %v613
      %v630 = vmul.f32 %v541, %v613
      %v631 = vmul.f32 %v546, %v613
      %v632 = vmul.f32 %v549, %v613
      %v633 = vmul.f32 %v554, %v613
      %v634 = vmul.f32 %v557, %v613
      %v635 = vmul.f32 %v562, %v613
      %v636 = vmul.f32 %v565, %v613
      %v637 = vmul.f32 %v570, %v613
      %v638 = vmul.f32 %v573, %v613
      %v639 = vmul.f32 %v578, %v613
      %v640 = vmul.f32 %v581, %v613
      %v641 = vmul.f32 %v586, %v613
      %v642 = vmul.f32 %v589, %v613
      %v643 = vmul.f32 %v594, %v613
      %v644 = vmul.f32 %v597, %v613
      %v645 = vmul.f32 %v602, %v613
      %v646 = vmul.f32 %v605, %v613
      %v647 = vld [vmem:[%s3] sm:$0x1]
      %v649 = vlaneseq
      %v650 = vshrl.u32 %v649, 7
      %v651 = vsub.s32 0, %v650
      %v652 = vrot.slane %v647, %v651
      %v654 = vadd.f32 %v615, %v652
      %v655 = vadd.f32 %v616, %v652
      %v656 = vadd.f32 %v617, %v652
      %v657 = vadd.f32 %v618, %v652
      %v658 = vadd.f32 %v619, %v652
      %v659 = vadd.f32 %v620, %v652
      %v660 = vadd.f32 %v621, %v652
      %v661 = vadd.f32 %v622, %v652
      %v662 = vadd.f32 %v623, %v652
      %v663 = vadd.f32 %v624, %v652
      %v664 = vadd.f32 %v625, %v652
      %v665 = vadd.f32 %v626, %v652
      %v666 = vadd.f32 %v627, %v652
      %v667 = vadd.f32 %v628, %v652
      %v668 = vadd.f32 %v629, %v652
      %v669 = vadd.f32 %v630, %v652
      %v670 = vadd.f32 %v631, %v652
      %v671 = vadd.f32 %v632, %v652
      %v672 = vadd.f32 %v633, %v652
      %v673 = vadd.f32 %v634, %v652
      %v674 = vadd.f32 %v635, %v652
      %v675 = vadd.f32 %v636, %v652
      %v676 = vadd.f32 %v637, %v652
      %v677 = vadd.f32 %v638, %v652
      %v678 = vadd.f32 %v639, %v652
      %v679 = vadd.f32 %v640, %v652
      %v680 = vadd.f32 %v641, %v652
      %v681 = vadd.f32 %v642, %v652
      %v682 = vadd.f32 %v643, %v652
      %v683 = vadd.f32 %v644, %v652
      %v684 = vadd.f32 %v645, %v652
      %v685 = vadd.f32 %v646, %v652
      %v686 = vxor.u32 %v654, 2147483648
      %v687 = vxor.u32 %v655, 2147483648
      %v688 = vxor.u32 %v656, 2147483648
      %v689 = vxor.u32 %v657, 2147483648
      %v690 = vxor.u32 %v658, 2147483648
      %v691 = vxor.u32 %v659, 2147483648
      %v692 = vxor.u32 %v660, 2147483648
      %v693 = vxor.u32 %v661, 2147483648
      %v694 = vxor.u32 %v662, 2147483648
      %v695 = vxor.u32 %v663, 2147483648
      %v696 = vxor.u32 %v664, 2147483648
      %v697 = vxor.u32 %v665, 2147483648
      %v698 = vxor.u32 %v666, 2147483648
      %v699 = vxor.u32 %v667, 2147483648
      %v700 = vxor.u32 %v668, 2147483648
      %v701 = vxor.u32 %v669, 2147483648
      %v702 = vxor.u32 %v670, 2147483648
      %v703 = vxor.u32 %v671, 2147483648
      %v704 = vxor.u32 %v672, 2147483648
      %v705 = vxor.u32 %v673, 2147483648
      %v706 = vxor.u32 %v674, 2147483648
      %v707 = vxor.u32 %v675, 2147483648
      %v708 = vxor.u32 %v676, 2147483648
      %v709 = vxor.u32 %v677, 2147483648
      %v710 = vxor.u32 %v678, 2147483648
      %v711 = vxor.u32 %v679, 2147483648
      %v712 = vxor.u32 %v680, 2147483648
      %v713 = vxor.u32 %v681, 2147483648
      %v714 = vxor.u32 %v682, 2147483648
      %v715 = vxor.u32 %v683, 2147483648
      %v716 = vxor.u32 %v684, 2147483648
      %v717 = vxor.u32 %v685, 2147483648
      %v718 = vmul.f32 %v686, 1.442695
      %v719 = vpow.pop %v718
      %v720 = vmul.f32 %v687, 1.442695
      %v721 = vpow.pop %v720
      %v722 = vmul.f32 %v688, 1.442695
      %v723 = vpow.pop %v722
      %v724 = vmul.f32 %v689, 1.442695
      %v725 = vpow.pop %v724
      %v726 = vmul.f32 %v690, 1.442695
      %v727 = vpow.pop %v726
      %v728 = vmul.f32 %v691, 1.442695
      %v729 = vpow.pop %v728
      %v730 = vmul.f32 %v692, 1.442695
      %v731 = vpow.pop %v730
      %v732 = vmul.f32 %v693, 1.442695
      %v733 = vpow.pop %v732
      %v734 = vmul.f32 %v694, 1.442695
      %v735 = vpow.pop %v734
      %v736 = vmul.f32 %v695, 1.442695
      %v737 = vpow.pop %v736
      %v738 = vmul.f32 %v696, 1.442695
      %v739 = vpow.pop %v738
      %v740 = vmul.f32 %v697, 1.442695
      %v741 = vpow.pop %v740
      %v742 = vmul.f32 %v698, 1.442695
      %v743 = vpow.pop %v742
      %v744 = vmul.f32 %v699, 1.442695
      %v745 = vpow.pop %v744
      %v746 = vmul.f32 %v700, 1.442695
      %v747 = vpow.pop %v746
      %v748 = vmul.f32 %v701, 1.442695
      %v749 = vpow.pop %v748
      %v750 = vmul.f32 %v702, 1.442695
      %v751 = vpow.pop %v750
      %v752 = vmul.f32 %v703, 1.442695
      %v753 = vpow.pop %v752
      %v754 = vmul.f32 %v704, 1.442695
      %v755 = vpow.pop %v754
      %v756 = vmul.f32 %v705, 1.442695
      %v757 = vpow.pop %v756
      %v758 = vmul.f32 %v706, 1.442695
      %v759 = vpow.pop %v758
      %v760 = vmul.f32 %v707, 1.442695
      %v761 = vpow.pop %v760
      %v762 = vmul.f32 %v708, 1.442695
      %v763 = vpow.pop %v762
      %v764 = vmul.f32 %v709, 1.442695
      %v765 = vpow.pop %v764
      %v766 = vmul.f32 %v710, 1.442695
      %v767 = vpow.pop %v766
      %v768 = vmul.f32 %v711, 1.442695
      %v769 = vpow.pop %v768
      %v770 = vmul.f32 %v712, 1.442695
      %v771 = vpow.pop %v770
      %v772 = vmul.f32 %v713, 1.442695
      %v773 = vpow.pop %v772
      %v774 = vmul.f32 %v714, 1.442695
      %v775 = vpow.pop %v774
      %v776 = vmul.f32 %v715, 1.442695
      %v777 = vpow.pop %v776
      %v778 = vmul.f32 %v716, 1.442695
      %v779 = vpow.pop %v778
      %v780 = vmul.f32 %v717, 1.442695
      %v781 = vpow.pop %v780
      %v782 = vadd.f32 %v719, 1.0
      %v783 = vadd.f32 %v721, 1.0
      %v784 = vadd.f32 %v723, 1.0
      %v785 = vadd.f32 %v725, 1.0
      %v786 = vadd.f32 %v727, 1.0
      %v787 = vadd.f32 %v729, 1.0
      %v788 = vadd.f32 %v731, 1.0
      %v789 = vadd.f32 %v733, 1.0
      %v790 = vadd.f32 %v735, 1.0
      %v791 = vadd.f32 %v737, 1.0
      %v792 = vadd.f32 %v739, 1.0
      %v793 = vadd.f32 %v741, 1.0
      %v794 = vadd.f32 %v743, 1.0
      %v795 = vadd.f32 %v745, 1.0
      %v796 = vadd.f32 %v747, 1.0
      %v797 = vadd.f32 %v749, 1.0
      %v798 = vadd.f32 %v751, 1.0
      %v799 = vadd.f32 %v753, 1.0
      %v800 = vadd.f32 %v755, 1.0
      %v801 = vadd.f32 %v757, 1.0
      %v802 = vadd.f32 %v759, 1.0
      %v803 = vadd.f32 %v761, 1.0
      %v804 = vadd.f32 %v763, 1.0
      %v805 = vadd.f32 %v765, 1.0
      %v806 = vadd.f32 %v767, 1.0
      %v807 = vadd.f32 %v769, 1.0
      %v808 = vadd.f32 %v771, 1.0
      %v809 = vadd.f32 %v773, 1.0
      %v810 = vadd.f32 %v775, 1.0
      %v811 = vadd.f32 %v777, 1.0
      %v812 = vadd.f32 %v779, 1.0
      %v813 = vadd.f32 %v781, 1.0
      %v814 = vrcp.pop %v782
      %v815 = vmul.f32 1.0, %v814
      %v816 = vrcp.pop %v783
      %v817 = vmul.f32 1.0, %v816
      %v818 = vrcp.pop %v784
      %v819 = vmul.f32 1.0, %v818
      %v820 = vrcp.pop %v785
      %v821 = vmul.f32 1.0, %v820
      %v822 = vrcp.pop %v786
      %v823 = vmul.f32 1.0, %v822
      %v824 = vrcp.pop %v787
      %v825 = vmul.f32 1.0, %v824
      %v826 = vrcp.pop %v788
      %v827 = vmul.f32 1.0, %v826
      %v828 = vrcp.pop %v789
      %v829 = vmul.f32 1.0, %v828
      %v830 = vrcp.pop %v790
      %v831 = vmul.f32 1.0, %v830
      %v832 = vrcp.pop %v791
      %v833 = vmul.f32 1.0, %v832
      %v834 = vrcp.pop %v792
      %v835 = vmul.f32 1.0, %v834
      %v836 = vrcp.pop %v793
      %v837 = vmul.f32 1.0, %v836
      %v838 = vrcp.pop %v794
      %v839 = vmul.f32 1.0, %v838
      %v840 = vrcp.pop %v795
      %v841 = vmul.f32 1.0, %v840
      %v842 = vrcp.pop %v796
      %v843 = vmul.f32 1.0, %v842
      %v844 = vrcp.pop %v797
      %v845 = vmul.f32 1.0, %v844
      %v846 = vrcp.pop %v798
      %v847 = vmul.f32 1.0, %v846
      %v848 = vrcp.pop %v799
      %v849 = vmul.f32 1.0, %v848
      %v850 = vrcp.pop %v800
      %v851 = vmul.f32 1.0, %v850
      %v852 = vrcp.pop %v801
      %v853 = vmul.f32 1.0, %v852
      %v854 = vrcp.pop %v802
      %v855 = vmul.f32 1.0, %v854
      %v856 = vrcp.pop %v803
      %v857 = vmul.f32 1.0, %v856
      %v858 = vrcp.pop %v804
      %v859 = vmul.f32 1.0, %v858
      %v860 = vrcp.pop %v805
      %v861 = vmul.f32 1.0, %v860
      %v862 = vrcp.pop %v806
      %v863 = vmul.f32 1.0, %v862
      %v864 = vrcp.pop %v807
      %v865 = vmul.f32 1.0, %v864
      %v866 = vrcp.pop %v808
      %v867 = vmul.f32 1.0, %v866
      %v868 = vrcp.pop %v809
      %v869 = vmul.f32 1.0, %v868
      %v870 = vrcp.pop %v810
      %v871 = vmul.f32 1.0, %v870
      %v872 = vrcp.pop %v811
      %v873 = vmul.f32 1.0, %v872
      %v874 = vrcp.pop %v812
      %v875 = vmul.f32 1.0, %v874
      %v876 = vrcp.pop %v813
      %v877 = vmul.f32 1.0, %v876
      %v878 = vmul.f32 %v654, %v815
      %v879 = vmul.f32 %v655, %v817
      %v880 = vmul.f32 %v656, %v819
      %v881 = vmul.f32 %v657, %v821
      %v882 = vmul.f32 %v658, %v823
      %v883 = vmul.f32 %v659, %v825
      %v884 = vmul.f32 %v660, %v827
      %v885 = vmul.f32 %v661, %v829
      %v886 = vmul.f32 %v662, %v831
      %v887 = vmul.f32 %v663, %v833
      %v888 = vmul.f32 %v664, %v835
      %v889 = vmul.f32 %v665, %v837
      %v890 = vmul.f32 %v666, %v839
      %v891 = vmul.f32 %v667, %v841
      %v892 = vmul.f32 %v668, %v843
      %v893 = vmul.f32 %v669, %v845
      %v894 = vmul.f32 %v670, %v847
      %v895 = vmul.f32 %v671, %v849
      %v896 = vmul.f32 %v672, %v851
      %v897 = vmul.f32 %v673, %v853
      %v898 = vmul.f32 %v674, %v855
      %v899 = vmul.f32 %v675, %v857
      %v900 = vmul.f32 %v676, %v859
      %v901 = vmul.f32 %v677, %v861
      %v902 = vmul.f32 %v678, %v863
      %v903 = vmul.f32 %v679, %v865
      %v904 = vmul.f32 %v680, %v867
      %v905 = vmul.f32 %v681, %v869
      %v906 = vmul.f32 %v682, %v871
      %v907 = vmul.f32 %v683, %v873
      %v908 = vmul.f32 %v684, %v875
      %v909 = vmul.f32 %v685, %v877
      %v910 = vpack.c.bf16 %v879, %v878
      %v911 = vpack.c.bf16 %v881, %v880
      %v912 = vpack.c.bf16 %v883, %v882
      %v913 = vpack.c.bf16 %v885, %v884
      %v914 = vpack.c.bf16 %v887, %v886
      %v915 = vpack.c.bf16 %v889, %v888
      %v916 = vpack.c.bf16 %v891, %v890
      %v917 = vpack.c.bf16 %v893, %v892
      %v918 = vpack.c.bf16 %v895, %v894
      %v919 = vpack.c.bf16 %v897, %v896
      %v920 = vpack.c.bf16 %v899, %v898
      %v921 = vpack.c.bf16 %v901, %v900
      %v922 = vpack.c.bf16 %v903, %v902
      %v923 = vpack.c.bf16 %v905, %v904
      %v924 = vpack.c.bf16 %v907, %v906
      %v925 = vpack.c.bf16 %v909, %v908
      %v926 = vld [vmem:[%s4] sm:$0xf]
      %vm927 = vcmask 15360
      %928 = vst.msk [vmem:[#allocation2] sm:$0xff] %vm927, 4286644096
      %929 = vst.msk [vmem:[#allocation2 + $0x8] sm:$0xff] %vm927, 4286644096
      %930 = vst.msk [vmem:[#allocation2 + $0x10] sm:$0xff] %vm927, 4286644096
      %931 = vst.msk [vmem:[#allocation2 + $0x18] sm:$0xff] %vm927, 4286644096
      %932 = vst.msk [vmem:[#allocation2 + $0x20] sm:$0xff] %vm927, 4286644096
      %933 = vst.msk [vmem:[#allocation2 + $0x28] sm:$0xff] %vm927, 4286644096
      %934 = vst.msk [vmem:[#allocation2 + $0x30] sm:$0xff] %vm927, 4286644096
      %935 = vst.msk [vmem:[#allocation2 + $0x38] sm:$0xff] %vm927, 4286644096
      %936 = vst.msk [vmem:[#allocation2 + $0x40] sm:$0xff] %vm927, 4286644096
      %937 = vst.msk [vmem:[#allocation2 + $0x48] sm:$0xff] %vm927, 4286644096
      %938 = vst.msk [vmem:[#allocation2 + $0x50] sm:$0xff] %vm927, 4286644096
      %939 = vst.msk [vmem:[#allocation2 + $0x58] sm:$0xff] %vm927, 4286644096
      %s940 = scalar_lea.vmem [#allocation2], 352
      %941 = vst.msk [vmem:[%s940] sm:$0xff] %vm927, 4286644096
      %942 = vst.msk [vmem:[%s940 + $0x8] sm:$0xff] %vm927, 4286644096
      %943 = vst.msk [vmem:[%s940 + $0x10] sm:$0xff] %vm927, 4286644096
      %944 = vst.msk [vmem:[%s940 + $0x18] sm:$0xff] %vm927, 4286644096
      %945 = vst.msk [vmem:[%s940 + $0x20] sm:$0xff] %vm927, 4286644096
      %946 = vst.msk [vmem:[%s940 + $0x28] sm:$0xff] %vm927, 4286644096
      %947 = vst.msk [vmem:[%s940 + $0x30] sm:$0xff] %vm927, 4286644096
      %948 = vst.msk [vmem:[%s940 + $0x38] sm:$0xff] %vm927, 4286644096
      %949 = vst.msk [vmem:[%s940 + $0x40] sm:$0xff] %vm927, 4286644096
      %950 = vst.msk [vmem:[%s940 + $0x48] sm:$0xff] %vm927, 4286644096
      %951 = vst.msk [vmem:[%s940 + $0x50] sm:$0xff] %vm927, 4286644096
      %952 = vst.msk [vmem:[%s940 + $0x58] sm:$0xff] %vm927, 4286644096
      %s953 = scalar_lea.vmem [#allocation2], 96
      %vm954 = vcmask 11264
      %955 = vst.msk [vmem:[%s953] sm:$0xf] %vm954, 4286644096
      %956 = vst.msk [vmem:[%s953 + $0x10] sm:$0xf] %vm954, 4286644096
      %957 = vst.msk [vmem:[%s953 + $0x20] sm:$0xf] %vm954, 4286644096
      %958 = vst.msk [vmem:[%s953 + $0x30] sm:$0xf] %vm954, 4286644096
      %959 = vst.msk [vmem:[%s953 + $0x40] sm:$0xf] %vm954, 4286644096
      %960 = vst.msk [vmem:[%s953 + $0x50] sm:$0xf] %vm954, 4286644096
      %961 = vst.msk [vmem:[%s953 + $0x60] sm:$0xf] %vm954, 4286644096
      %962 = vst.msk [vmem:[%s953 + $0x70] sm:$0xf] %vm954, 4286644096
      %963 = vst.msk [vmem:[%s953 + $0x80] sm:$0xf] %vm954, 4286644096
      %964 = vst.msk [vmem:[%s953 + $0x90] sm:$0xf] %vm954, 4286644096
      %965 = vst.msk [vmem:[%s953 + $0xa0] sm:$0xf] %vm954, 4286644096
      %966 = vst.msk [vmem:[%s953 + $0xb0] sm:$0xf] %vm954, 4286644096
      %967 = vst.msk [vmem:[%s953 + $0xc0] sm:$0xf] %vm954, 4286644096
      %968 = vst.msk [vmem:[%s953 + $0xd0] sm:$0xf] %vm954, 4286644096
      %969 = vst.msk [vmem:[%s953 + $0xe0] sm:$0xf] %vm954, 4286644096
      %970 = vst.msk [vmem:[%s953 + $0xf0] sm:$0xf] %vm954, 4286644096
      %vm971 = vcmask 15364
      %972 = vst.msk [vmem:[%s953 + $0x8] sm:$0xf0] %vm971, 4286644096
      %973 = vst.msk [vmem:[%s953 + $0x18] sm:$0xf0] %vm971, 4286644096
      %974 = vst.msk [vmem:[%s953 + $0x28] sm:$0xf0] %vm971, 4286644096
      %975 = vst.msk [vmem:[%s953 + $0x38] sm:$0xf0] %vm971, 4286644096
      %976 = vst.msk [vmem:[%s953 + $0x48] sm:$0xf0] %vm971, 4286644096
      %977 = vst.msk [vmem:[%s953 + $0x58] sm:$0xf0] %vm971, 4286644096
      %978 = vst.msk [vmem:[%s953 + $0x68] sm:$0xf0] %vm971, 4286644096
      %979 = vst.msk [vmem:[%s953 + $0x78] sm:$0xf0] %vm971, 4286644096
      %980 = vst.msk [vmem:[%s953 + $0x88] sm:$0xf0] %vm971, 4286644096
      %981 = vst.msk [vmem:[%s953 + $0x98] sm:$0xf0] %vm971, 4286644096
      %982 = vst.msk [vmem:[%s953 + $0xa8] sm:$0xf0] %vm971, 4286644096
      %983 = vst.msk [vmem:[%s953 + $0xb8] sm:$0xf0] %vm971, 4286644096
      %984 = vst.msk [vmem:[%s953 + $0xc8] sm:$0xf0] %vm971, 4286644096
      %985 = vst.msk [vmem:[%s953 + $0xd8] sm:$0xf0] %vm971, 4286644096
      %986 = vst.msk [vmem:[%s953 + $0xe8] sm:$0xf0] %vm971, 4286644096
      %987 = vst.msk [vmem:[%s953 + $0xf8] sm:$0xf0] %vm971, 4286644096
      %v1004 = vrot.slane %v910, 4
      %v1005 = vrot.slane %v911, 4
      %v1006 = vrot.slane %v912, 4
      %v1007 = vrot.slane %v913, 4
      %v1008 = vrot.slane %v914, 4
      %v1009 = vrot.slane %v915, 4
      %v1010 = vrot.slane %v916, 4
      %v1011 = vrot.slane %v917, 4
      %v1012 = vrot.slane %v918, 4
      %v1013 = vrot.slane %v919, 4
      %v1014 = vrot.slane %v920, 4
      %v1015 = vrot.slane %v921, 4
      %v1016 = vrot.slane %v922, 4
      %v1017 = vrot.slane %v923, 4
      %v1018 = vrot.slane %v924, 4
      %v1019 = vrot.slane %v925, 4
      %1036 = vst.msk [vmem:[%s953] sm:$0xf0] %vm971, %v1004
      %1037 = vst.msk [vmem:[%s953 + $0x8] sm:$0xf] %vm954, %v1004
      %1038 = vst.msk [vmem:[%s953 + $0x10] sm:$0xf0] %vm971, %v1005
      %1039 = vst.msk [vmem:[%s953 + $0x18] sm:$0xf] %vm954, %v1005
      %1040 = vst.msk [vmem:[%s953 + $0x20] sm:$0xf0] %vm971, %v1006
      %1041 = vst.msk [vmem:[%s953 + $0x28] sm:$0xf] %vm954, %v1006
      %1042 = vst.msk [vmem:[%s953 + $0x30] sm:$0xf0] %vm971, %v1007
      %1043 = vst.msk [vmem:[%s953 + $0x38] sm:$0xf] %vm954, %v1007
      %1044 = vst.msk [vmem:[%s953 + $0x40] sm:$0xf0] %vm971, %v1008
      %1045 = vst.msk [vmem:[%s953 + $0x48] sm:$0xf] %vm954, %v1008
      %1046 = vst.msk [vmem:[%s953 + $0x50] sm:$0xf0] %vm971, %v1009
      %1047 = vst.msk [vmem:[%s953 + $0x58] sm:$0xf] %vm954, %v1009
      %1048 = vst.msk [vmem:[%s953 + $0x60] sm:$0xf0] %vm971, %v1010
      %1049 = vst.msk [vmem:[%s953 + $0x68] sm:$0xf] %vm954, %v1010
      %1050 = vst.msk [vmem:[%s953 + $0x70] sm:$0xf0] %vm971, %v1011
      %1051 = vst.msk [vmem:[%s953 + $0x78] sm:$0xf] %vm954, %v1011
      %1052 = vst.msk [vmem:[%s953 + $0x80] sm:$0xf0] %vm971, %v1012
      %1053 = vst.msk [vmem:[%s953 + $0x88] sm:$0xf] %vm954, %v1012
      %1054 = vst.msk [vmem:[%s953 + $0x90] sm:$0xf0] %vm971, %v1013
      %1055 = vst.msk [vmem:[%s953 + $0x98] sm:$0xf] %vm954, %v1013
      %1056 = vst.msk [vmem:[%s953 + $0xa0] sm:$0xf0] %vm971, %v1014
      %1057 = vst.msk [vmem:[%s953 + $0xa8] sm:$0xf] %vm954, %v1014
      %1058 = vst.msk [vmem:[%s953 + $0xb0] sm:$0xf0] %vm971, %v1015
      %1059 = vst.msk [vmem:[%s953 + $0xb8] sm:$0xf] %vm954, %v1015
      %1060 = vst.msk [vmem:[%s953 + $0xc0] sm:$0xf0] %vm971, %v1016
      %1061 = vst.msk [vmem:[%s953 + $0xc8] sm:$0xf] %vm954, %v1016
      %1062 = vst.msk [vmem:[%s953 + $0xd0] sm:$0xf0] %vm971, %v1017
      %1063 = vst.msk [vmem:[%s953 + $0xd8] sm:$0xf] %vm954, %v1017
      %1064 = vst.msk [vmem:[%s953 + $0xe0] sm:$0xf0] %vm971, %v1018
      %1065 = vst.msk [vmem:[%s953 + $0xe8] sm:$0xf] %vm954, %v1018
      %1066 = vst.msk [vmem:[%s953 + $0xf0] sm:$0xf0] %vm971, %v1019
      %1067 = vst.msk [vmem:[%s953 + $0xf8] sm:$0xf] %vm954, %v1019
      %v1068 = vld [vmem:[#allocation2] sm:$0xff]
      %v1069 = vld [vmem:[#allocation2 + $0x8] sm:$0xff]
      %v1070 = vld [vmem:[#allocation2 + $0x10] sm:$0xff]
      %v1071 = vld [vmem:[#allocation2 + $0x18] sm:$0xff]
      %v1072 = vld [vmem:[#allocation2 + $0x20] sm:$0xff]
      %v1073 = vld [vmem:[#allocation2 + $0x28] sm:$0xff]
      %v1074 = vld [vmem:[#allocation2 + $0x30] sm:$0xff]
      %v1075 = vld [vmem:[#allocation2 + $0x38] sm:$0xff]
      %v1076 = vld [vmem:[#allocation2 + $0x40] sm:$0xff]
      %v1077 = vld [vmem:[#allocation2 + $0x48] sm:$0xff]
      %v1078 = vld [vmem:[#allocation2 + $0x50] sm:$0xff]
      %v1079 = vld [vmem:[#allocation2 + $0x58] sm:$0xff]
      %v1080 = vld [vmem:[#allocation2 + $0x60] sm:$0xff]
      %v1081 = vld [vmem:[#allocation2 + $0x68] sm:$0xff]
      %v1082 = vld [vmem:[#allocation2 + $0x70] sm:$0xff]
      %v1083 = vld [vmem:[#allocation2 + $0x78] sm:$0xff]
      %v1084 = vld [vmem:[#allocation2 + $0x80] sm:$0xff]
      %v1085 = vld [vmem:[#allocation2 + $0x88] sm:$0xff]
      %v1086 = vld [vmem:[#allocation2 + $0x90] sm:$0xff]
      %v1087 = vld [vmem:[#allocation2 + $0x98] sm:$0xff]
      %v1088 = vld [vmem:[#allocation2 + $0xa0] sm:$0xff]
      %v1089 = vld [vmem:[#allocation2 + $0xa8] sm:$0xff]
      %v1090 = vld [vmem:[#allocation2 + $0xb0] sm:$0xff]
      %v1091 = vld [vmem:[#allocation2 + $0xb8] sm:$0xff]
      %v1092 = vld [vmem:[#allocation2 + $0xc0] sm:$0xff]
      %v1093 = vld [vmem:[#allocation2 + $0xc8] sm:$0xff]
      %v1094 = vld [vmem:[#allocation2 + $0xd0] sm:$0xff]
      %v1095 = vld [vmem:[#allocation2 + $0xd8] sm:$0xff]
      %v1096 = vld [vmem:[#allocation2 + $0xe0] sm:$0xff]
      %v1097 = vld [vmem:[#allocation2 + $0xe8] sm:$0xff]
      %v1098 = vld [vmem:[#allocation2 + $0xf0] sm:$0xff]
      %v1099 = vld [vmem:[#allocation2 + $0xf8] sm:$0xff]
      %v1100 = vld [vmem:[#allocation2 + $0x100] sm:$0xff]
      %v1101 = vld [vmem:[#allocation2 + $0x108] sm:$0xff]
      %v1102 = vld [vmem:[#allocation2 + $0x110] sm:$0xff]
      %v1103 = vld [vmem:[#allocation2 + $0x118] sm:$0xff]
      %v1104 = vld [vmem:[#allocation2 + $0x120] sm:$0xff]
      %v1105 = vld [vmem:[#allocation2 + $0x128] sm:$0xff]
      %v1106 = vld [vmem:[#allocation2 + $0x130] sm:$0xff]
      %v1107 = vld [vmem:[#allocation2 + $0x138] sm:$0xff]
      %v1108 = vld [vmem:[#allocation2 + $0x140] sm:$0xff]
      %v1109 = vld [vmem:[#allocation2 + $0x148] sm:$0xff]
      %v1110 = vld [vmem:[#allocation2 + $0x150] sm:$0xff]
      %v1111 = vld [vmem:[#allocation2 + $0x158] sm:$0xff]
      %v1112 = vld [vmem:[#allocation2 + $0x160] sm:$0xff]
      %v1113 = vld [vmem:[#allocation2 + $0x168] sm:$0xff]
      %v1114 = vld [vmem:[#allocation2 + $0x170] sm:$0xff]
      %v1115 = vld [vmem:[#allocation2 + $0x178] sm:$0xff]
      %s1116 = scalar_lea.vmem [#allocation2], 16
      %v1117 = vld [vmem:[%s1116] sm:$0xff]
      %v1118 = vld [vmem:[%s1116 + $0x8] sm:$0xff]
      %v1119 = vld [vmem:[%s1116 + $0x10] sm:$0xff]
      %v1120 = vld [vmem:[%s1116 + $0x18] sm:$0xff]
      %v1121 = vld [vmem:[%s1116 + $0x20] sm:$0xff]
      %v1122 = vld [vmem:[%s1116 + $0x28] sm:$0xff]
      %v1123 = vld [vmem:[%s1116 + $0x30] sm:$0xff]
      %v1124 = vld [vmem:[%s1116 + $0x38] sm:$0xff]
      %v1125 = vld [vmem:[%s1116 + $0x40] sm:$0xff]
      %v1126 = vld [vmem:[%s1116 + $0x48] sm:$0xff]
      %v1127 = vld [vmem:[%s1116 + $0x50] sm:$0xff]
      %v1128 = vld [vmem:[%s1116 + $0x58] sm:$0xff]
      %v1129 = vld [vmem:[%s1116 + $0x60] sm:$0xff]
      %v1130 = vld [vmem:[%s1116 + $0x68] sm:$0xff]
      %v1131 = vld [vmem:[%s1116 + $0x70] sm:$0xff]
      %v1132 = vld [vmem:[%s1116 + $0x78] sm:$0xff]
      %v1133 = vld [vmem:[%s1116 + $0x80] sm:$0xff]
      %v1134 = vld [vmem:[%s1116 + $0x88] sm:$0xff]
      %v1135 = vld [vmem:[%s1116 + $0x90] sm:$0xff]
      %v1136 = vld [vmem:[%s1116 + $0x98] sm:$0xff]
      %v1137 = vld [vmem:[%s1116 + $0xa0] sm:$0xff]
      %v1138 = vld [vmem:[%s1116 + $0xa8] sm:$0xff]
      %v1139 = vld [vmem:[%s1116 + $0xb0] sm:$0xff]
      %v1140 = vld [vmem:[%s1116 + $0xb8] sm:$0xff]
      %v1141 = vld [vmem:[%s1116 + $0xc0] sm:$0xff]
      %v1142 = vld [vmem:[%s1116 + $0xc8] sm:$0xff]
      %v1143 = vld [vmem:[%s1116 + $0xd0] sm:$0xff]
      %v1144 = vld [vmem:[%s1116 + $0xd8] sm:$0xff]
      %v1145 = vld [vmem:[%s1116 + $0xe0] sm:$0xff]
      %v1146 = vld [vmem:[%s1116 + $0xe8] sm:$0xff]
      %v1147 = vld [vmem:[%s1116 + $0xf0] sm:$0xff]
      %v1148 = vld [vmem:[%s1116 + $0xf8] sm:$0xff]
      %v1149 = vld [vmem:[%s1116 + $0x100] sm:$0xff]
      %v1150 = vld [vmem:[%s1116 + $0x108] sm:$0xff]
      %v1151 = vld [vmem:[%s1116 + $0x110] sm:$0xff]
      %v1152 = vld [vmem:[%s1116 + $0x118] sm:$0xff]
      %v1153 = vld [vmem:[%s1116 + $0x120] sm:$0xff]
      %v1154 = vld [vmem:[%s1116 + $0x128] sm:$0xff]
      %v1155 = vld [vmem:[%s1116 + $0x130] sm:$0xff]
      %v1156 = vld [vmem:[%s1116 + $0x138] sm:$0xff]
      %v1157 = vld [vmem:[%s1116 + $0x140] sm:$0xff]
      %v1158 = vld [vmem:[%s1116 + $0x148] sm:$0xff]
      %v1159 = vld [vmem:[%s1116 + $0x150] sm:$0xff]
      %v1160 = vld [vmem:[%s1116 + $0x158] sm:$0xff]
      %v1161 = vld [vmem:[%s1116 + $0x160] sm:$0xff]
      %v1162 = vld [vmem:[%s1116 + $0x168] sm:$0xff]
      %v1163 = vld [vmem:[%s1116 + $0x170] sm:$0xff]
      %v1164 = vld [vmem:[%s1116 + $0x178] sm:$0xff]
      %v1165 = vmax.bf16 %v1068, %v1117
      %v1166 = vmax.bf16 %v1069, %v1118
      %v1167 = vmax.bf16 %v1070, %v1119
      %v1168 = vmax.bf16 %v1071, %v1120
      %v1169 = vmax.bf16 %v1072, %v1121
      %v1170 = vmax.bf16 %v1073, %v1122
      %v1171 = vmax.bf16 %v1074, %v1123
      %v1172 = vmax.bf16 %v1075, %v1124
      %v1173 = vmax.bf16 %v1076, %v1125
      %v1174 = vmax.bf16 %v1077, %v1126
      %v1175 = vmax.bf16 %v1078, %v1127
      %v1176 = vmax.bf16 %v1079, %v1128
      %v1177 = vmax.bf16 %v1080, %v1129
      %v1178 = vmax.bf16 %v1081, %v1130
      %v1179 = vmax.bf16 %v1082, %v1131
      %v1180 = vmax.bf16 %v1083, %v1132
      %v1181 = vmax.bf16 %v1084, %v1133
      %v1182 = vmax.bf16 %v1085, %v1134
      %v1183 = vmax.bf16 %v1086, %v1135
      %v1184 = vmax.bf16 %v1087, %v1136
      %v1185 = vmax.bf16 %v1088, %v1137
      %v1186 = vmax.bf16 %v1089, %v1138
      %v1187 = vmax.bf16 %v1090, %v1139
      %v1188 = vmax.bf16 %v1091, %v1140
      %v1189 = vmax.bf16 %v1092, %v1141
      %v1190 = vmax.bf16 %v1093, %v1142
      %v1191 = vmax.bf16 %v1094, %v1143
      %v1192 = vmax.bf16 %v1095, %v1144
      %v1193 = vmax.bf16 %v1096, %v1145
      %v1194 = vmax.bf16 %v1097, %v1146
      %v1195 = vmax.bf16 %v1098, %v1147
      %v1196 = vmax.bf16 %v1099, %v1148
      %v1197 = vmax.bf16 %v1100, %v1149
      %v1198 = vmax.bf16 %v1101, %v1150
      %v1199 = vmax.bf16 %v1102, %v1151
      %v1200 = vmax.bf16 %v1103, %v1152
      %v1201 = vmax.bf16 %v1104, %v1153
      %v1202 = vmax.bf16 %v1105, %v1154
      %v1203 = vmax.bf16 %v1106, %v1155
      %v1204 = vmax.bf16 %v1107, %v1156
      %v1205 = vmax.bf16 %v1108, %v1157
      %v1206 = vmax.bf16 %v1109, %v1158
      %v1207 = vmax.bf16 %v1110, %v1159
      %v1208 = vmax.bf16 %v1111, %v1160
      %v1209 = vmax.bf16 %v1112, %v1161
      %v1210 = vmax.bf16 %v1113, %v1162
      %v1211 = vmax.bf16 %v1114, %v1163
      %v1212 = vmax.bf16 %v1115, %v1164
      %s1213 = scalar_lea.vmem [#allocation2], 32
      %v1214 = vld [vmem:[%s1213] sm:$0xff]
      %v1215 = vld [vmem:[%s1213 + $0x8] sm:$0xff]
      %v1216 = vld [vmem:[%s1213 + $0x10] sm:$0xff]
      %v1217 = vld [vmem:[%s1213 + $0x18] sm:$0xff]
      %v1218 = vld [vmem:[%s1213 + $0x20] sm:$0xff]
      %v1219 = vld [vmem:[%s1213 + $0x28] sm:$0xff]
      %v1220 = vld [vmem:[%s1213 + $0x30] sm:$0xff]
      %v1221 = vld [vmem:[%s1213 + $0x38] sm:$0xff]
      %v1222 = vld [vmem:[%s1213 + $0x40] sm:$0xff]
      %v1223 = vld [vmem:[%s1213 + $0x48] sm:$0xff]
      %v1224 = vld [vmem:[%s1213 + $0x50] sm:$0xff]
      %v1225 = vld [vmem:[%s1213 + $0x58] sm:$0xff]
      %v1226 = vld [vmem:[%s1213 + $0x60] sm:$0xff]
      %v1227 = vld [vmem:[%s1213 + $0x68] sm:$0xff]
      %v1228 = vld [vmem:[%s1213 + $0x70] sm:$0xff]
      %v1229 = vld [vmem:[%s1213 + $0x78] sm:$0xff]
      %v1230 = vld [vmem:[%s1213 + $0x80] sm:$0xff]
      %v1231 = vld [vmem:[%s1213 + $0x88] sm:$0xff]
      %v1232 = vld [vmem:[%s1213 + $0x90] sm:$0xff]
      %v1233 = vld [vmem:[%s1213 + $0x98] sm:$0xff]
      %v1234 = vld [vmem:[%s1213 + $0xa0] sm:$0xff]
      %v1235 = vld [vmem:[%s1213 + $0xa8] sm:$0xff]
      %v1236 = vld [vmem:[%s1213 + $0xb0] sm:$0xff]
      %v1237 = vld [vmem:[%s1213 + $0xb8] sm:$0xff]
      %v1238 = vld [vmem:[%s1213 + $0xc0] sm:$0xff]
      %v1239 = vld [vmem:[%s1213 + $0xc8] sm:$0xff]
      %v1240 = vld [vmem:[%s1213 + $0xd0] sm:$0xff]
      %v1241 = vld [vmem:[%s1213 + $0xd8] sm:$0xff]
      %v1242 = vld [vmem:[%s1213 + $0xe0] sm:$0xff]
      %v1243 = vld [vmem:[%s1213 + $0xe8] sm:$0xff]
      %v1244 = vld [vmem:[%s1213 + $0xf0] sm:$0xff]
      %v1245 = vld [vmem:[%s1213 + $0xf8] sm:$0xff]
      %v1246 = vld [vmem:[%s1213 + $0x100] sm:$0xff]
      %v1247 = vld [vmem:[%s1213 + $0x108] sm:$0xff]
      %v1248 = vld [vmem:[%s1213 + $0x110] sm:$0xff]
      %v1249 = vld [vmem:[%s1213 + $0x118] sm:$0xff]
      %v1250 = vld [vmem:[%s1213 + $0x120] sm:$0xff]
      %v1251 = vld [vmem:[%s1213 + $0x128] sm:$0xff]
      %v1252 = vld [vmem:[%s1213 + $0x130] sm:$0xff]
      %v1253 = vld [vmem:[%s1213 + $0x138] sm:$0xff]
      %v1254 = vld [vmem:[%s1213 + $0x140] sm:$0xff]
      %v1255 = vld [vmem:[%s1213 + $0x148] sm:$0xff]
      %v1256 = vld [vmem:[%s1213 + $0x150] sm:$0xff]
      %v1257 = vld [vmem:[%s1213 + $0x158] sm:$0xff]
      %v1258 = vld [vmem:[%s1213 + $0x160] sm:$0xff]
      %v1259 = vld [vmem:[%s1213 + $0x168] sm:$0xff]
      %v1260 = vld [vmem:[%s1213 + $0x170] sm:$0xff]
      %v1261 = vld [vmem:[%s1213 + $0x178] sm:$0xff]
      %v1262 = vmax.bf16 %v1165, %v1214
      %v1263 = vmax.bf16 %v1166, %v1215
      %v1264 = vmax.bf16 %v1167, %v1216
      %v1265 = vmax.bf16 %v1168, %v1217
      %v1266 = vmax.bf16 %v1169, %v1218
      %v1267 = vmax.bf16 %v1170, %v1219
      %v1268 = vmax.bf16 %v1171, %v1220
      %v1269 = vmax.bf16 %v1172, %v1221
      %v1270 = vmax.bf16 %v1173, %v1222
      %v1271 = vmax.bf16 %v1174, %v1223
      %v1272 = vmax.bf16 %v1175, %v1224
      %v1273 = vmax.bf16 %v1176, %v1225
      %v1274 = vmax.bf16 %v1177, %v1226
      %v1275 = vmax.bf16 %v1178, %v1227
      %v1276 = vmax.bf16 %v1179, %v1228
      %v1277 = vmax.bf16 %v1180, %v1229
      %v1278 = vmax.bf16 %v1181, %v1230
      %v1279 = vmax.bf16 %v1182, %v1231
      %v1280 = vmax.bf16 %v1183, %v1232
      %v1281 = vmax.bf16 %v1184, %v1233
      %v1282 = vmax.bf16 %v1185, %v1234
      %v1283 = vmax.bf16 %v1186, %v1235
      %v1284 = vmax.bf16 %v1187, %v1236
      %v1285 = vmax.bf16 %v1188, %v1237
      %v1286 = vmax.bf16 %v1189, %v1238
      %v1287 = vmax.bf16 %v1190, %v1239
      %v1288 = vmax.bf16 %v1191, %v1240
      %v1289 = vmax.bf16 %v1192, %v1241
      %v1290 = vmax.bf16 %v1193, %v1242
      %v1291 = vmax.bf16 %v1194, %v1243
      %v1292 = vmax.bf16 %v1195, %v1244
      %v1293 = vmax.bf16 %v1196, %v1245
      %v1294 = vmax.bf16 %v1197, %v1246
      %v1295 = vmax.bf16 %v1198, %v1247
      %v1296 = vmax.bf16 %v1199, %v1248
      %v1297 = vmax.bf16 %v1200, %v1249
      %v1298 = vmax.bf16 %v1201, %v1250
      %v1299 = vmax.bf16 %v1202, %v1251
      %v1300 = vmax.bf16 %v1203, %v1252
      %v1301 = vmax.bf16 %v1204, %v1253
      %v1302 = vmax.bf16 %v1205, %v1254
      %v1303 = vmax.bf16 %v1206, %v1255
      %v1304 = vmax.bf16 %v1207, %v1256
      %v1305 = vmax.bf16 %v1208, %v1257
      %v1306 = vmax.bf16 %v1209, %v1258
      %v1307 = vmax.bf16 %v1210, %v1259
      %v1308 = vmax.bf16 %v1211, %v1260
      %v1309 = vmax.bf16 %v1212, %v1261
      %s1310 = scalar_lea.vmem [#allocation2], 48
      %v1311 = vld [vmem:[%s1310] sm:$0xff]
      %v1312 = vld [vmem:[%s1310 + $0x8] sm:$0xff]
      %v1313 = vld [vmem:[%s1310 + $0x10] sm:$0xff]
      %v1314 = vld [vmem:[%s1310 + $0x18] sm:$0xff]
      %v1315 = vld [vmem:[%s1310 + $0x20] sm:$0xff]
      %v1316 = vld [vmem:[%s1310 + $0x28] sm:$0xff]
      %v1317 = vld [vmem:[%s1310 + $0x30] sm:$0xff]
      %v1318 = vld [vmem:[%s1310 + $0x38] sm:$0xff]
      %v1319 = vld [vmem:[%s1310 + $0x40] sm:$0xff]
      %v1320 = vld [vmem:[%s1310 + $0x48] sm:$0xff]
      %v1321 = vld [vmem:[%s1310 + $0x50] sm:$0xff]
      %v1322 = vld [vmem:[%s1310 + $0x58] sm:$0xff]
      %v1323 = vld [vmem:[%s1310 + $0x60] sm:$0xff]
      %v1324 = vld [vmem:[%s1310 + $0x68] sm:$0xff]
      %v1325 = vld [vmem:[%s1310 + $0x70] sm:$0xff]
      %v1326 = vld [vmem:[%s1310 + $0x78] sm:$0xff]
      %v1327 = vld [vmem:[%s1310 + $0x80] sm:$0xff]
      %v1328 = vld [vmem:[%s1310 + $0x88] sm:$0xff]
      %v1329 = vld [vmem:[%s1310 + $0x90] sm:$0xff]
      %v1330 = vld [vmem:[%s1310 + $0x98] sm:$0xff]
      %v1331 = vld [vmem:[%s1310 + $0xa0] sm:$0xff]
      %v1332 = vld [vmem:[%s1310 + $0xa8] sm:$0xff]
      %v1333 = vld [vmem:[%s1310 + $0xb0] sm:$0xff]
      %v1334 = vld [vmem:[%s1310 + $0xb8] sm:$0xff]
      %v1335 = vld [vmem:[%s1310 + $0xc0] sm:$0xff]
      %v1336 = vld [vmem:[%s1310 + $0xc8] sm:$0xff]
      %v1337 = vld [vmem:[%s1310 + $0xd0] sm:$0xff]
      %v1338 = vld [vmem:[%s1310 + $0xd8] sm:$0xff]
      %v1339 = vld [vmem:[%s1310 + $0xe0] sm:$0xff]
      %v1340 = vld [vmem:[%s1310 + $0xe8] sm:$0xff]
      %v1341 = vld [vmem:[%s1310 + $0xf0] sm:$0xff]
      %v1342 = vld [vmem:[%s1310 + $0xf8] sm:$0xff]
      %v1343 = vld [vmem:[%s1310 + $0x100] sm:$0xff]
      %v1344 = vld [vmem:[%s1310 + $0x108] sm:$0xff]
      %v1345 = vld [vmem:[%s1310 + $0x110] sm:$0xff]
      %v1346 = vld [vmem:[%s1310 + $0x118] sm:$0xff]
      %v1347 = vld [vmem:[%s1310 + $0x120] sm:$0xff]
      %v1348 = vld [vmem:[%s1310 + $0x128] sm:$0xff]
      %v1349 = vld [vmem:[%s1310 + $0x130] sm:$0xff]
      %v1350 = vld [vmem:[%s1310 + $0x138] sm:$0xff]
      %v1351 = vld [vmem:[%s1310 + $0x140] sm:$0xff]
      %v1352 = vld [vmem:[%s1310 + $0x148] sm:$0xff]
      %v1353 = vld [vmem:[%s1310 + $0x150] sm:$0xff]
      %v1354 = vld [vmem:[%s1310 + $0x158] sm:$0xff]
      %v1355 = vld [vmem:[%s1310 + $0x160] sm:$0xff]
      %v1356 = vld [vmem:[%s1310 + $0x168] sm:$0xff]
      %v1357 = vld [vmem:[%s1310 + $0x170] sm:$0xff]
      %v1358 = vld [vmem:[%s1310 + $0x178] sm:$0xff]
      %v1359 = vmax.bf16 %v1262, %v1311
      %v1360 = vmax.bf16 %v1263, %v1312
      %v1361 = vmax.bf16 %v1264, %v1313
      %v1362 = vmax.bf16 %v1265, %v1314
      %v1363 = vmax.bf16 %v1266, %v1315
      %v1364 = vmax.bf16 %v1267, %v1316
      %v1365 = vmax.bf16 %v1268, %v1317
      %v1366 = vmax.bf16 %v1269, %v1318
      %v1367 = vmax.bf16 %v1270, %v1319
      %v1368 = vmax.bf16 %v1271, %v1320
      %v1369 = vmax.bf16 %v1272, %v1321
      %v1370 = vmax.bf16 %v1273, %v1322
      %v1371 = vmax.bf16 %v1274, %v1323
      %v1372 = vmax.bf16 %v1275, %v1324
      %v1373 = vmax.bf16 %v1276, %v1325
      %v1374 = vmax.bf16 %v1277, %v1326
      %v1375 = vmax.bf16 %v1278, %v1327
      %v1376 = vmax.bf16 %v1279, %v1328
      %v1377 = vmax.bf16 %v1280, %v1329
      %v1378 = vmax.bf16 %v1281, %v1330
      %v1379 = vmax.bf16 %v1282, %v1331
      %v1380 = vmax.bf16 %v1283, %v1332
      %v1381 = vmax.bf16 %v1284, %v1333
      %v1382 = vmax.bf16 %v1285, %v1334
      %v1383 = vmax.bf16 %v1286, %v1335
      %v1384 = vmax.bf16 %v1287, %v1336
      %v1385 = vmax.bf16 %v1288, %v1337
      %v1386 = vmax.bf16 %v1289, %v1338
      %v1387 = vmax.bf16 %v1290, %v1339
      %v1388 = vmax.bf16 %v1291, %v1340
      %v1389 = vmax.bf16 %v1292, %v1341
      %v1390 = vmax.bf16 %v1293, %v1342
      %v1391 = vmax.bf16 %v1294, %v1343
      %v1392 = vmax.bf16 %v1295, %v1344
      %v1393 = vmax.bf16 %v1296, %v1345
      %v1394 = vmax.bf16 %v1297, %v1346
      %v1395 = vmax.bf16 %v1298, %v1347
      %v1396 = vmax.bf16 %v1299, %v1348
      %v1397 = vmax.bf16 %v1300, %v1349
      %v1398 = vmax.bf16 %v1301, %v1350
      %v1399 = vmax.bf16 %v1302, %v1351
      %v1400 = vmax.bf16 %v1303, %v1352
      %v1401 = vmax.bf16 %v1304, %v1353
      %v1402 = vmax.bf16 %v1305, %v1354
      %v1403 = vmax.bf16 %v1306, %v1355
      %v1404 = vmax.bf16 %v1307, %v1356
      %v1405 = vmax.bf16 %v1308, %v1357
      %v1406 = vmax.bf16 %v1309, %v1358
      %s1407 = scalar_lea.vmem [#allocation2], 64
      %v1408 = vld [vmem:[%s1407] sm:$0xff]
      %v1409 = vld [vmem:[%s1407 + $0x8] sm:$0xff]
      %v1410 = vld [vmem:[%s1407 + $0x10] sm:$0xff]
      %v1411 = vld [vmem:[%s1407 + $0x18] sm:$0xff]
      %v1412 = vld [vmem:[%s1407 + $0x20] sm:$0xff]
      %v1413 = vld [vmem:[%s1407 + $0x28] sm:$0xff]
      %v1414 = vld [vmem:[%s1407 + $0x30] sm:$0xff]
      %v1415 = vld [vmem:[%s1407 + $0x38] sm:$0xff]
      %v1416 = vld [vmem:[%s1407 + $0x40] sm:$0xff]
      %v1417 = vld [vmem:[%s1407 + $0x48] sm:$0xff]
      %v1418 = vld [vmem:[%s1407 + $0x50] sm:$0xff]
      %v1419 = vld [vmem:[%s1407 + $0x58] sm:$0xff]
      %v1420 = vld [vmem:[%s1407 + $0x60] sm:$0xff]
      %v1421 = vld [vmem:[%s1407 + $0x68] sm:$0xff]
      %v1422 = vld [vmem:[%s1407 + $0x70] sm:$0xff]
      %v1423 = vld [vmem:[%s1407 + $0x78] sm:$0xff]
      %v1424 = vld [vmem:[%s1407 + $0x80] sm:$0xff]
      %v1425 = vld [vmem:[%s1407 + $0x88] sm:$0xff]
      %v1426 = vld [vmem:[%s1407 + $0x90] sm:$0xff]
      %v1427 = vld [vmem:[%s1407 + $0x98] sm:$0xff]
      %v1428 = vld [vmem:[%s1407 + $0xa0] sm:$0xff]
      %v1429 = vld [vmem:[%s1407 + $0xa8] sm:$0xff]
      %v1430 = vld [vmem:[%s1407 + $0xb0] sm:$0xff]
      %v1431 = vld [vmem:[%s1407 + $0xb8] sm:$0xff]
      %v1432 = vld [vmem:[%s1407 + $0xc0] sm:$0xff]
      %v1433 = vld [vmem:[%s1407 + $0xc8] sm:$0xff]
      %v1434 = vld [vmem:[%s1407 + $0xd0] sm:$0xff]
      %v1435 = vld [vmem:[%s1407 + $0xd8] sm:$0xff]
      %v1436 = vld [vmem:[%s1407 + $0xe0] sm:$0xff]
      %v1437 = vld [vmem:[%s1407 + $0xe8] sm:$0xff]
      %v1438 = vld [vmem:[%s1407 + $0xf0] sm:$0xff]
      %v1439 = vld [vmem:[%s1407 + $0xf8] sm:$0xff]
      %v1440 = vld [vmem:[%s1407 + $0x100] sm:$0xff]
      %v1441 = vld [vmem:[%s1407 + $0x108] sm:$0xff]
      %v1442 = vld [vmem:[%s1407 + $0x110] sm:$0xff]
      %v1443 = vld [vmem:[%s1407 + $0x118] sm:$0xff]
      %v1444 = vld [vmem:[%s1407 + $0x120] sm:$0xff]
      %v1445 = vld [vmem:[%s1407 + $0x128] sm:$0xff]
      %v1446 = vld [vmem:[%s1407 + $0x130] sm:$0xff]
      %v1447 = vld [vmem:[%s1407 + $0x138] sm:$0xff]
      %v1448 = vld [vmem:[%s1407 + $0x140] sm:$0xff]
      %v1449 = vld [vmem:[%s1407 + $0x148] sm:$0xff]
      %v1450 = vld [vmem:[%s1407 + $0x150] sm:$0xff]
      %v1451 = vld [vmem:[%s1407 + $0x158] sm:$0xff]
      %v1452 = vld [vmem:[%s1407 + $0x160] sm:$0xff]
      %v1453 = vld [vmem:[%s1407 + $0x168] sm:$0xff]
      %v1454 = vld [vmem:[%s1407 + $0x170] sm:$0xff]
      %v1455 = vld [vmem:[%s1407 + $0x178] sm:$0xff]
      %v1456 = vmax.bf16 %v1359, %v1408
      %v1457 = vmax.bf16 %v1360, %v1409
      %v1458 = vmax.bf16 %v1361, %v1410
      %v1459 = vmax.bf16 %v1362, %v1411
      %v1460 = vmax.bf16 %v1363, %v1412
      %v1461 = vmax.bf16 %v1364, %v1413
      %v1462 = vmax.bf16 %v1365, %v1414
      %v1463 = vmax.bf16 %v1366, %v1415
      %v1464 = vmax.bf16 %v1367, %v1416
      %v1465 = vmax.bf16 %v1368, %v1417
      %v1466 = vmax.bf16 %v1369, %v1418
      %v1467 = vmax.bf16 %v1370, %v1419
      %v1468 = vmax.bf16 %v1371, %v1420
      %v1469 = vmax.bf16 %v1372, %v1421
      %v1470 = vmax.bf16 %v1373, %v1422
      %v1471 = vmax.bf16 %v1374, %v1423
      %v1472 = vmax.bf16 %v1375, %v1424
      %v1473 = vmax.bf16 %v1376, %v1425
      %v1474 = vmax.bf16 %v1377, %v1426
      %v1475 = vmax.bf16 %v1378, %v1427
      %v1476 = vmax.bf16 %v1379, %v1428
      %v1477 = vmax.bf16 %v1380, %v1429
      %v1478 = vmax.bf16 %v1381, %v1430
      %v1479 = vmax.bf16 %v1382, %v1431
      %v1480 = vmax.bf16 %v1383, %v1432
      %v1481 = vmax.bf16 %v1384, %v1433
      %v1482 = vmax.bf16 %v1385, %v1434
      %v1483 = vmax.bf16 %v1386, %v1435
      %v1484 = vmax.bf16 %v1387, %v1436
      %v1485 = vmax.bf16 %v1388, %v1437
      %v1486 = vmax.bf16 %v1389, %v1438
      %v1487 = vmax.bf16 %v1390, %v1439
      %v1488 = vmax.bf16 %v1391, %v1440
      %v1489 = vmax.bf16 %v1392, %v1441
      %v1490 = vmax.bf16 %v1393, %v1442
      %v1491 = vmax.bf16 %v1394, %v1443
      %v1492 = vmax.bf16 %v1395, %v1444
      %v1493 = vmax.bf16 %v1396, %v1445
      %v1494 = vmax.bf16 %v1397, %v1446
      %v1495 = vmax.bf16 %v1398, %v1447
      %v1496 = vmax.bf16 %v1399, %v1448
      %v1497 = vmax.bf16 %v1400, %v1449
      %v1498 = vmax.bf16 %v1401, %v1450
      %v1499 = vmax.bf16 %v1402, %v1451
      %v1500 = vmax.bf16 %v1403, %v1452
      %v1501 = vmax.bf16 %v1404, %v1453
      %v1502 = vmax.bf16 %v1405, %v1454
      %v1503 = vmax.bf16 %v1406, %v1455
      %v1504 = vmax.bf16 %v1456, %v1464
      %v1505 = vmax.bf16 %v1457, %v1465
      %v1506 = vmax.bf16 %v1458, %v1466
      %v1507 = vmax.bf16 %v1459, %v1467
      %v1508 = vmax.bf16 %v1460, %v1468
      %v1509 = vmax.bf16 %v1461, %v1469
      %v1510 = vmax.bf16 %v1462, %v1470
      %v1511 = vmax.bf16 %v1463, %v1471
      %v1512 = vmax.bf16 %v1464, %v1472
      %v1513 = vmax.bf16 %v1465, %v1473
      %v1514 = vmax.bf16 %v1466, %v1474
      %v1515 = vmax.bf16 %v1467, %v1475
      %v1516 = vmax.bf16 %v1468, %v1476
      %v1517 = vmax.bf16 %v1469, %v1477
      %v1518 = vmax.bf16 %v1470, %v1478
      %v1519 = vmax.bf16 %v1471, %v1479
      %v1520 = vmax.bf16 %v1472, %v1480
      %v1521 = vmax.bf16 %v1473, %v1481
      %v1522 = vmax.bf16 %v1474, %v1482
      %v1523 = vmax.bf16 %v1475, %v1483
      %v1524 = vmax.bf16 %v1476, %v1484
      %v1525 = vmax.bf16 %v1477, %v1485
      %v1526 = vmax.bf16 %v1478, %v1486
      %v1527 = vmax.bf16 %v1479, %v1487
      %v1528 = vmax.bf16 %v1480, %v1488
      %v1529 = vmax.bf16 %v1481, %v1489
      %v1530 = vmax.bf16 %v1482, %v1490
      %v1531 = vmax.bf16 %v1483, %v1491
      %v1532 = vmax.bf16 %v1484, %v1492
      %v1533 = vmax.bf16 %v1485, %v1493
      %v1534 = vmax.bf16 %v1486, %v1494
      %v1535 = vmax.bf16 %v1487, %v1495
      %v1536 = vmax.bf16 %v1488, %v1496
      %v1537 = vmax.bf16 %v1489, %v1497
      %v1538 = vmax.bf16 %v1490, %v1498
      %v1539 = vmax.bf16 %v1491, %v1499
      %v1540 = vmax.bf16 %v1504, %v1472
      %v1541 = vmax.bf16 %v1505, %v1473
      %v1542 = vmax.bf16 %v1506, %v1474
      %v1543 = vmax.bf16 %v1507, %v1475
      %v1544 = vmax.bf16 %v1508, %v1476
      %v1545 = vmax.bf16 %v1509, %v1477
      %v1546 = vmax.bf16 %v1510, %v1478
      %v1547 = vmax.bf16 %v1511, %v1479
      %v1548 = vmax.bf16 %v1512, %v1480
      %v1549 = vmax.bf16 %v1513, %v1481
      %v1550 = vmax.bf16 %v1514, %v1482
      %v1551 = vmax.bf16 %v1515, %v1483
      %v1552 = vmax.bf16 %v1516, %v1484
      %v1553 = vmax.bf16 %v1517, %v1485
      %v1554 = vmax.bf16 %v1518, %v1486
      %v1555 = vmax.bf16 %v1519, %v1487
      %v1556 = vmax.bf16 %v1520, %v1488
      %v1557 = vmax.bf16 %v1521, %v1489
      %v1558 = vmax.bf16 %v1522, %v1490
      %v1559 = vmax.bf16 %v1523, %v1491
      %v1560 = vmax.bf16 %v1524, %v1492
      %v1561 = vmax.bf16 %v1525, %v1493
      %v1562 = vmax.bf16 %v1526, %v1494
      %v1563 = vmax.bf16 %v1527, %v1495
      %v1564 = vmax.bf16 %v1528, %v1496
      %v1565 = vmax.bf16 %v1529, %v1497
      %v1566 = vmax.bf16 %v1530, %v1498
      %v1567 = vmax.bf16 %v1531, %v1499
      %v1568 = vmax.bf16 %v1532, %v1500
      %v1569 = vmax.bf16 %v1533, %v1501
      %v1570 = vmax.bf16 %v1534, %v1502
      %v1571 = vmax.bf16 %v1535, %v1503
      %vm1572 = vsmask.f32 7424
      %v1574 = vshrl.u32 %v1464, 16
      %v1576 = vshll.u32 %v1464, 16
      %v1578 = vrot.slane %v1576, 1
      %v1579 = vor.u32 %v1574, %v1578
      %v1581 = vshll.u32 %v1465, 16
      %v1583 = vrot.slane %v1581, 1
      %v1584 = vsel %vm1572, %v1579, %v1583
      %v1585 = vshrl.u32 %v1465, 16
      %v1587 = vor.u32 %v1585, %v1583
      %v1589 = vshrl.u32 %v1466, 16
      %v1591 = vshll.u32 %v1466, 16
      %v1593 = vrot.slane %v1591, 1
      %v1594 = vor.u32 %v1589, %v1593
      %v1596 = vshll.u32 %v1467, 16
      %v1598 = vrot.slane %v1596, 1
      %v1599 = vsel %vm1572, %v1594, %v1598
      %v1600 = vshrl.u32 %v1467, 16
      %v1602 = vor.u32 %v1600, %v1598
      %v1604 = vshrl.u32 %v1468, 16
      %v1606 = vshll.u32 %v1468, 16
      %v1608 = vrot.slane %v1606, 1
      %v1609 = vor.u32 %v1604, %v1608
      %v1611 = vshll.u32 %v1469, 16
      %v1613 = vrot.slane %v1611, 1
      %v1614 = vsel %vm1572, %v1609, %v1613
      %v1615 = vshrl.u32 %v1469, 16
      %v1617 = vor.u32 %v1615, %v1613
      %v1619 = vshrl.u32 %v1470, 16
      %v1621 = vshll.u32 %v1470, 16
      %v1623 = vrot.slane %v1621, 1
      %v1624 = vor.u32 %v1619, %v1623
      %v1626 = vshll.u32 %v1471, 16
      %v1628 = vrot.slane %v1626, 1
      %v1629 = vsel %vm1572, %v1624, %v1628
      %v1630 = vshrl.u32 %v1471, 16
      %v1632 = vor.u32 %v1630, %v1628
      %v1634 = vshrl.u32 %v1472, 16
      %v1636 = vshll.u32 %v1472, 16
      %v1638 = vrot.slane %v1636, 1
      %v1639 = vor.u32 %v1634, %v1638
      %v1641 = vshll.u32 %v1473, 16
      %v1643 = vrot.slane %v1641, 1
      %v1644 = vsel %vm1572, %v1639, %v1643
      %v1645 = vshrl.u32 %v1473, 16
      %v1647 = vor.u32 %v1645, %v1643
      %v1649 = vshrl.u32 %v1474, 16
      %v1651 = vshll.u32 %v1474, 16
      %v1653 = vrot.slane %v1651, 1
      %v1654 = vor.u32 %v1649, %v1653
      %v1656 = vshll.u32 %v1475, 16
      %v1658 = vrot.slane %v1656, 1
      %v1659 = vsel %vm1572, %v1654, %v1658
      %v1660 = vshrl.u32 %v1475, 16
      %v1662 = vor.u32 %v1660, %v1658
      %v1664 = vshrl.u32 %v1476, 16
      %v1666 = vshll.u32 %v1476, 16
      %v1668 = vrot.slane %v1666, 1
      %v1669 = vor.u32 %v1664, %v1668
      %v1671 = vshll.u32 %v1477, 16
      %v1673 = vrot.slane %v1671, 1
      %v1674 = vsel %vm1572, %v1669, %v1673
      %v1675 = vshrl.u32 %v1477, 16
      %v1677 = vor.u32 %v1675, %v1673
      %v1679 = vshrl.u32 %v1478, 16
      %v1681 = vshll.u32 %v1478, 16
      %v1683 = vrot.slane %v1681, 1
      %v1684 = vor.u32 %v1679, %v1683
      %v1686 = vshll.u32 %v1479, 16
      %v1688 = vrot.slane %v1686, 1
      %v1689 = vsel %vm1572, %v1684, %v1688
      %v1690 = vshrl.u32 %v1479, 16
      %v1692 = vor.u32 %v1690, %v1688
      %v1694 = vshrl.u32 %v1480, 16
      %v1696 = vshll.u32 %v1480, 16
      %v1698 = vrot.slane %v1696, 1
      %v1699 = vor.u32 %v1694, %v1698
      %v1701 = vshll.u32 %v1481, 16
      %v1703 = vrot.slane %v1701, 1
      %v1704 = vsel %vm1572, %v1699, %v1703
      %v1705 = vshrl.u32 %v1481, 16
      %v1707 = vor.u32 %v1705, %v1703
      %v1709 = vshrl.u32 %v1482, 16
      %v1711 = vshll.u32 %v1482, 16
      %v1713 = vrot.slane %v1711, 1
      %v1714 = vor.u32 %v1709, %v1713
      %v1716 = vshll.u32 %v1483, 16
      %v1718 = vrot.slane %v1716, 1
      %v1719 = vsel %vm1572, %v1714, %v1718
      %v1720 = vshrl.u32 %v1483, 16
      %v1722 = vor.u32 %v1720, %v1718
      %v1724 = vshrl.u32 %v1484, 16
      %v1726 = vshll.u32 %v1484, 16
      %v1728 = vrot.slane %v1726, 1
      %v1729 = vor.u32 %v1724, %v1728
      %v1731 = vshll.u32 %v1485, 16
      %v1733 = vrot.slane %v1731, 1
      %v1734 = vsel %vm1572, %v1729, %v1733
      %v1735 = vshrl.u32 %v1485, 16
      %v1737 = vor.u32 %v1735, %v1733
      %v1739 = vshrl.u32 %v1486, 16
      %v1741 = vshll.u32 %v1486, 16
      %v1743 = vrot.slane %v1741, 1
      %v1744 = vor.u32 %v1739, %v1743
      %v1746 = vshll.u32 %v1487, 16
      %v1748 = vrot.slane %v1746, 1
      %v1749 = vsel %vm1572, %v1744, %v1748
      %v1750 = vshrl.u32 %v1487, 16
      %v1752 = vor.u32 %v1750, %v1748
      %v1754 = vshrl.u32 %v1488, 16
      %v1756 = vshll.u32 %v1488, 16
      %v1758 = vrot.slane %v1756, 1
      %v1759 = vor.u32 %v1754, %v1758
      %v1761 = vshll.u32 %v1489, 16
      %v1763 = vrot.slane %v1761, 1
      %v1764 = vsel %vm1572, %v1759, %v1763
      %v1765 = vshrl.u32 %v1489, 16
      %v1767 = vor.u32 %v1765, %v1763
      %v1769 = vshrl.u32 %v1490, 16
      %v1771 = vshll.u32 %v1490, 16
      %v1773 = vrot.slane %v1771, 1
      %v1774 = vor.u32 %v1769, %v1773
      %v1776 = vshll.u32 %v1491, 16
      %v1778 = vrot.slane %v1776, 1
      %v1779 = vsel %vm1572, %v1774, %v1778
      %v1780 = vshrl.u32 %v1491, 16
      %v1782 = vor.u32 %v1780, %v1778
      %v1784 = vshrl.u32 %v1492, 16
      %v1786 = vshll.u32 %v1492, 16
      %v1788 = vrot.slane %v1786, 1
      %v1789 = vor.u32 %v1784, %v1788
      %v1791 = vshll.u32 %v1493, 16
      %v1793 = vrot.slane %v1791, 1
      %v1794 = vsel %vm1572, %v1789, %v1793
      %v1795 = vshrl.u32 %v1493, 16
      %v1797 = vor.u32 %v1795, %v1793
      %v1799 = vshrl.u32 %v1494, 16
      %v1801 = vshll.u32 %v1494, 16
      %v1803 = vrot.slane %v1801, 1
      %v1804 = vor.u32 %v1799, %v1803
      %v1806 = vshll.u32 %v1495, 16
      %v1808 = vrot.slane %v1806, 1
      %v1809 = vsel %vm1572, %v1804, %v1808
      %v1810 = vshrl.u32 %v1495, 16
      %v1812 = vor.u32 %v1810, %v1808
      %v1845 = vmax.bf16 %v1464, %v1584
      %v1846 = vmax.bf16 %v1465, %v1587
      %v1847 = vmax.bf16 %v1466, %v1599
      %v1848 = vmax.bf16 %v1467, %v1602
      %v1849 = vmax.bf16 %v1468, %v1614
      %v1850 = vmax.bf16 %v1469, %v1617
      %v1851 = vmax.bf16 %v1470, %v1629
      %v1852 = vmax.bf16 %v1471, %v1632
      %v1853 = vmax.bf16 %v1472, %v1644
      %v1854 = vmax.bf16 %v1473, %v1647
      %v1855 = vmax.bf16 %v1474, %v1659
      %v1856 = vmax.bf16 %v1475, %v1662
      %v1857 = vmax.bf16 %v1476, %v1674
      %v1858 = vmax.bf16 %v1477, %v1677
      %v1859 = vmax.bf16 %v1478, %v1689
      %v1860 = vmax.bf16 %v1479, %v1692
      %v1861 = vmax.bf16 %v1480, %v1704
      %v1862 = vmax.bf16 %v1481, %v1707
      %v1863 = vmax.bf16 %v1482, %v1719
      %v1864 = vmax.bf16 %v1483, %v1722
      %v1865 = vmax.bf16 %v1484, %v1734
      %v1866 = vmax.bf16 %v1485, %v1737
      %v1867 = vmax.bf16 %v1486, %v1749
      %v1868 = vmax.bf16 %v1487, %v1752
      %v1869 = vmax.bf16 %v1488, %v1764
      %v1870 = vmax.bf16 %v1489, %v1767
      %v1871 = vmax.bf16 %v1490, %v1779
      %v1872 = vmax.bf16 %v1491, %v1782
      %v1873 = vmax.bf16 %v1492, %v1794
      %v1874 = vmax.bf16 %v1493, %v1797
      %v1875 = vmax.bf16 %v1494, %v1809
      %v1876 = vmax.bf16 %v1495, %v1812
      %vm1909 = vcmask 1046528
      %v1910 = vrot.slane %v1464, 1
      %v1911 = vrot.slane %v1465, 1
      %v1912 = vsel %vm1909, %v1910, %v1911
      %v1913 = vrot.slane %v1466, 1
      %v1914 = vrot.slane %v1467, 1
      %v1915 = vsel %vm1909, %v1913, %v1914
      %v1916 = vrot.slane %v1468, 1
      %v1917 = vrot.slane %v1469, 1
      %v1918 = vsel %vm1909, %v1916, %v1917
      %v1919 = vrot.slane %v1470, 1
      %v1920 = vrot.slane %v1471, 1
      %v1921 = vsel %vm1909, %v1919, %v1920
      %v1922 = vrot.slane %v1472, 1
      %v1923 = vrot.slane %v1473, 1
      %v1924 = vsel %vm1909, %v1922, %v1923
      %v1925 = vrot.slane %v1474, 1
      %v1926 = vrot.slane %v1475, 1
      %v1927 = vsel %vm1909, %v1925, %v1926
      %v1928 = vrot.slane %v1476, 1
      %v1929 = vrot.slane %v1477, 1
      %v1930 = vsel %vm1909, %v1928, %v1929
      %v1931 = vrot.slane %v1478, 1
      %v1932 = vrot.slane %v1479, 1
      %v1933 = vsel %vm1909, %v1931, %v1932
      %v1934 = vrot.slane %v1480, 1
      %v1935 = vrot.slane %v1481, 1
      %v1936 = vsel %vm1909, %v1934, %v1935
      %v1937 = vrot.slane %v1482, 1
      %v1938 = vrot.slane %v1483, 1
      %v1939 = vsel %vm1909, %v1937, %v1938
      %v1940 = vrot.slane %v1484, 1
      %v1941 = vrot.slane %v1485, 1
      %v1942 = vsel %vm1909, %v1940, %v1941
      %v1943 = vrot.slane %v1486, 1
      %v1944 = vrot.slane %v1487, 1
      %v1945 = vsel %vm1909, %v1943, %v1944
      %v1946 = vrot.slane %v1488, 1
      %v1947 = vrot.slane %v1489, 1
      %v1948 = vsel %vm1909, %v1946, %v1947
      %v1949 = vrot.slane %v1490, 1
      %v1950 = vrot.slane %v1491, 1
      %v1951 = vsel %vm1909, %v1949, %v1950
      %v1952 = vrot.slane %v1492, 1
      %v1953 = vrot.slane %v1493, 1
      %v1954 = vsel %vm1909, %v1952, %v1953
      %v1955 = vrot.slane %v1494, 1
      %v1956 = vrot.slane %v1495, 1
      %v1957 = vsel %vm1909, %v1955, %v1956
      %v1990 = vmax.bf16 %v1845, %v1912
      %v1991 = vmax.bf16 %v1846, %v1911
      %v1992 = vmax.bf16 %v1847, %v1915
      %v1993 = vmax.bf16 %v1848, %v1914
      %v1994 = vmax.bf16 %v1849, %v1918
      %v1995 = vmax.bf16 %v1850, %v1917
      %v1996 = vmax.bf16 %v1851, %v1921
      %v1997 = vmax.bf16 %v1852, %v1920
      %v1998 = vmax.bf16 %v1853, %v1924
      %v1999 = vmax.bf16 %v1854, %v1923
      %v2000 = vmax.bf16 %v1855, %v1927
      %v2001 = vmax.bf16 %v1856, %v1926
      %v2002 = vmax.bf16 %v1857, %v1930
      %v2003 = vmax.bf16 %v1858, %v1929
      %v2004 = vmax.bf16 %v1859, %v1933
      %v2005 = vmax.bf16 %v1860, %v1932
      %v2006 = vmax.bf16 %v1861, %v1936
      %v2007 = vmax.bf16 %v1862, %v1935
      %v2008 = vmax.bf16 %v1863, %v1939
      %v2009 = vmax.bf16 %v1864, %v1938
      %v2010 = vmax.bf16 %v1865, %v1942
      %v2011 = vmax.bf16 %v1866, %v1941
      %v2012 = vmax.bf16 %v1867, %v1945
      %v2013 = vmax.bf16 %v1868, %v1944
      %v2014 = vmax.bf16 %v1869, %v1948
      %v2015 = vmax.bf16 %v1870, %v1947
      %v2016 = vmax.bf16 %v1871, %v1951
      %v2017 = vmax.bf16 %v1872, %v1950
      %v2018 = vmax.bf16 %v1873, %v1954
      %v2019 = vmax.bf16 %v1874, %v1953
      %v2020 = vmax.bf16 %v1875, %v1957
      %v2021 = vmax.bf16 %v1876, %v1956
      %vm2022 = vsmask.f32 6400
      %v2023 = vrot.slane %v1574, 1
      %v2024 = vrot.slane %v1576, 2
      %v2025 = vor.u32 %v2023, %v2024
      %v2026 = vrot.slane %v1585, 1
      %v2027 = vrot.slane %v1581, 2
      %v2028 = vor.u32 %v2026, %v2027
      %v2029 = vsel %vm2022, %v2025, %v2028
      %v2030 = vrot.slane %v1589, 1
      %v2031 = vrot.slane %v1591, 2
      %v2032 = vor.u32 %v2030, %v2031
      %v2033 = vrot.slane %v1600, 1
      %v2034 = vrot.slane %v1596, 2
      %v2035 = vor.u32 %v2033, %v2034
      %v2036 = vsel %vm2022, %v2032, %v2035
      %v2037 = vrot.slane %v1604, 1
      %v2038 = vrot.slane %v1606, 2
      %v2039 = vor.u32 %v2037, %v2038
      %v2040 = vrot.slane %v1615, 1
      %v2041 = vrot.slane %v1611, 2
      %v2042 = vor.u32 %v2040, %v2041
      %v2043 = vsel %vm2022, %v2039, %v2042
      %v2044 = vrot.slane %v1619, 1
      %v2045 = vrot.slane %v1621, 2
      %v2046 = vor.u32 %v2044, %v2045
      %v2047 = vrot.slane %v1630, 1
      %v2048 = vrot.slane %v1626, 2
      %v2049 = vor.u32 %v2047, %v2048
      %v2050 = vsel %vm2022, %v2046, %v2049
      %v2051 = vrot.slane %v1634, 1
      %v2052 = vrot.slane %v1636, 2
      %v2053 = vor.u32 %v2051, %v2052
      %v2054 = vrot.slane %v1645, 1
      %v2055 = vrot.slane %v1641, 2
      %v2056 = vor.u32 %v2054, %v2055
      %v2057 = vsel %vm2022, %v2053, %v2056
      %v2058 = vrot.slane %v1649, 1
      %v2059 = vrot.slane %v1651, 2
      %v2060 = vor.u32 %v2058, %v2059
      %v2061 = vrot.slane %v1660, 1
      %v2062 = vrot.slane %v1656, 2
      %v2063 = vor.u32 %v2061, %v2062
      %v2064 = vsel %vm2022, %v2060, %v2063
      %v2065 = vrot.slane %v1664, 1
      %v2066 = vrot.slane %v1666, 2
      %v2067 = vor.u32 %v2065, %v2066
      %v2068 = vrot.slane %v1675, 1
      %v2069 = vrot.slane %v1671, 2
      %v2070 = vor.u32 %v2068, %v2069
      %v2071 = vsel %vm2022, %v2067, %v2070
      %v2072 = vrot.slane %v1679, 1
      %v2073 = vrot.slane %v1681, 2
      %v2074 = vor.u32 %v2072, %v2073
      %v2075 = vrot.slane %v1690, 1
      %v2076 = vrot.slane %v1686, 2
      %v2077 = vor.u32 %v2075, %v2076
      %v2078 = vsel %vm2022, %v2074, %v2077
      %v2079 = vrot.slane %v1694, 1
      %v2080 = vrot.slane %v1696, 2
      %v2081 = vor.u32 %v2079, %v2080
      %v2082 = vrot.slane %v1705, 1
      %v2083 = vrot.slane %v1701, 2
      %v2084 = vor.u32 %v2082, %v2083
      %v2085 = vsel %vm2022, %v2081, %v2084
      %v2086 = vrot.slane %v1709, 1
      %v2087 = vrot.slane %v1711, 2
      %v2088 = vor.u32 %v2086, %v2087
      %v2089 = vrot.slane %v1720, 1
      %v2090 = vrot.slane %v1716, 2
      %v2091 = vor.u32 %v2089, %v2090
      %v2092 = vsel %vm2022, %v2088, %v2091
      %v2093 = vrot.slane %v1724, 1
      %v2094 = vrot.slane %v1726, 2
      %v2095 = vor.u32 %v2093, %v2094
      %v2096 = vrot.slane %v1735, 1
      %v2097 = vrot.slane %v1731, 2
      %v2098 = vor.u32 %v2096, %v2097
      %v2099 = vsel %vm2022, %v2095, %v2098
      %v2100 = vrot.slane %v1739, 1
      %v2101 = vrot.slane %v1741, 2
      %v2102 = vor.u32 %v2100, %v2101
      %v2103 = vrot.slane %v1750, 1
      %v2104 = vrot.slane %v1746, 2
      %v2105 = vor.u32 %v2103, %v2104
      %v2106 = vsel %vm2022, %v2102, %v2105
      %v2107 = vrot.slane %v1754, 1
      %v2108 = vrot.slane %v1756, 2
      %v2109 = vor.u32 %v2107, %v2108
      %v2110 = vrot.slane %v1765, 1
      %v2111 = vrot.slane %v1761, 2
      %v2112 = vor.u32 %v2110, %v2111
      %v2113 = vsel %vm2022, %v2109, %v2112
      %v2114 = vrot.slane %v1769, 1
      %v2115 = vrot.slane %v1771, 2
      %v2116 = vor.u32 %v2114, %v2115
      %v2117 = vrot.slane %v1780, 1
      %v2118 = vrot.slane %v1776, 2
      %v2119 = vor.u32 %v2117, %v2118
      %v2120 = vsel %vm2022, %v2116, %v2119
      %v2121 = vrot.slane %v1784, 1
      %v2122 = vrot.slane %v1786, 2
      %v2123 = vor.u32 %v2121, %v2122
      %v2124 = vrot.slane %v1795, 1
      %v2125 = vrot.slane %v1791, 2
      %v2126 = vor.u32 %v2124, %v2125
      %v2127 = vsel %vm2022, %v2123, %v2126
      %v2128 = vrot.slane %v1799, 1
      %v2129 = vrot.slane %v1801, 2
      %v2130 = vor.u32 %v2128, %v2129
      %v2131 = vrot.slane %v1810, 1
      %v2132 = vrot.slane %v1806, 2
      %v2133 = vor.u32 %v2131, %v2132
      %v2134 = vsel %vm2022, %v2130, %v2133
      %v2167 = vmax.bf16 %v1990, %v2029
      %v2168 = vmax.bf16 %v1991, %v2028
      %v2169 = vmax.bf16 %v1992, %v2036
      %v2170 = vmax.bf16 %v1993, %v2035
      %v2171 = vmax.bf16 %v1994, %v2043
      %v2172 = vmax.bf16 %v1995, %v2042
      %v2173 = vmax.bf16 %v1996, %v2050
      %v2174 = vmax.bf16 %v1997, %v2049
      %v2175 = vmax.bf16 %v1998, %v2057
      %v2176 = vmax.bf16 %v1999, %v2056
      %v2177 = vmax.bf16 %v2000, %v2064
      %v2178 = vmax.bf16 %v2001, %v2063
      %v2179 = vmax.bf16 %v2002, %v2071
      %v2180 = vmax.bf16 %v2003, %v2070
      %v2181 = vmax.bf16 %v2004, %v2078
      %v2182 = vmax.bf16 %v2005, %v2077
      %v2183 = vmax.bf16 %v2006, %v2085
      %v2184 = vmax.bf16 %v2007, %v2084
      %v2185 = vmax.bf16 %v2008, %v2092
      %v2186 = vmax.bf16 %v2009, %v2091
      %v2187 = vmax.bf16 %v2010, %v2099
      %v2188 = vmax.bf16 %v2011, %v2098
      %v2189 = vmax.bf16 %v2012, %v2106
      %v2190 = vmax.bf16 %v2013, %v2105
      %v2191 = vmax.bf16 %v2014, %v2113
      %v2192 = vmax.bf16 %v2015, %v2112
      %v2193 = vmax.bf16 %v2016, %v2120
      %v2194 = vmax.bf16 %v2017, %v2119
      %v2195 = vmax.bf16 %v2018, %v2127
      %v2196 = vmax.bf16 %v2019, %v2126
      %v2197 = vmax.bf16 %v2020, %v2134
      %v2198 = vmax.bf16 %v2021, %v2133
      %vm2199 = vcmask 1045504
      %v2200 = vrot.slane %v1464, 2
      %v2201 = vrot.slane %v1465, 2
      %v2202 = vsel %vm2199, %v2200, %v2201
      %v2203 = vrot.slane %v1466, 2
      %v2204 = vrot.slane %v1467, 2
      %v2205 = vsel %vm2199, %v2203, %v2204
      %v2206 = vrot.slane %v1468, 2
      %v2207 = vrot.slane %v1469, 2
      %v2208 = vsel %vm2199, %v2206, %v2207
      %v2209 = vrot.slane %v1470, 2
      %v2210 = vrot.slane %v1471, 2
      %v2211 = vsel %vm2199, %v2209, %v2210
      %v2212 = vrot.slane %v1472, 2
      %v2213 = vrot.slane %v1473, 2
      %v2214 = vsel %vm2199, %v2212, %v2213
      %v2215 = vrot.slane %v1474, 2
      %v2216 = vrot.slane %v1475, 2
      %v2217 = vsel %vm2199, %v2215, %v2216
      %v2218 = vrot.slane %v1476, 2
      %v2219 = vrot.slane %v1477, 2
      %v2220 = vsel %vm2199, %v2218, %v2219
      %v2221 = vrot.slane %v1478, 2
      %v2222 = vrot.slane %v1479, 2
      %v2223 = vsel %vm2199, %v2221, %v2222
      %v2224 = vrot.slane %v1480, 2
      %v2225 = vrot.slane %v1481, 2
      %v2226 = vsel %vm2199, %v2224, %v2225
      %v2227 = vrot.slane %v1482, 2
      %v2228 = vrot.slane %v1483, 2
      %v2229 = vsel %vm2199, %v2227, %v2228
      %v2230 = vrot.slane %v1484, 2
      %v2231 = vrot.slane %v1485, 2
      %v2232 = vsel %vm2199, %v2230, %v2231
      %v2233 = vrot.slane %v1486, 2
      %v2234 = vrot.slane %v1487, 2
      %v2235 = vsel %vm2199, %v2233, %v2234
      %v2236 = vrot.slane %v1488, 2
      %v2237 = vrot.slane %v1489, 2
      %v2238 = vsel %vm2199, %v2236, %v2237
      %v2239 = vrot.slane %v1490, 2
      %v2240 = vrot.slane %v1491, 2
      %v2241 = vsel %vm2199, %v2239, %v2240
      %v2242 = vrot.slane %v1492, 2
      %v2243 = vrot.slane %v1493, 2
      %v2244 = vsel %vm2199, %v2242, %v2243
      %v2245 = vrot.slane %v1494, 2
      %v2246 = vrot.slane %v1495, 2
      %v2247 = vsel %vm2199, %v2245, %v2246
      %v2280 = vmax.bf16 %v2167, %v2202
      %v2281 = vmax.bf16 %v2168, %v2201
      %v2282 = vmax.bf16 %v2169, %v2205
      %v2283 = vmax.bf16 %v2170, %v2204
      %v2284 = vmax.bf16 %v2171, %v2208
      %v2285 = vmax.bf16 %v2172, %v2207
      %v2286 = vmax.bf16 %v2173, %v2211
      %v2287 = vmax.bf16 %v2174, %v2210
      %v2288 = vmax.bf16 %v2175, %v2214
      %v2289 = vmax.bf16 %v2176, %v2213
      %v2290 = vmax.bf16 %v2177, %v2217
      %v2291 = vmax.bf16 %v2178, %v2216
      %v2292 = vmax.bf16 %v2179, %v2220
      %v2293 = vmax.bf16 %v2180, %v2219
      %v2294 = vmax.bf16 %v2181, %v2223
      %v2295 = vmax.bf16 %v2182, %v2222
      %v2296 = vmax.bf16 %v2183, %v2226
      %v2297 = vmax.bf16 %v2184, %v2225
      %v2298 = vmax.bf16 %v2185, %v2229
      %v2299 = vmax.bf16 %v2186, %v2228
      %v2300 = vmax.bf16 %v2187, %v2232
      %v2301 = vmax.bf16 %v2188, %v2231
      %v2302 = vmax.bf16 %v2189, %v2235
      %v2303 = vmax.bf16 %v2190, %v2234
      %v2304 = vmax.bf16 %v2191, %v2238
      %v2305 = vmax.bf16 %v2192, %v2237
      %v2306 = vmax.bf16 %v2193, %v2241
      %v2307 = vmax.bf16 %v2194, %v2240
      %v2308 = vmax.bf16 %v2195, %v2244
      %v2309 = vmax.bf16 %v2196, %v2243
      %v2310 = vmax.bf16 %v2197, %v2247
      %v2311 = vmax.bf16 %v2198, %v2246
      %vm2344 = vcmask 1044480
      %v2345 = vrot.slane %v2280, 3
      %v2346 = vrot.slane %v2281, 3
      %v2347 = vsel %vm2344, %v2345, %v2346
      %v2348 = vrot.slane %v2282, 3
      %v2349 = vrot.slane %v2283, 3
      %v2350 = vsel %vm2344, %v2348, %v2349
      %v2351 = vrot.slane %v2284, 3
      %v2352 = vrot.slane %v2285, 3
      %v2353 = vsel %vm2344, %v2351, %v2352
      %v2354 = vrot.slane %v2286, 3
      %v2355 = vrot.slane %v2287, 3
      %v2356 = vsel %vm2344, %v2354, %v2355
      %v2357 = vrot.slane %v2288, 3
      %v2358 = vrot.slane %v2289, 3
      %v2359 = vsel %vm2344, %v2357, %v2358
      %v2360 = vrot.slane %v2290, 3
      %v2361 = vrot.slane %v2291, 3
      %v2362 = vsel %vm2344, %v2360, %v2361
      %v2363 = vrot.slane %v2292, 3
      %v2364 = vrot.slane %v2293, 3
      %v2365 = vsel %vm2344, %v2363, %v2364
      %v2366 = vrot.slane %v2294, 3
      %v2367 = vrot.slane %v2295, 3
      %v2368 = vsel %vm2344, %v2366, %v2367
      %v2369 = vrot.slane %v2296, 3
      %v2370 = vrot.slane %v2297, 3
      %v2371 = vsel %vm2344, %v2369, %v2370
      %v2372 = vrot.slane %v2298, 3
      %v2373 = vrot.slane %v2299, 3
      %v2374 = vsel %vm2344, %v2372, %v2373
      %v2375 = vrot.slane %v2300, 3
      %v2376 = vrot.slane %v2301, 3
      %v2377 = vsel %vm2344, %v2375, %v2376
      %v2378 = vrot.slane %v2302, 3
      %v2379 = vrot.slane %v2303, 3
      %v2380 = vsel %vm2344, %v2378, %v2379
      %v2381 = vrot.slane %v2304, 3
      %v2382 = vrot.slane %v2305, 3
      %v2383 = vsel %vm2344, %v2381, %v2382
      %v2384 = vrot.slane %v2306, 3
      %v2385 = vrot.slane %v2307, 3
      %v2386 = vsel %vm2344, %v2384, %v2385
      %v2387 = vrot.slane %v2308, 3
      %v2388 = vrot.slane %v2309, 3
      %v2389 = vsel %vm2344, %v2387, %v2388
      %v2390 = vrot.slane %v2310, 3
      %v2391 = vrot.slane %v2311, 3
      %v2392 = vsel %vm2344, %v2390, %v2391
      %v2394 = vunpack.c.l.b16 %v926
      %v2395 = vpack.c.b16 %v2394, %v2394
      %v2396 = vrot.slane %v2395, 1
      %v2398 = vsel %vm927, %v2347, 0
      %v2401 = vsel %vm927, %v2350, 0
      %v2404 = vsel %vm927, %v2353, 0
      %v2407 = vsel %vm927, %v2356, 0
      %v2410 = vsel %vm927, %v2359, 0
      %v2413 = vsel %vm927, %v2362, 0
      %v2416 = vsel %vm927, %v2365, 0
      %v2419 = vsel %vm927, %v2368, 0
      %v2422 = vsel %vm927, %v2371, 0
      %v2425 = vsel %vm927, %v2374, 0
      %v2428 = vsel %vm927, %v2377, 0
      %v2431 = vsel %vm927, %v2380, 0
      %v2434 = vsel %vm927, %v2383, 0
      %v2437 = vsel %vm927, %v2386, 0
      %v2440 = vsel %vm927, %v2389, 0
      %v2443 = vsel %vm927, %v2392, 0
      %vm2445 = vcmask 1040384
      %v2447 = vsel %vm2445, %v2396, 0
      %2449 = vmatprep.subr.bf16.mxu0 0
      %2450 = vmatpush1.bf16.msra.mxu0 %v2447
      %2451 = vmatprep.subr.bf16.mxu0 0
      %2452 = vmatpush1.bf16.msra.mxu0 0
      %2453 = vmatprep.subr.bf16.mxu0 0
      %2454 = vmatpush1.bf16.msra.mxu0 0
      %2455 = vmatprep.subr.bf16.mxu0 0
      %2456 = vmatpush1.bf16.msra.mxu0 0
      %2457 = vmatprep.subr.bf16.mxu0 0
      %2458 = vmatpush1.bf16.msra.mxu0 0
      %2459 = vmatprep.subr.bf16.mxu0 0
      %2460 = vmatpush1.bf16.msra.mxu0 0
      %2461 = vmatprep.subr.bf16.mxu0 0
      %2462 = vmatpush1.bf16.msra.mxu0 0
      %2463 = vmatprep.subr.bf16.mxu0 0
      %2464 = vmatpush1.bf16.msra.mxu0 0
      %2465 = vmatprep.subr.bf16.mxu0 0
      %2466 = vmatpush1.bf16.msra.mxu0 0
      %2467 = vmatprep.subr.bf16.mxu0 0
      %2468 = vmatpush1.bf16.msra.mxu0 0
      %2469 = vmatprep.subr.bf16.mxu0 0
      %2470 = vmatpush1.bf16.msra.mxu0 0
      %2471 = vmatprep.subr.bf16.mxu0 0
      %2472 = vmatpush1.bf16.msra.mxu0 0
      %2473 = vmatprep.subr.bf16.mxu0 0
      %2474 = vmatpush1.bf16.msra.mxu0 0
      %2475 = vmatprep.subr.bf16.mxu0 0
      %2476 = vmatpush1.bf16.msra.mxu0 0
      %2477 = vmatprep.subr.bf16.mxu0 0
      %2478 = vmatpush1.bf16.msra.mxu0 0
      %2479 = vmatprep.subr.bf16.mxu0 0
      %2480 = vmatpush1.bf16.msra.mxu0 0
      %2481 = vmatprep.mubr.bf16.mxu0 0
      %2482 = vmatmul.mubr.bf16.gmra.mrb[0].mxu0 %v2398
      %v2483 = vpop.f32.mrb[0].mxu0
      %v2484 = vadd.f32 0.0, %v2483
      %v2485 = vpop.f32.mrb[0].mxu0
      %v2486 = vpop.f32.mrb[0].mxu0
      %v2487 = vadd.f32 0.0, %v2486
      %v2488 = vpop.f32.mrb[0].mxu0
      %2489 = vmatprep.mubr.bf16.mxu0 0
      %2490 = vmatmul.mubr.bf16.gmra.mrb[0].mxu0 %v2401
      %v2491 = vpop.f32.mrb[0].mxu0
      %v2492 = vadd.f32 0.0, %v2491
      %v2493 = vpop.f32.mrb[0].mxu0
      %v2494 = vpop.f32.mrb[0].mxu0
      %v2495 = vadd.f32 0.0, %v2494
      %v2496 = vpop.f32.mrb[0].mxu0
      %2497 = vmatprep.mubr.bf16.mxu0 0
      %2498 = vmatmul.mubr.bf16.gmra.mrb[0].mxu0 %v2404
      %v2499 = vpop.f32.mrb[0].mxu0
      %v2500 = vadd.f32 0.0, %v2499
      %v2501 = vpop.f32.mrb[0].mxu0
      %v2502 = vpop.f32.mrb[0].mxu0
      %v2503 = vadd.f32 0.0, %v2502
      %v2504 = vpop.f32.mrb[0].mxu0
      %2505 = vmatprep.mubr.bf16.mxu0 0
      %2506 = vmatmul.mubr.bf16.gmra.mrb[0].mxu0 %v2407
      %v2507 = vpop.f32.mrb[0].mxu0
      %v2508 = vadd.f32 0.0, %v2507
      %v2509 = vpop.f32.mrb[0].mxu0
      %v2510 = vpop.f32.mrb[0].mxu0
      %v2511 = vadd.f32 0.0, %v2510
      %v2512 = vpop.f32.mrb[0].mxu0
      %2513 = vmatprep.mubr.bf16.mxu0 0
      %2514 = vmatmul.mubr.bf16.gmra.mrb[0].mxu0 %v2410
      %v2515 = vpop.f32.mrb[0].mxu0
      %v2516 = vadd.f32 0.0, %v2515
      %v2517 = vpop.f32.mrb[0].mxu0
      %v2518 = vpop.f32.mrb[0].mxu0
      %v2519 = vadd.f32 0.0, %v2518
      %v2520 = vpop.f32.mrb[0].mxu0
      %2521 = vmatprep.mubr.bf16.mxu0 0
      %2522 = vmatmul.mubr.bf16.gmra.mrb[0].mxu0 %v2413
      %v2523 = vpop.f32.mrb[0].mxu0
      %v2524 = vadd.f32 0.0, %v2523
      %v2525 = vpop.f32.mrb[0].mxu0
      %v2526 = vpop.f32.mrb[0].mxu0
      %v2527 = vadd.f32 0.0, %v2526
      %v2528 = vpop.f32.mrb[0].mxu0
      %2529 = vmatprep.mubr.bf16.mxu0 0
      %2530 = vmatmul.mubr.bf16.gmra.mrb[0].mxu0 %v2416
      %v2531 = vpop.f32.mrb[0].mxu0
      %v2532 = vadd.f32 0.0, %v2531
      %v2533 = vpop.f32.mrb[0].mxu0
      %v2534 = vpop.f32.mrb[0].mxu0
      %v2535 = vadd.f32 0.0, %v2534
      %v2536 = vpop.f32.mrb[0].mxu0
      %2537 = vmatprep.mubr.bf16.mxu0 0
      %2538 = vmatmul.mubr.bf16.gmra.mrb[0].mxu0 %v2419
      %v2539 = vpop.f32.mrb[0].mxu0
      %v2540 = vadd.f32 0.0, %v2539
      %v2541 = vpop.f32.mrb[0].mxu0
      %v2542 = vpop.f32.mrb[0].mxu0
      %v2543 = vadd.f32 0.0, %v2542
      %v2544 = vpop.f32.mrb[0].mxu0
      %2545 = vmatprep.mubr.bf16.mxu0 0
      %2546 = vmatmul.mubr.bf16.gmra.mrb[0].mxu0 %v2422
      %v2547 = vpop.f32.mrb[0].mxu0
      %v2548 = vadd.f32 0.0, %v2547
      %v2549 = vpop.f32.mrb[0].mxu0
      %v2550 = vpop.f32.mrb[0].mxu0
      %v2551 = vadd.f32 0.0, %v2550
      %v2552 = vpop.f32.mrb[0].mxu0
      %2553 = vmatprep.mubr.bf16.mxu0 0
      %2554 = vmatmul.mubr.bf16.gmra.mrb[0].mxu0 %v2425
      %v2555 = vpop.f32.mrb[0].mxu0
      %v2556 = vadd.f32 0.0, %v2555
      %v2557 = vpop.f32.mrb[0].mxu0
      %v2558 = vpop.f32.mrb[0].mxu0
      %v2559 = vadd.f32 0.0, %v2558
      %v2560 = vpop.f32.mrb[0].mxu0
      %2561 = vmatprep.mubr.bf16.mxu0 0
      %2562 = vmatmul.mubr.bf16.gmra.mrb[0].mxu0 %v2428
      %v2563 = vpop.f32.mrb[0].mxu0
      %v2564 = vadd.f32 0.0, %v2563
      %v2565 = vpop.f32.mrb[0].mxu0
      %v2566 = vpop.f32.mrb[0].mxu0
      %v2567 = vadd.f32 0.0, %v2566
      %v2568 = vpop.f32.mrb[0].mxu0
      %2569 = vmatprep.mubr.bf16.mxu0 0
      %2570 = vmatmul.mubr.bf16.gmra.mrb[0].mxu0 %v2431
      %v2571 = vpop.f32.mrb[0].mxu0
      %v2572 = vadd.f32 0.0, %v2571
      %v2573 = vpop.f32.mrb[0].mxu0
      %v2574 = vpop.f32.mrb[0].mxu0
      %v2575 = vadd.f32 0.0, %v2574
      %v2576 = vpop.f32.mrb[0].mxu0
      %2577 = vmatprep.mubr.bf16.mxu0 0
      %2578 = vmatmul.mubr.bf16.gmra.mrb[0].mxu0 %v2434
      %v2579 = vpop.f32.mrb[0].mxu0
      %v2580 = vadd.f32 0.0, %v2579
      %v2581 = vpop.f32.mrb[0].mxu0
      %v2582 = vpop.f32.mrb[0].mxu0
      %v2583 = vadd.f32 0.0, %v2582
      %v2584 = vpop.f32.mrb[0].mxu0
      %2585 = vmatprep.mubr.bf16.mxu0 0
      %2586 = vmatmul.mubr.bf16.gmra.mrb[0].mxu0 %v2437
      %v2587 = vpop.f32.mrb[0].mxu0
      %v2588 = vadd.f32 0.0, %v2587
      %v2589 = vpop.f32.mrb[0].mxu0
      %v2590 = vpop.f32.mrb[0].mxu0
      %v2591 = vadd.f32 0.0, %v2590
      %v2592 = vpop.f32.mrb[0].mxu0
      %2593 = vmatprep.mubr.bf16.mxu0 0
      %2594 = vmatmul.mubr.bf16.gmra.mrb[0].mxu0 %v2440
      %v2595 = vpop.f32.mrb[0].mxu0
      %v2596 = vadd.f32 0.0, %v2595
      %v2597 = vpop.f32.mrb[0].mxu0
      %v2598 = vpop.f32.mrb[0].mxu0
      %v2599 = vadd.f32 0.0, %v2598
      %v2600 = vpop.f32.mrb[0].mxu0
      %2601 = vmatprep.mubr.bf16.mxu0 0
      %2602 = vmatmul.mubr.bf16.gmra.mrb[0].mxu0 %v2443
      %v2603 = vpop.f32.mrb[0].mxu0
      %v2604 = vadd.f32 0.0, %v2603
      %v2605 = vpop.f32.mrb[0].mxu0
      %v2606 = vpop.f32.mrb[0].mxu0
      %v2607 = vadd.f32 0.0, %v2606
      %v2608 = vpop.f32.mrb[0].mxu0
      %2609 = vdwg.mxu0
      %v2611 = vsel %vm927, %v910, 0
      %v2614 = vsel %vm927, %v911, 0
      %v2617 = vsel %vm927, %v912, 0
      %v2620 = vsel %vm927, %v913, 0
      %v2623 = vsel %vm927, %v914, 0
      %v2626 = vsel %vm927, %v915, 0
      %v2629 = vsel %vm927, %v916, 0
      %v2632 = vsel %vm927, %v917, 0
      %v2635 = vsel %vm927, %v918, 0
      %v2638 = vsel %vm927, %v919, 0
      %v2641 = vsel %vm927, %v920, 0
      %v2644 = vsel %vm927, %v921, 0
      %v2647 = vsel %vm927, %v922, 0
      %v2650 = vsel %vm927, %v923, 0
      %v2653 = vsel %vm927, %v924, 0
      %v2656 = vsel %vm927, %v925, 0
      %v2659 = vsel %vm2445, %v926, 0
      %2661 = vmatprep.subr.bf16.mxu0 0
      %2662 = vmatpush1.bf16.msra.mxu0 %v2659
      %2663 = vmatprep.subr.bf16.mxu0 0
      %2664 = vmatpush1.bf16.msra.mxu0 0
      %2665 = vmatprep.subr.bf16.mxu0 0
      %2666 = vmatpush1.bf16.msra.mxu0 0
      %2667 = vmatprep.subr.bf16.mxu0 0
      %2668 = vmatpush1.bf16.msra.mxu0 0
      %2669 = vmatprep.subr.bf16.mxu0 0
      %2670 = vmatpush1.bf16.msra.mxu0 0
      %2671 = vmatprep.subr.bf16.mxu0 0
      %2672 = vmatpush1.bf16.msra.mxu0 0
      %2673 = vmatprep.subr.bf16.mxu0 0
      %2674 = vmatpush1.bf16.msra.mxu0 0
      %2675 = vmatprep.subr.bf16.mxu0 0
      %2676 = vmatpush1.bf16.msra.mxu0 0
      %2677 = vmatprep.subr.bf16.mxu0 0
      %2678 = vmatpush1.bf16.msra.mxu0 0
      %2679 = vmatprep.subr.bf16.mxu0 0
      %2680 = vmatpush1.bf16.msra.mxu0 0
      %2681 = vmatprep.subr.bf16.mxu0 0
      %2682 = vmatpush1.bf16.msra.mxu0 0
      %2683 = vmatprep.subr.bf16.mxu0 0
      %2684 = vmatpush1.bf16.msra.mxu0 0
      %2685 = vmatprep.subr.bf16.mxu0 0
      %2686 = vmatpush1.bf16.msra.mxu0 0
      %2687 = vmatprep.subr.bf16.mxu0 0
      %2688 = vmatpush1.bf16.msra.mxu0 0
      %2689 = vmatprep.subr.bf16.mxu0 0
      %2690 = vmatpush1.bf16.msra.mxu0 0
      %2691 = vmatprep.subr.bf16.mxu0 0
      %2692 = vmatpush1.bf16.msra.mxu0 0
      %2693 = vmatprep.mubr.bf16.mxu0 0
      %2694 = vmatmul.mubr.bf16.gmra.mrb[0].mxu0 %v2611
      %v2695 = vpop.f32.mrb[0].mxu0
      %v2696 = vadd.f32 %v2484, %v2695
      %v2697 = vpop.f32.mrb[0].mxu0
      %v2698 = vpop.f32.mrb[0].mxu0
      %v2699 = vadd.f32 %v2487, %v2698
      %v2700 = vpop.f32.mrb[0].mxu0
      %2701 = vmatprep.mubr.bf16.mxu0 0
      %2702 = vmatmul.mubr.bf16.gmra.mrb[0].mxu0 %v2614
      %v2703 = vpop.f32.mrb[0].mxu0
      %v2704 = vadd.f32 %v2492, %v2703
      %v2705 = vpop.f32.mrb[0].mxu0
      %v2706 = vpop.f32.mrb[0].mxu0
      %v2707 = vadd.f32 %v2495, %v2706
      %v2708 = vpop.f32.mrb[0].mxu0
      %2709 = vmatprep.mubr.bf16.mxu0 0
      %2710 = vmatmul.mubr.bf16.gmra.mrb[0].mxu0 %v2617
      %v2711 = vpop.f32.mrb[0].mxu0
      %v2712 = vadd.f32 %v2500, %v2711
      %v2713 = vpop.f32.mrb[0].mxu0
      %v2714 = vpop.f32.mrb[0].mxu0
      %v2715 = vadd.f32 %v2503, %v2714
      %v2716 = vpop.f32.mrb[0].mxu0
      %2717 = vmatprep.mubr.bf16.mxu0 0
      %2718 = vmatmul.mubr.bf16.gmra.mrb[0].mxu0 %v2620
      %v2719 = vpop.f32.mrb[0].mxu0
      %v2720 = vadd.f32 %v2508, %v2719
      %v2721 = vpop.f32.mrb[0].mxu0
      %v2722 = vpop.f32.mrb[0].mxu0
      %v2723 = vadd.f32 %v2511, %v2722
      %v2724 = vpop.f32.mrb[0].mxu0
      %2725 = vmatprep.mubr.bf16.mxu0 0
      %2726 = vmatmul.mubr.bf16.gmra.mrb[0].mxu0 %v2623
      %v2727 = vpop.f32.mrb[0].mxu0
      %v2728 = vadd.f32 %v2516, %v2727
      %v2729 = vpop.f32.mrb[0].mxu0
      %v2730 = vpop.f32.mrb[0].mxu0
      %v2731 = vadd.f32 %v2519, %v2730
      %v2732 = vpop.f32.mrb[0].mxu0
      %2733 = vmatprep.mubr.bf16.mxu0 0
      %2734 = vmatmul.mubr.bf16.gmra.mrb[0].mxu0 %v2626
      %v2735 = vpop.f32.mrb[0].mxu0
      %v2736 = vadd.f32 %v2524, %v2735
      %v2737 = vpop.f32.mrb[0].mxu0
      %v2738 = vpop.f32.mrb[0].mxu0
      %v2739 = vadd.f32 %v2527, %v2738
      %v2740 = vpop.f32.mrb[0].mxu0
      %2741 = vmatprep.mubr.bf16.mxu0 0
      %2742 = vmatmul.mubr.bf16.gmra.mrb[0].mxu0 %v2629
      %v2743 = vpop.f32.mrb[0].mxu0
      %v2744 = vadd.f32 %v2532, %v2743
      %v2745 = vpop.f32.mrb[0].mxu0
      %v2746 = vpop.f32.mrb[0].mxu0
      %v2747 = vadd.f32 %v2535, %v2746
      %v2748 = vpop.f32.mrb[0].mxu0
      %2749 = vmatprep.mubr.bf16.mxu0 0
      %2750 = vmatmul.mubr.bf16.gmra.mrb[0].mxu0 %v2632
      %v2751 = vpop.f32.mrb[0].mxu0
      %v2752 = vadd.f32 %v2540, %v2751
      %v2753 = vpop.f32.mrb[0].mxu0
      %v2754 = vpop.f32.mrb[0].mxu0
      %v2755 = vadd.f32 %v2543, %v2754
      %v2756 = vpop.f32.mrb[0].mxu0
      %2757 = vmatprep.mubr.bf16.mxu0 0
      %2758 = vmatmul.mubr.bf16.gmra.mrb[0].mxu0 %v2635
      %v2759 = vpop.f32.mrb[0].mxu0
      %v2760 = vadd.f32 %v2548, %v2759
      %v2761 = vpop.f32.mrb[0].mxu0
      %v2762 = vpop.f32.mrb[0].mxu0
      %v2763 = vadd.f32 %v2551, %v2762
      %v2764 = vpop.f32.mrb[0].mxu0
      %2765 = vmatprep.mubr.bf16.mxu0 0
      %2766 = vmatmul.mubr.bf16.gmra.mrb[0].mxu0 %v2638
      %v2767 = vpop.f32.mrb[0].mxu0
      %v2768 = vadd.f32 %v2556, %v2767
      %v2769 = vpop.f32.mrb[0].mxu0
      %v2770 = vpop.f32.mrb[0].mxu0
      %v2771 = vadd.f32 %v2559, %v2770
      %v2772 = vpop.f32.mrb[0].mxu0
      %2773 = vmatprep.mubr.bf16.mxu0 0
      %2774 = vmatmul.mubr.bf16.gmra.mrb[0].mxu0 %v2641
      %v2775 = vpop.f32.mrb[0].mxu0
      %v2776 = vadd.f32 %v2564, %v2775
      %v2777 = vpop.f32.mrb[0].mxu0
      %v2778 = vpop.f32.mrb[0].mxu0
      %v2779 = vadd.f32 %v2567, %v2778
      %v2780 = vpop.f32.mrb[0].mxu0
      %2781 = vmatprep.mubr.bf16.mxu0 0
      %2782 = vmatmul.mubr.bf16.gmra.mrb[0].mxu0 %v2644
      %v2783 = vpop.f32.mrb[0].mxu0
      %v2784 = vadd.f32 %v2572, %v2783
      %v2785 = vpop.f32.mrb[0].mxu0
      %v2786 = vpop.f32.mrb[0].mxu0
      %v2787 = vadd.f32 %v2575, %v2786
      %v2788 = vpop.f32.mrb[0].mxu0
      %2789 = vmatprep.mubr.bf16.mxu0 0
      %2790 = vmatmul.mubr.bf16.gmra.mrb[0].mxu0 %v2647
      %v2791 = vpop.f32.mrb[0].mxu0
      %v2792 = vadd.f32 %v2580, %v2791
      %v2793 = vpop.f32.mrb[0].mxu0
      %v2794 = vpop.f32.mrb[0].mxu0
      %v2795 = vadd.f32 %v2583, %v2794
      %v2796 = vpop.f32.mrb[0].mxu0
      %2797 = vmatprep.mubr.bf16.mxu0 0
      %2798 = vmatmul.mubr.bf16.gmra.mrb[0].mxu0 %v2650
      %v2799 = vpop.f32.mrb[0].mxu0
      %v2800 = vadd.f32 %v2588, %v2799
      %v2801 = vpop.f32.mrb[0].mxu0
      %v2802 = vpop.f32.mrb[0].mxu0
      %v2803 = vadd.f32 %v2591, %v2802
      %v2804 = vpop.f32.mrb[0].mxu0
      %2805 = vmatprep.mubr.bf16.mxu0 0
      %2806 = vmatmul.mubr.bf16.gmra.mrb[0].mxu0 %v2653
      %v2807 = vpop.f32.mrb[0].mxu0
      %v2808 = vadd.f32 %v2596, %v2807
      %v2809 = vpop.f32.mrb[0].mxu0
      %v2810 = vpop.f32.mrb[0].mxu0
      %v2811 = vadd.f32 %v2599, %v2810
      %v2812 = vpop.f32.mrb[0].mxu0
      %2813 = vmatprep.mubr.bf16.mxu0 0
      %2814 = vmatmul.mubr.bf16.gmra.mrb[0].mxu0 %v2656
      %v2815 = vpop.f32.mrb[0].mxu0
      %v2816 = vadd.f32 %v2604, %v2815
      %v2817 = vpop.f32.mrb[0].mxu0
      %v2818 = vpop.f32.mrb[0].mxu0
      %v2819 = vadd.f32 %v2607, %v2818
      %v2820 = vpop.f32.mrb[0].mxu0
      %2821 = vdwg.mxu0
      %v2823 = vshrl.u32 %v1508, 16
      %v2825 = vshll.u32 %v1508, 16
      %v2827 = vrot.slane %v2825, 1
      %v2828 = vor.u32 %v2823, %v2827
      %v2830 = vshll.u32 %v1509, 16
      %v2832 = vrot.slane %v2830, 1
      %v2833 = vsel %vm1572, %v2828, %v2832
      %v2834 = vshrl.u32 %v1509, 16
      %v2836 = vor.u32 %v2834, %v2832
      %v2838 = vshrl.u32 %v1510, 16
      %v2840 = vshll.u32 %v1510, 16
      %v2842 = vrot.slane %v2840, 1
      %v2843 = vor.u32 %v2838, %v2842
      %v2845 = vshll.u32 %v1511, 16
      %v2847 = vrot.slane %v2845, 1
      %v2848 = vsel %vm1572, %v2843, %v2847
      %v2849 = vshrl.u32 %v1511, 16
      %v2851 = vor.u32 %v2849, %v2847
      %v2853 = vshrl.u32 %v1512, 16
      %v2855 = vshll.u32 %v1512, 16
      %v2857 = vrot.slane %v2855, 1
      %v2858 = vor.u32 %v2853, %v2857
      %v2860 = vshll.u32 %v1513, 16
      %v2862 = vrot.slane %v2860, 1
      %v2863 = vsel %vm1572, %v2858, %v2862
      %v2864 = vshrl.u32 %v1513, 16
      %v2866 = vor.u32 %v2864, %v2862
      %v2868 = vshrl.u32 %v1514, 16
      %v2870 = vshll.u32 %v1514, 16
      %v2872 = vrot.slane %v2870, 1
      %v2873 = vor.u32 %v2868, %v2872
      %v2875 = vshll.u32 %v1515, 16
      %v2877 = vrot.slane %v2875, 1
      %v2878 = vsel %vm1572, %v2873, %v2877
      %v2879 = vshrl.u32 %v1515, 16
      %v2881 = vor.u32 %v2879, %v2877
      %v2883 = vshrl.u32 %v1516, 16
      %v2885 = vshll.u32 %v1516, 16
      %v2887 = vrot.slane %v2885, 1
      %v2888 = vor.u32 %v2883, %v2887
      %v2890 = vshll.u32 %v1517, 16
      %v2892 = vrot.slane %v2890, 1
      %v2893 = vsel %vm1572, %v2888, %v2892
      %v2894 = vshrl.u32 %v1517, 16
      %v2896 = vor.u32 %v2894, %v2892
      %v2898 = vshrl.u32 %v1518, 16
      %v2900 = vshll.u32 %v1518, 16
      %v2902 = vrot.slane %v2900, 1
      %v2903 = vor.u32 %v2898, %v2902
      %v2905 = vshll.u32 %v1519, 16
      %v2907 = vrot.slane %v2905, 1
      %v2908 = vsel %vm1572, %v2903, %v2907
      %v2909 = vshrl.u32 %v1519, 16
      %v2911 = vor.u32 %v2909, %v2907
      %v2913 = vshrl.u32 %v1520, 16
      %v2915 = vshll.u32 %v1520, 16
      %v2917 = vrot.slane %v2915, 1
      %v2918 = vor.u32 %v2913, %v2917
      %v2920 = vshll.u32 %v1521, 16
      %v2922 = vrot.slane %v2920, 1
      %v2923 = vsel %vm1572, %v2918, %v2922
      %v2924 = vshrl.u32 %v1521, 16
      %v2926 = vor.u32 %v2924, %v2922
      %v2928 = vshrl.u32 %v1522, 16
      %v2930 = vshll.u32 %v1522, 16
      %v2932 = vrot.slane %v2930, 1
      %v2933 = vor.u32 %v2928, %v2932
      %v2935 = vshll.u32 %v1523, 16
      %v2937 = vrot.slane %v2935, 1
      %v2938 = vsel %vm1572, %v2933, %v2937
      %v2939 = vshrl.u32 %v1523, 16
      %v2941 = vor.u32 %v2939, %v2937
      %v2943 = vshrl.u32 %v1524, 16
      %v2945 = vshll.u32 %v1524, 16
      %v2947 = vrot.slane %v2945, 1
      %v2948 = vor.u32 %v2943, %v2947
      %v2950 = vshll.u32 %v1525, 16
      %v2952 = vrot.slane %v2950, 1
      %v2953 = vsel %vm1572, %v2948, %v2952
      %v2954 = vshrl.u32 %v1525, 16
      %v2956 = vor.u32 %v2954, %v2952
      %v2958 = vshrl.u32 %v1526, 16
      %v2960 = vshll.u32 %v1526, 16
      %v2962 = vrot.slane %v2960, 1
      %v2963 = vor.u32 %v2958, %v2962
      %v2965 = vshll.u32 %v1527, 16
      %v2967 = vrot.slane %v2965, 1
      %v2968 = vsel %vm1572, %v2963, %v2967
      %v2969 = vshrl.u32 %v1527, 16
      %v2971 = vor.u32 %v2969, %v2967
      %v2973 = vshrl.u32 %v1528, 16
      %v2975 = vshll.u32 %v1528, 16
      %v2977 = vrot.slane %v2975, 1
      %v2978 = vor.u32 %v2973, %v2977
      %v2980 = vshll.u32 %v1529, 16
      %v2982 = vrot.slane %v2980, 1
      %v2983 = vsel %vm1572, %v2978, %v2982
      %v2984 = vshrl.u32 %v1529, 16
      %v2986 = vor.u32 %v2984, %v2982
      %v2988 = vshrl.u32 %v1530, 16
      %v2990 = vshll.u32 %v1530, 16
      %v2992 = vrot.slane %v2990, 1
      %v2993 = vor.u32 %v2988, %v2992
      %v2995 = vshll.u32 %v1531, 16
      %v2997 = vrot.slane %v2995, 1
      %v2998 = vsel %vm1572, %v2993, %v2997
      %v2999 = vshrl.u32 %v1531, 16
      %v3001 = vor.u32 %v2999, %v2997
      %v3003 = vshrl.u32 %v1532, 16
      %v3005 = vshll.u32 %v1532, 16
      %v3007 = vrot.slane %v3005, 1
      %v3008 = vor.u32 %v3003, %v3007
      %v3010 = vshll.u32 %v1533, 16
      %v3012 = vrot.slane %v3010, 1
      %v3013 = vsel %vm1572, %v3008, %v3012
      %v3014 = vshrl.u32 %v1533, 16
      %v3016 = vor.u32 %v3014, %v3012
      %v3018 = vshrl.u32 %v1534, 16
      %v3020 = vshll.u32 %v1534, 16
      %v3022 = vrot.slane %v3020, 1
      %v3023 = vor.u32 %v3018, %v3022
      %v3025 = vshll.u32 %v1535, 16
      %v3027 = vrot.slane %v3025, 1
      %v3028 = vsel %vm1572, %v3023, %v3027
      %v3029 = vshrl.u32 %v1535, 16
      %v3031 = vor.u32 %v3029, %v3027
      %v3033 = vshrl.u32 %v1536, 16
      %v3035 = vshll.u32 %v1536, 16
      %v3037 = vrot.slane %v3035, 1
      %v3038 = vor.u32 %v3033, %v3037
      %v3040 = vshll.u32 %v1537, 16
      %v3042 = vrot.slane %v3040, 1
      %v3043 = vsel %vm1572, %v3038, %v3042
      %v3044 = vshrl.u32 %v1537, 16
      %v3046 = vor.u32 %v3044, %v3042
      %v3048 = vshrl.u32 %v1538, 16
      %v3050 = vshll.u32 %v1538, 16
      %v3052 = vrot.slane %v3050, 1
      %v3053 = vor.u32 %v3048, %v3052
      %v3055 = vshll.u32 %v1539, 16
      %v3057 = vrot.slane %v3055, 1
      %v3058 = vsel %vm1572, %v3053, %v3057
      %v3059 = vshrl.u32 %v1539, 16
      %v3061 = vor.u32 %v3059, %v3057
      %v3094 = vmax.bf16 %v1508, %v2833
      %v3095 = vmax.bf16 %v1509, %v2836
      %v3096 = vmax.bf16 %v1510, %v2848
      %v3097 = vmax.bf16 %v1511, %v2851
      %v3098 = vmax.bf16 %v1512, %v2863
      %v3099 = vmax.bf16 %v1513, %v2866
      %v3100 = vmax.bf16 %v1514, %v2878
      %v3101 = vmax.bf16 %v1515, %v2881
      %v3102 = vmax.bf16 %v1516, %v2893
      %v3103 = vmax.bf16 %v1517, %v2896
      %v3104 = vmax.bf16 %v1518, %v2908
      %v3105 = vmax.bf16 %v1519, %v2911
      %v3106 = vmax.bf16 %v1520, %v2923
      %v3107 = vmax.bf16 %v1521, %v2926
      %v3108 = vmax.bf16 %v1522, %v2938
      %v3109 = vmax.bf16 %v1523, %v2941
      %v3110 = vmax.bf16 %v1524, %v2953
      %v3111 = vmax.bf16 %v1525, %v2956
      %v3112 = vmax.bf16 %v1526, %v2968
      %v3113 = vmax.bf16 %v1527, %v2971
      %v3114 = vmax.bf16 %v1528, %v2983
      %v3115 = vmax.bf16 %v1529, %v2986
      %v3116 = vmax.bf16 %v1530, %v2998
      %v3117 = vmax.bf16 %v1531, %v3001
      %v3118 = vmax.bf16 %v1532, %v3013
      %v3119 = vmax.bf16 %v1533, %v3016
      %v3120 = vmax.bf16 %v1534, %v3028
      %v3121 = vmax.bf16 %v1535, %v3031
      %v3122 = vmax.bf16 %v1536, %v3043
      %v3123 = vmax.bf16 %v1537, %v3046
      %v3124 = vmax.bf16 %v1538, %v3058
      %v3125 = vmax.bf16 %v1539, %v3061
      %v3158 = vrot.slane %v1508, 1
      %v3159 = vrot.slane %v1509, 1
      %v3160 = vsel %vm1909, %v3158, %v3159
      %v3161 = vrot.slane %v1510, 1
      %v3162 = vrot.slane %v1511, 1
      %v3163 = vsel %vm1909, %v3161, %v3162
      %v3164 = vrot.slane %v1512, 1
      %v3165 = vrot.slane %v1513, 1
      %v3166 = vsel %vm1909, %v3164, %v3165
      %v3167 = vrot.slane %v1514, 1
      %v3168 = vrot.slane %v1515, 1
      %v3169 = vsel %vm1909, %v3167, %v3168
      %v3170 = vrot.slane %v1516, 1
      %v3171 = vrot.slane %v1517, 1
      %v3172 = vsel %vm1909, %v3170, %v3171
      %v3173 = vrot.slane %v1518, 1
      %v3174 = vrot.slane %v1519, 1
      %v3175 = vsel %vm1909, %v3173, %v3174
      %v3176 = vrot.slane %v1520, 1
      %v3177 = vrot.slane %v1521, 1
      %v3178 = vsel %vm1909, %v3176, %v3177
      %v3179 = vrot.slane %v1522, 1
      %v3180 = vrot.slane %v1523, 1
      %v3181 = vsel %vm1909, %v3179, %v3180
      %v3182 = vrot.slane %v1524, 1
      %v3183 = vrot.slane %v1525, 1
      %v3184 = vsel %vm1909, %v3182, %v3183
      %v3185 = vrot.slane %v1526, 1
      %v3186 = vrot.slane %v1527, 1
      %v3187 = vsel %vm1909, %v3185, %v3186
      %v3188 = vrot.slane %v1528, 1
      %v3189 = vrot.slane %v1529, 1
      %v3190 = vsel %vm1909, %v3188, %v3189
      %v3191 = vrot.slane %v1530, 1
      %v3192 = vrot.slane %v1531, 1
      %v3193 = vsel %vm1909, %v3191, %v3192
      %v3194 = vrot.slane %v1532, 1
      %v3195 = vrot.slane %v1533, 1
      %v3196 = vsel %vm1909, %v3194, %v3195
      %v3197 = vrot.slane %v1534, 1
      %v3198 = vrot.slane %v1535, 1
      %v3199 = vsel %vm1909, %v3197, %v3198
      %v3200 = vrot.slane %v1536, 1
      %v3201 = vrot.slane %v1537, 1
      %v3202 = vsel %vm1909, %v3200, %v3201
      %v3203 = vrot.slane %v1538, 1
      %v3204 = vrot.slane %v1539, 1
      %v3205 = vsel %vm1909, %v3203, %v3204
      %v3238 = vmax.bf16 %v3094, %v3160
      %v3239 = vmax.bf16 %v3095, %v3159
      %v3240 = vmax.bf16 %v3096, %v3163
      %v3241 = vmax.bf16 %v3097, %v3162
      %v3242 = vmax.bf16 %v3098, %v3166
      %v3243 = vmax.bf16 %v3099, %v3165
      %v3244 = vmax.bf16 %v3100, %v3169
      %v3245 = vmax.bf16 %v3101, %v3168
      %v3246 = vmax.bf16 %v3102, %v3172
      %v3247 = vmax.bf16 %v3103, %v3171
      %v3248 = vmax.bf16 %v3104, %v3175
      %v3249 = vmax.bf16 %v3105, %v3174
      %v3250 = vmax.bf16 %v3106, %v3178
      %v3251 = vmax.bf16 %v3107, %v3177
      %v3252 = vmax.bf16 %v3108, %v3181
      %v3253 = vmax.bf16 %v3109, %v3180
      %v3254 = vmax.bf16 %v3110, %v3184
      %v3255 = vmax.bf16 %v3111, %v3183
      %v3256 = vmax.bf16 %v3112, %v3187
      %v3257 = vmax.bf16 %v3113, %v3186
      %v3258 = vmax.bf16 %v3114, %v3190
      %v3259 = vmax.bf16 %v3115, %v3189
      %v3260 = vmax.bf16 %v3116, %v3193
      %v3261 = vmax.bf16 %v3117, %v3192
      %v3262 = vmax.bf16 %v3118, %v3196
      %v3263 = vmax.bf16 %v3119, %v3195
      %v3264 = vmax.bf16 %v3120, %v3199
      %v3265 = vmax.bf16 %v3121, %v3198
      %v3266 = vmax.bf16 %v3122, %v3202
      %v3267 = vmax.bf16 %v3123, %v3201
      %v3268 = vmax.bf16 %v3124, %v3205
      %v3269 = vmax.bf16 %v3125, %v3204
      %v3270 = vrot.slane %v2823, 1
      %v3271 = vrot.slane %v2825, 2
      %v3272 = vor.u32 %v3270, %v3271
      %v3273 = vrot.slane %v2834, 1
      %v3274 = vrot.slane %v2830, 2
      %v3275 = vor.u32 %v3273, %v3274
      %v3276 = vsel %vm2022, %v3272, %v3275
      %v3277 = vrot.slane %v2838, 1
      %v3278 = vrot.slane %v2840, 2
      %v3279 = vor.u32 %v3277, %v3278
      %v3280 = vrot.slane %v2849, 1
      %v3281 = vrot.slane %v2845, 2
      %v3282 = vor.u32 %v3280, %v3281
      %v3283 = vsel %vm2022, %v3279, %v3282
      %v3284 = vrot.slane %v2853, 1
      %v3285 = vrot.slane %v2855, 2
      %v3286 = vor.u32 %v3284, %v3285
      %v3287 = vrot.slane %v2864, 1
      %v3288 = vrot.slane %v2860, 2
      %v3289 = vor.u32 %v3287, %v3288
      %v3290 = vsel %vm2022, %v3286, %v3289
      %v3291 = vrot.slane %v2868, 1
      %v3292 = vrot.slane %v2870, 2
      %v3293 = vor.u32 %v3291, %v3292
      %v3294 = vrot.slane %v2879, 1
      %v3295 = vrot.slane %v2875, 2
      %v3296 = vor.u32 %v3294, %v3295
      %v3297 = vsel %vm2022, %v3293, %v3296
      %v3298 = vrot.slane %v2883, 1
      %v3299 = vrot.slane %v2885, 2
      %v3300 = vor.u32 %v3298, %v3299
      %v3301 = vrot.slane %v2894, 1
      %v3302 = vrot.slane %v2890, 2
      %v3303 = vor.u32 %v3301, %v3302
      %v3304 = vsel %vm2022, %v3300, %v3303
      %v3305 = vrot.slane %v2898, 1
      %v3306 = vrot.slane %v2900, 2
      %v3307 = vor.u32 %v3305, %v3306
      %v3308 = vrot.slane %v2909, 1
      %v3309 = vrot.slane %v2905, 2
      %v3310 = vor.u32 %v3308, %v3309
      %v3311 = vsel %vm2022, %v3307, %v3310
      %v3312 = vrot.slane %v2913, 1
      %v3313 = vrot.slane %v2915, 2
      %v3314 = vor.u32 %v3312, %v3313
      %v3315 = vrot.slane %v2924, 1
      %v3316 = vrot.slane %v2920, 2
      %v3317 = vor.u32 %v3315, %v3316
      %v3318 = vsel %vm2022, %v3314, %v3317
      %v3319 = vrot.slane %v2928, 1
      %v3320 = vrot.slane %v2930, 2
      %v3321 = vor.u32 %v3319, %v3320
      %v3322 = vrot.slane %v2939, 1
      %v3323 = vrot.slane %v2935, 2
      %v3324 = vor.u32 %v3322, %v3323
      %v3325 = vsel %vm2022, %v3321, %v3324
      %v3326 = vrot.slane %v2943, 1
      %v3327 = vrot.slane %v2945, 2
      %v3328 = vor.u32 %v3326, %v3327
      %v3329 = vrot.slane %v2954, 1
      %v3330 = vrot.slane %v2950, 2
      %v3331 = vor.u32 %v3329, %v3330
      %v3332 = vsel %vm2022, %v3328, %v3331
      %v3333 = vrot.slane %v2958, 1
      %v3334 = vrot.slane %v2960, 2
      %v3335 = vor.u32 %v3333, %v3334
      %v3336 = vrot.slane %v2969, 1
      %v3337 = vrot.slane %v2965, 2
      %v3338 = vor.u32 %v3336, %v3337
      %v3339 = vsel %vm2022, %v3335, %v3338
      %v3340 = vrot.slane %v2973, 1
      %v3341 = vrot.slane %v2975, 2
      %v3342 = vor.u32 %v3340, %v3341
      %v3343 = vrot.slane %v2984, 1
      %v3344 = vrot.slane %v2980, 2
      %v3345 = vor.u32 %v3343, %v3344
      %v3346 = vsel %vm2022, %v3342, %v3345
      %v3347 = vrot.slane %v2988, 1
      %v3348 = vrot.slane %v2990, 2
      %v3349 = vor.u32 %v3347, %v3348
      %v3350 = vrot.slane %v2999, 1
      %v3351 = vrot.slane %v2995, 2
      %v3352 = vor.u32 %v3350, %v3351
      %v3353 = vsel %vm2022, %v3349, %v3352
      %v3354 = vrot.slane %v3003, 1
      %v3355 = vrot.slane %v3005, 2
      %v3356 = vor.u32 %v3354, %v3355
      %v3357 = vrot.slane %v3014, 1
      %v3358 = vrot.slane %v3010, 2
      %v3359 = vor.u32 %v3357, %v3358
      %v3360 = vsel %vm2022, %v3356, %v3359
      %v3361 = vrot.slane %v3018, 1
      %v3362 = vrot.slane %v3020, 2
      %v3363 = vor.u32 %v3361, %v3362
      %v3364 = vrot.slane %v3029, 1
      %v3365 = vrot.slane %v3025, 2
      %v3366 = vor.u32 %v3364, %v3365
      %v3367 = vsel %vm2022, %v3363, %v3366
      %v3368 = vrot.slane %v3033, 1
      %v3369 = vrot.slane %v3035, 2
      %v3370 = vor.u32 %v3368, %v3369
      %v3371 = vrot.slane %v3044, 1
      %v3372 = vrot.slane %v3040, 2
      %v3373 = vor.u32 %v3371, %v3372
      %v3374 = vsel %vm2022, %v3370, %v3373
      %v3375 = vrot.slane %v3048, 1
      %v3376 = vrot.slane %v3050, 2
      %v3377 = vor.u32 %v3375, %v3376
      %v3378 = vrot.slane %v3059, 1
      %v3379 = vrot.slane %v3055, 2
      %v3380 = vor.u32 %v3378, %v3379
      %v3381 = vsel %vm2022, %v3377, %v3380
      %v3414 = vmax.bf16 %v3238, %v3276
      %v3415 = vmax.bf16 %v3239, %v3275
      %v3416 = vmax.bf16 %v3240, %v3283
      %v3417 = vmax.bf16 %v3241, %v3282
      %v3418 = vmax.bf16 %v3242, %v3290
      %v3419 = vmax.bf16 %v3243, %v3289
      %v3420 = vmax.bf16 %v3244, %v3297
      %v3421 = vmax.bf16 %v3245, %v3296
      %v3422 = vmax.bf16 %v3246, %v3304
      %v3423 = vmax.bf16 %v3247, %v3303
      %v3424 = vmax.bf16 %v3248, %v3311
      %v3425 = vmax.bf16 %v3249, %v3310
      %v3426 = vmax.bf16 %v3250, %v3318
      %v3427 = vmax.bf16 %v3251, %v3317
      %v3428 = vmax.bf16 %v3252, %v3325
      %v3429 = vmax.bf16 %v3253, %v3324
      %v3430 = vmax.bf16 %v3254, %v3332
      %v3431 = vmax.bf16 %v3255, %v3331
      %v3432 = vmax.bf16 %v3256, %v3339
      %v3433 = vmax.bf16 %v3257, %v3338
      %v3434 = vmax.bf16 %v3258, %v3346
      %v3435 = vmax.bf16 %v3259, %v3345
      %v3436 = vmax.bf16 %v3260, %v3353
      %v3437 = vmax.bf16 %v3261, %v3352
      %v3438 = vmax.bf16 %v3262, %v3360
      %v3439 = vmax.bf16 %v3263, %v3359
      %v3440 = vmax.bf16 %v3264, %v3367
      %v3441 = vmax.bf16 %v3265, %v3366
      %v3442 = vmax.bf16 %v3266, %v3374
      %v3443 = vmax.bf16 %v3267, %v3373
      %v3444 = vmax.bf16 %v3268, %v3381
      %v3445 = vmax.bf16 %v3269, %v3380
      %v3446 = vrot.slane %v1508, 2
      %v3447 = vrot.slane %v1509, 2
      %v3448 = vsel %vm2199, %v3446, %v3447
      %v3449 = vrot.slane %v1510, 2
      %v3450 = vrot.slane %v1511, 2
      %v3451 = vsel %vm2199, %v3449, %v3450
      %v3452 = vrot.slane %v1512, 2
      %v3453 = vrot.slane %v1513, 2
      %v3454 = vsel %vm2199, %v3452, %v3453
      %v3455 = vrot.slane %v1514, 2
      %v3456 = vrot.slane %v1515, 2
      %v3457 = vsel %vm2199, %v3455, %v3456
      %v3458 = vrot.slane %v1516, 2
      %v3459 = vrot.slane %v1517, 2
      %v3460 = vsel %vm2199, %v3458, %v3459
      %v3461 = vrot.slane %v1518, 2
      %v3462 = vrot.slane %v1519, 2
      %v3463 = vsel %vm2199, %v3461, %v3462
      %v3464 = vrot.slane %v1520, 2
      %v3465 = vrot.slane %v1521, 2
      %v3466 = vsel %vm2199, %v3464, %v3465
      %v3467 = vrot.slane %v1522, 2
      %v3468 = vrot.slane %v1523, 2
      %v3469 = vsel %vm2199, %v3467, %v3468
      %v3470 = vrot.slane %v1524, 2
      %v3471 = vrot.slane %v1525, 2
      %v3472 = vsel %vm2199, %v3470, %v3471
      %v3473 = vrot.slane %v1526, 2
      %v3474 = vrot.slane %v1527, 2
      %v3475 = vsel %vm2199, %v3473, %v3474
      %v3476 = vrot.slane %v1528, 2
      %v3477 = vrot.slane %v1529, 2
      %v3478 = vsel %vm2199, %v3476, %v3477
      %v3479 = vrot.slane %v1530, 2
      %v3480 = vrot.slane %v1531, 2
      %v3481 = vsel %vm2199, %v3479, %v3480
      %v3482 = vrot.slane %v1532, 2
      %v3483 = vrot.slane %v1533, 2
      %v3484 = vsel %vm2199, %v3482, %v3483
      %v3485 = vrot.slane %v1534, 2
      %v3486 = vrot.slane %v1535, 2
      %v3487 = vsel %vm2199, %v3485, %v3486
      %v3488 = vrot.slane %v1536, 2
      %v3489 = vrot.slane %v1537, 2
      %v3490 = vsel %vm2199, %v3488, %v3489
      %v3491 = vrot.slane %v1538, 2
      %v3492 = vrot.slane %v1539, 2
      %v3493 = vsel %vm2199, %v3491, %v3492
      %v3526 = vmax.bf16 %v3414, %v3448
      %v3527 = vmax.bf16 %v3415, %v3447
      %v3528 = vmax.bf16 %v3416, %v3451
      %v3529 = vmax.bf16 %v3417, %v3450
      %v3530 = vmax.bf16 %v3418, %v3454
      %v3531 = vmax.bf16 %v3419, %v3453
      %v3532 = vmax.bf16 %v3420, %v3457
      %v3533 = vmax.bf16 %v3421, %v3456
      %v3534 = vmax.bf16 %v3422, %v3460
      %v3535 = vmax.bf16 %v3423, %v3459
      %v3536 = vmax.bf16 %v3424, %v3463
      %v3537 = vmax.bf16 %v3425, %v3462
      %v3538 = vmax.bf16 %v3426, %v3466
      %v3539 = vmax.bf16 %v3427, %v3465
      %v3540 = vmax.bf16 %v3428, %v3469
      %v3541 = vmax.bf16 %v3429, %v3468
      %v3542 = vmax.bf16 %v3430, %v3472
      %v3543 = vmax.bf16 %v3431, %v3471
      %v3544 = vmax.bf16 %v3432, %v3475
      %v3545 = vmax.bf16 %v3433, %v3474
      %v3546 = vmax.bf16 %v3434, %v3478
      %v3547 = vmax.bf16 %v3435, %v3477
      %v3548 = vmax.bf16 %v3436, %v3481
      %v3549 = vmax.bf16 %v3437, %v3480
      %v3550 = vmax.bf16 %v3438, %v3484
      %v3551 = vmax.bf16 %v3439, %v3483
      %v3552 = vmax.bf16 %v3440, %v3487
      %v3553 = vmax.bf16 %v3441, %v3486
      %v3554 = vmax.bf16 %v3442, %v3490
      %v3555 = vmax.bf16 %v3443, %v3489
      %v3556 = vmax.bf16 %v3444, %v3493
      %v3557 = vmax.bf16 %v3445, %v3492
      %v3590 = vrot.slane %v3526, 2
      %v3591 = vrot.slane %v3527, 2
      %v3592 = vsel %vm2199, %v3590, %v3591
      %v3593 = vrot.slane %v3528, 2
      %v3594 = vrot.slane %v3529, 2
      %v3595 = vsel %vm2199, %v3593, %v3594
      %v3596 = vrot.slane %v3530, 2
      %v3597 = vrot.slane %v3531, 2
      %v3598 = vsel %vm2199, %v3596, %v3597
      %v3599 = vrot.slane %v3532, 2
      %v3600 = vrot.slane %v3533, 2
      %v3601 = vsel %vm2199, %v3599, %v3600
      %v3602 = vrot.slane %v3534, 2
      %v3603 = vrot.slane %v3535, 2
      %v3604 = vsel %vm2199, %v3602, %v3603
      %v3605 = vrot.slane %v3536, 2
      %v3606 = vrot.slane %v3537, 2
      %v3607 = vsel %vm2199, %v3605, %v3606
      %v3608 = vrot.slane %v3538, 2
      %v3609 = vrot.slane %v3539, 2
      %v3610 = vsel %vm2199, %v3608, %v3609
      %v3611 = vrot.slane %v3540, 2
      %v3612 = vrot.slane %v3541, 2
      %v3613 = vsel %vm2199, %v3611, %v3612
      %v3614 = vrot.slane %v3542, 2
      %v3615 = vrot.slane %v3543, 2
      %v3616 = vsel %vm2199, %v3614, %v3615
      %v3617 = vrot.slane %v3544, 2
      %v3618 = vrot.slane %v3545, 2
      %v3619 = vsel %vm2199, %v3617, %v3618
      %v3620 = vrot.slane %v3546, 2
      %v3621 = vrot.slane %v3547, 2
      %v3622 = vsel %vm2199, %v3620, %v3621
      %v3623 = vrot.slane %v3548, 2
      %v3624 = vrot.slane %v3549, 2
      %v3625 = vsel %vm2199, %v3623, %v3624
      %v3626 = vrot.slane %v3550, 2
      %v3627 = vrot.slane %v3551, 2
      %v3628 = vsel %vm2199, %v3626, %v3627
      %v3629 = vrot.slane %v3552, 2
      %v3630 = vrot.slane %v3553, 2
      %v3631 = vsel %vm2199, %v3629, %v3630
      %v3632 = vrot.slane %v3554, 2
      %v3633 = vrot.slane %v3555, 2
      %v3634 = vsel %vm2199, %v3632, %v3633
      %v3635 = vrot.slane %v3556, 2
      %v3636 = vrot.slane %v3557, 2
      %v3637 = vsel %vm2199, %v3635, %v3636
      %v3670 = vmax.bf16 %v3526, %v3592
      %v3671 = vmax.bf16 %v3527, %v3591
      %v3672 = vmax.bf16 %v3528, %v3595
      %v3673 = vmax.bf16 %v3529, %v3594
      %v3674 = vmax.bf16 %v3530, %v3598
      %v3675 = vmax.bf16 %v3531, %v3597
      %v3676 = vmax.bf16 %v3532, %v3601
      %v3677 = vmax.bf16 %v3533, %v3600
      %v3678 = vmax.bf16 %v3534, %v3604
      %v3679 = vmax.bf16 %v3535, %v3603
      %v3680 = vmax.bf16 %v3536, %v3607
      %v3681 = vmax.bf16 %v3537, %v3606
      %v3682 = vmax.bf16 %v3538, %v3610
      %v3683 = vmax.bf16 %v3539, %v3609
      %v3684 = vmax.bf16 %v3540, %v3613
      %v3685 = vmax.bf16 %v3541, %v3612
      %v3686 = vmax.bf16 %v3542, %v3616
      %v3687 = vmax.bf16 %v3543, %v3615
      %v3688 = vmax.bf16 %v3544, %v3619
      %v3689 = vmax.bf16 %v3545, %v3618
      %v3690 = vmax.bf16 %v3546, %v3622
      %v3691 = vmax.bf16 %v3547, %v3621
      %v3692 = vmax.bf16 %v3548, %v3625
      %v3693 = vmax.bf16 %v3549, %v3624
      %v3694 = vmax.bf16 %v3550, %v3628
      %v3695 = vmax.bf16 %v3551, %v3627
      %v3696 = vmax.bf16 %v3552, %v3631
      %v3697 = vmax.bf16 %v3553, %v3630
      %v3698 = vmax.bf16 %v3554, %v3634
      %v3699 = vmax.bf16 %v3555, %v3633
      %v3700 = vmax.bf16 %v3556, %v3637
      %v3701 = vmax.bf16 %v3557, %v3636
      %v3734 = vrot.slane %v3670, 2
      %v3735 = vrot.slane %v3671, 2
      %v3736 = vsel %vm2199, %v3734, %v3735
      %v3737 = vrot.slane %v3672, 2
      %v3738 = vrot.slane %v3673, 2
      %v3739 = vsel %vm2199, %v3737, %v3738
      %v3740 = vrot.slane %v3674, 2
      %v3741 = vrot.slane %v3675, 2
      %v3742 = vsel %vm2199, %v3740, %v3741
      %v3743 = vrot.slane %v3676, 2
      %v3744 = vrot.slane %v3677, 2
      %v3745 = vsel %vm2199, %v3743, %v3744
      %v3746 = vrot.slane %v3678, 2
      %v3747 = vrot.slane %v3679, 2
      %v3748 = vsel %vm2199, %v3746, %v3747
      %v3749 = vrot.slane %v3680, 2
      %v3750 = vrot.slane %v3681, 2
      %v3751 = vsel %vm2199, %v3749, %v3750
      %v3752 = vrot.slane %v3682, 2
      %v3753 = vrot.slane %v3683, 2
      %v3754 = vsel %vm2199, %v3752, %v3753
      %v3755 = vrot.slane %v3684, 2
      %v3756 = vrot.slane %v3685, 2
      %v3757 = vsel %vm2199, %v3755, %v3756
      %v3758 = vrot.slane %v3686, 2
      %v3759 = vrot.slane %v3687, 2
      %v3760 = vsel %vm2199, %v3758, %v3759
      %v3761 = vrot.slane %v3688, 2
      %v3762 = vrot.slane %v3689, 2
      %v3763 = vsel %vm2199, %v3761, %v3762
      %v3764 = vrot.slane %v3690, 2
      %v3765 = vrot.slane %v3691, 2
      %v3766 = vsel %vm2199, %v3764, %v3765
      %v3767 = vrot.slane %v3692, 2
      %v3768 = vrot.slane %v3693, 2
      %v3769 = vsel %vm2199, %v3767, %v3768
      %v3770 = vrot.slane %v3694, 2
      %v3771 = vrot.slane %v3695, 2
      %v3772 = vsel %vm2199, %v3770, %v3771
      %v3773 = vrot.slane %v3696, 2
      %v3774 = vrot.slane %v3697, 2
      %v3775 = vsel %vm2199, %v3773, %v3774
      %v3776 = vrot.slane %v3698, 2
      %v3777 = vrot.slane %v3699, 2
      %v3778 = vsel %vm2199, %v3776, %v3777
      %v3779 = vrot.slane %v3700, 2
      %v3780 = vrot.slane %v3701, 2
      %v3781 = vsel %vm2199, %v3779, %v3780
      %v3782 = vrot.slane %v2395, 2
      %v3784 = vsel %vm927, %v3736, 0
      %v3787 = vsel %vm927, %v3739, 0
      %v3790 = vsel %vm927, %v3742, 0
      %v3793 = vsel %vm927, %v3745, 0
      %v3796 = vsel %vm927, %v3748, 0
      %v3799 = vsel %vm927, %v3751, 0
      %v3802 = vsel %vm927, %v3754, 0
      %v3805 = vsel %vm927, %v3757, 0
      %v3808 = vsel %vm927, %v3760, 0
      %v3811 = vsel %vm927, %v3763, 0
      %v3814 = vsel %vm927, %v3766, 0
      %v3817 = vsel %vm927, %v3769, 0
      %v3820 = vsel %vm927, %v3772, 0
      %v3823 = vsel %vm927, %v3775, 0
      %v3826 = vsel %vm927, %v3778, 0
      %v3829 = vsel %vm927, %v3781, 0
      %v3832 = vsel %vm2445, %v3782, 0
      %3834 = vmatprep.subr.bf16.mxu0 0
      %3835 = vmatpush1.bf16.msra.mxu0 %v3832
      %3836 = vmatprep.subr.bf16.mxu0 0
      %3837 = vmatpush1.bf16.msra.mxu0 0
      %3838 = vmatprep.subr.bf16.mxu0 0
      %3839 = vmatpush1.bf16.msra.mxu0 0
      %3840 = vmatprep.subr.bf16.mxu0 0
      %3841 = vmatpush1.bf16.msra.mxu0 0
      %3842 = vmatprep.subr.bf16.mxu0 0
      %3843 = vmatpush1.bf16.msra.mxu0 0
      %3844 = vmatprep.subr.bf16.mxu0 0
      %3845 = vmatpush1.bf16.msra.mxu0 0
      %3846 = vmatprep.subr.bf16.mxu0 0
      %3847 = vmatpush1.bf16.msra.mxu0 0
      %3848 = vmatprep.subr.bf16.mxu0 0
      %3849 = vmatpush1.bf16.msra.mxu0 0
      %3850 = vmatprep.subr.bf16.mxu0 0
      %3851 = vmatpush1.bf16.msra.mxu0 0
      %3852 = vmatprep.subr.bf16.mxu0 0
      %3853 = vmatpush1.bf16.msra.mxu0 0
      %3854 = vmatprep.subr.bf16.mxu0 0
      %3855 = vmatpush1.bf16.msra.mxu0 0
      %3856 = vmatprep.subr.bf16.mxu0 0
      %3857 = vmatpush1.bf16.msra.mxu0 0
      %3858 = vmatprep.subr.bf16.mxu0 0
      %3859 = vmatpush1.bf16.msra.mxu0 0
      %3860 = vmatprep.subr.bf16.mxu0 0
      %3861 = vmatpush1.bf16.msra.mxu0 0
      %3862 = vmatprep.subr.bf16.mxu0 0
      %3863 = vmatpush1.bf16.msra.mxu0 0
      %3864 = vmatprep.subr.bf16.mxu0 0
      %3865 = vmatpush1.bf16.msra.mxu0 0
      %3866 = vmatprep.mubr.bf16.mxu0 0
      %3867 = vmatmul.mubr.bf16.gmra.mrb[0].mxu0 %v3784
      %v3868 = vpop.f32.mrb[0].mxu0
      %v3869 = vadd.f32 0.0, %v3868
      %v3870 = vpop.f32.mrb[0].mxu0
      %v3871 = vpop.f32.mrb[0].mxu0
      %v3872 = vadd.f32 0.0, %v3871
      %v3873 = vpop.f32.mrb[0].mxu0
      %3874 = vmatprep.mubr.bf16.mxu0 0
      %3875 = vmatmul.mubr.bf16.gmra.mrb[0].mxu0 %v3787
      %v3876 = vpop.f32.mrb[0].mxu0
      %v3877 = vadd.f32 0.0, %v3876
      %v3878 = vpop.f32.mrb[0].mxu0
      %v3879 = vpop.f32.mrb[0].mxu0
      %v3880 = vadd.f32 0.0, %v3879
      %v3881 = vpop.f32.mrb[0].mxu0
      %3882 = vmatprep.mubr.bf16.mxu0 0
      %3883 = vmatmul.mubr.bf16.gmra.mrb[0].mxu0 %v3790
      %v3884 = vpop.f32.mrb[0].mxu0
      %v3885 = vadd.f32 0.0, %v3884
      %v3886 = vpop.f32.mrb[0].mxu0
      %v3887 = vpop.f32.mrb[0].mxu0
      %v3888 = vadd.f32 0.0, %v3887
      %v3889 = vpop.f32.mrb[0].mxu0
      %3890 = vmatprep.mubr.bf16.mxu0 0
      %3891 = vmatmul.mubr.bf16.gmra.mrb[0].mxu0 %v3793
      %v3892 = vpop.f32.mrb[0].mxu0
      %v3893 = vadd.f32 0.0, %v3892
      %v3894 = vpop.f32.mrb[0].mxu0
      %v3895 = vpop.f32.mrb[0].mxu0
      %v3896 = vadd.f32 0.0, %v3895
      %v3897 = vpop.f32.mrb[0].mxu0
      %3898 = vmatprep.mubr.bf16.mxu0 0
      %3899 = vmatmul.mubr.bf16.gmra.mrb[0].mxu0 %v3796
      %v3900 = vpop.f32.mrb[0].mxu0
      %v3901 = vadd.f32 0.0, %v3900
      %v3902 = vpop.f32.mrb[0].mxu0
      %v3903 = vpop.f32.mrb[0].mxu0
      %v3904 = vadd.f32 0.0, %v3903
      %v3905 = vpop.f32.mrb[0].mxu0
      %3906 = vmatprep.mubr.bf16.mxu0 0
      %3907 = vmatmul.mubr.bf16.gmra.mrb[0].mxu0 %v3799
      %v3908 = vpop.f32.mrb[0].mxu0
      %v3909 = vadd.f32 0.0, %v3908
      %v3910 = vpop.f32.mrb[0].mxu0
      %v3911 = vpop.f32.mrb[0].mxu0
      %v3912 = vadd.f32 0.0, %v3911
      %v3913 = vpop.f32.mrb[0].mxu0
      %3914 = vmatprep.mubr.bf16.mxu0 0
      %3915 = vmatmul.mubr.bf16.gmra.mrb[0].mxu0 %v3802
      %v3916 = vpop.f32.mrb[0].mxu0
      %v3917 = vadd.f32 0.0, %v3916
      %v3918 = vpop.f32.mrb[0].mxu0
      %v3919 = vpop.f32.mrb[0].mxu0
      %v3920 = vadd.f32 0.0, %v3919
      %v3921 = vpop.f32.mrb[0].mxu0
      %3922 = vmatprep.mubr.bf16.mxu0 0
      %3923 = vmatmul.mubr.bf16.gmra.mrb[0].mxu0 %v3805
      %v3924 = vpop.f32.mrb[0].mxu0
      %v3925 = vadd.f32 0.0, %v3924
      %v3926 = vpop.f32.mrb[0].mxu0
      %v3927 = vpop.f32.mrb[0].mxu0
      %v3928 = vadd.f32 0.0, %v3927
      %v3929 = vpop.f32.mrb[0].mxu0
      %3930 = vmatprep.mubr.bf16.mxu0 0
      %3931 = vmatmul.mubr.bf16.gmra.mrb[0].mxu0 %v3808
      %v3932 = vpop.f32.mrb[0].mxu0
      %v3933 = vadd.f32 0.0, %v3932
      %v3934 = vpop.f32.mrb[0].mxu0
      %v3935 = vpop.f32.mrb[0].mxu0
      %v3936 = vadd.f32 0.0, %v3935
      %v3937 = vpop.f32.mrb[0].mxu0
      %3938 = vmatprep.mubr.bf16.mxu0 0
      %3939 = vmatmul.mubr.bf16.gmra.mrb[0].mxu0 %v3811
      %v3940 = vpop.f32.mrb[0].mxu0
      %v3941 = vadd.f32 0.0, %v3940
      %v3942 = vpop.f32.mrb[0].mxu0
      %v3943 = vpop.f32.mrb[0].mxu0
      %v3944 = vadd.f32 0.0, %v3943
      %v3945 = vpop.f32.mrb[0].mxu0
      %3946 = vmatprep.mubr.bf16.mxu0 0
      %3947 = vmatmul.mubr.bf16.gmra.mrb[0].mxu0 %v3814
      %v3948 = vpop.f32.mrb[0].mxu0
      %v3949 = vadd.f32 0.0, %v3948
      %v3950 = vpop.f32.mrb[0].mxu0
      %v3951 = vpop.f32.mrb[0].mxu0
      %v3952 = vadd.f32 0.0, %v3951
      %v3953 = vpop.f32.mrb[0].mxu0
      %3954 = vmatprep.mubr.bf16.mxu0 0
      %3955 = vmatmul.mubr.bf16.gmra.mrb[0].mxu0 %v3817
      %v3956 = vpop.f32.mrb[0].mxu0
      %v3957 = vadd.f32 0.0, %v3956
      %v3958 = vpop.f32.mrb[0].mxu0
      %v3959 = vpop.f32.mrb[0].mxu0
      %v3960 = vadd.f32 0.0, %v3959
      %v3961 = vpop.f32.mrb[0].mxu0
      %3962 = vmatprep.mubr.bf16.mxu0 0
      %3963 = vmatmul.mubr.bf16.gmra.mrb[0].mxu0 %v3820
      %v3964 = vpop.f32.mrb[0].mxu0
      %v3965 = vadd.f32 0.0, %v3964
      %v3966 = vpop.f32.mrb[0].mxu0
      %v3967 = vpop.f32.mrb[0].mxu0
      %v3968 = vadd.f32 0.0, %v3967
      %v3969 = vpop.f32.mrb[0].mxu0
      %3970 = vmatprep.mubr.bf16.mxu0 0
      %3971 = vmatmul.mubr.bf16.gmra.mrb[0].mxu0 %v3823
      %v3972 = vpop.f32.mrb[0].mxu0
      %v3973 = vadd.f32 0.0, %v3972
      %v3974 = vpop.f32.mrb[0].mxu0
      %v3975 = vpop.f32.mrb[0].mxu0
      %v3976 = vadd.f32 0.0, %v3975
      %v3977 = vpop.f32.mrb[0].mxu0
      %3978 = vmatprep.mubr.bf16.mxu0 0
      %3979 = vmatmul.mubr.bf16.gmra.mrb[0].mxu0 %v3826
      %v3980 = vpop.f32.mrb[0].mxu0
      %v3981 = vadd.f32 0.0, %v3980
      %v3982 = vpop.f32.mrb[0].mxu0
      %v3983 = vpop.f32.mrb[0].mxu0
      %v3984 = vadd.f32 0.0, %v3983
      %v3985 = vpop.f32.mrb[0].mxu0
      %3986 = vmatprep.mubr.bf16.mxu0 0
      %3987 = vmatmul.mubr.bf16.gmra.mrb[0].mxu0 %v3829
      %v3988 = vpop.f32.mrb[0].mxu0
      %v3989 = vadd.f32 0.0, %v3988
      %v3990 = vpop.f32.mrb[0].mxu0
      %v3991 = vpop.f32.mrb[0].mxu0
      %v3992 = vadd.f32 0.0, %v3991
      %v3993 = vpop.f32.mrb[0].mxu0
      %3994 = vdwg.mxu0
      %v3995 = vadd.f32 %v2696, %v3869
      %v3996 = vadd.f32 %v2699, %v3872
      %v3997 = vadd.f32 %v2704, %v3877
      %v3998 = vadd.f32 %v2707, %v3880
      %v3999 = vadd.f32 %v2712, %v3885
      %v4000 = vadd.f32 %v2715, %v3888
      %v4001 = vadd.f32 %v2720, %v3893
      %v4002 = vadd.f32 %v2723, %v3896
      %v4003 = vadd.f32 %v2728, %v3901
      %v4004 = vadd.f32 %v2731, %v3904
      %v4005 = vadd.f32 %v2736, %v3909
      %v4006 = vadd.f32 %v2739, %v3912
      %v4007 = vadd.f32 %v2744, %v3917
      %v4008 = vadd.f32 %v2747, %v3920
      %v4009 = vadd.f32 %v2752, %v3925
      %v4010 = vadd.f32 %v2755, %v3928
      %v4011 = vadd.f32 %v2760, %v3933
      %v4012 = vadd.f32 %v2763, %v3936
      %v4013 = vadd.f32 %v2768, %v3941
      %v4014 = vadd.f32 %v2771, %v3944
      %v4015 = vadd.f32 %v2776, %v3949
      %v4016 = vadd.f32 %v2779, %v3952
      %v4017 = vadd.f32 %v2784, %v3957
      %v4018 = vadd.f32 %v2787, %v3960
      %v4019 = vadd.f32 %v2792, %v3965
      %v4020 = vadd.f32 %v2795, %v3968
      %v4021 = vadd.f32 %v2800, %v3973
      %v4022 = vadd.f32 %v2803, %v3976
      %v4023 = vadd.f32 %v2808, %v3981
      %v4024 = vadd.f32 %v2811, %v3984
      %v4025 = vadd.f32 %v2816, %v3989
      %v4026 = vadd.f32 %v2819, %v3992
      %v4028 = vshrl.u32 %v1540, 16
      %v4030 = vshll.u32 %v1540, 16
      %v4032 = vrot.slane %v4030, 1
      %v4033 = vor.u32 %v4028, %v4032
      %v4035 = vshll.u32 %v1541, 16
      %v4037 = vrot.slane %v4035, 1
      %v4038 = vsel %vm1572, %v4033, %v4037
      %v4039 = vshrl.u32 %v1541, 16
      %v4041 = vor.u32 %v4039, %v4037
      %v4043 = vshrl.u32 %v1542, 16
      %v4045 = vshll.u32 %v1542, 16
      %v4047 = vrot.slane %v4045, 1
      %v4048 = vor.u32 %v4043, %v4047
      %v4050 = vshll.u32 %v1543, 16
      %v4052 = vrot.slane %v4050, 1
      %v4053 = vsel %vm1572, %v4048, %v4052
      %v4054 = vshrl.u32 %v1543, 16
      %v4056 = vor.u32 %v4054, %v4052
      %v4058 = vshrl.u32 %v1544, 16
      %v4060 = vshll.u32 %v1544, 16
      %v4062 = vrot.slane %v4060, 1
      %v4063 = vor.u32 %v4058, %v4062
      %v4065 = vshll.u32 %v1545, 16
      %v4067 = vrot.slane %v4065, 1
      %v4068 = vsel %vm1572, %v4063, %v4067
      %v4069 = vshrl.u32 %v1545, 16
      %v4071 = vor.u32 %v4069, %v4067
      %v4073 = vshrl.u32 %v1546, 16
      %v4075 = vshll.u32 %v1546, 16
      %v4077 = vrot.slane %v4075, 1
      %v4078 = vor.u32 %v4073, %v4077
      %v4080 = vshll.u32 %v1547, 16
      %v4082 = vrot.slane %v4080, 1
      %v4083 = vsel %vm1572, %v4078, %v4082
      %v4084 = vshrl.u32 %v1547, 16
      %v4086 = vor.u32 %v4084, %v4082
      %v4088 = vshrl.u32 %v1548, 16
      %v4090 = vshll.u32 %v1548, 16
      %v4092 = vrot.slane %v4090, 1
      %v4093 = vor.u32 %v4088, %v4092
      %v4095 = vshll.u32 %v1549, 16
      %v4097 = vrot.slane %v4095, 1
      %v4098 = vsel %vm1572, %v4093, %v4097
      %v4099 = vshrl.u32 %v1549, 16
      %v4101 = vor.u32 %v4099, %v4097
      %v4103 = vshrl.u32 %v1550, 16
      %v4105 = vshll.u32 %v1550, 16
      %v4107 = vrot.slane %v4105, 1
      %v4108 = vor.u32 %v4103, %v4107
      %v4110 = vshll.u32 %v1551, 16
      %v4112 = vrot.slane %v4110, 1
      %v4113 = vsel %vm1572, %v4108, %v4112
      %v4114 = vshrl.u32 %v1551, 16
      %v4116 = vor.u32 %v4114, %v4112
      %v4118 = vshrl.u32 %v1552, 16
      %v4120 = vshll.u32 %v1552, 16
      %v4122 = vrot.slane %v4120, 1
      %v4123 = vor.u32 %v4118, %v4122
      %v4125 = vshll.u32 %v1553, 16
      %v4127 = vrot.slane %v4125, 1
      %v4128 = vsel %vm1572, %v4123, %v4127
      %v4129 = vshrl.u32 %v1553, 16
      %v4131 = vor.u32 %v4129, %v4127
      %v4133 = vshrl.u32 %v1554, 16
      %v4135 = vshll.u32 %v1554, 16
      %v4137 = vrot.slane %v4135, 1
      %v4138 = vor.u32 %v4133, %v4137
      %v4140 = vshll.u32 %v1555, 16
      %v4142 = vrot.slane %v4140, 1
      %v4143 = vsel %vm1572, %v4138, %v4142
      %v4144 = vshrl.u32 %v1555, 16
      %v4146 = vor.u32 %v4144, %v4142
      %v4148 = vshrl.u32 %v1556, 16
      %v4150 = vshll.u32 %v1556, 16
      %v4152 = vrot.slane %v4150, 1
      %v4153 = vor.u32 %v4148, %v4152
      %v4155 = vshll.u32 %v1557, 16
      %v4157 = vrot.slane %v4155, 1
      %v4158 = vsel %vm1572, %v4153, %v4157
      %v4159 = vshrl.u32 %v1557, 16
      %v4161 = vor.u32 %v4159, %v4157
      %v4163 = vshrl.u32 %v1558, 16
      %v4165 = vshll.u32 %v1558, 16
      %v4167 = vrot.slane %v4165, 1
      %v4168 = vor.u32 %v4163, %v4167
      %v4170 = vshll.u32 %v1559, 16
      %v4172 = vrot.slane %v4170, 1
      %v4173 = vsel %vm1572, %v4168, %v4172
      %v4174 = vshrl.u32 %v1559, 16
      %v4176 = vor.u32 %v4174, %v4172
      %v4178 = vshrl.u32 %v1560, 16
      %v4180 = vshll.u32 %v1560, 16
      %v4182 = vrot.slane %v4180, 1
      %v4183 = vor.u32 %v4178, %v4182
      %v4185 = vshll.u32 %v1561, 16
      %v4187 = vrot.slane %v4185, 1
      %v4188 = vsel %vm1572, %v4183, %v4187
      %v4189 = vshrl.u32 %v1561, 16
      %v4191 = vor.u32 %v4189, %v4187
      %v4193 = vshrl.u32 %v1562, 16
      %v4195 = vshll.u32 %v1562, 16
      %v4197 = vrot.slane %v4195, 1
      %v4198 = vor.u32 %v4193, %v4197
      %v4200 = vshll.u32 %v1563, 16
      %v4202 = vrot.slane %v4200, 1
      %v4203 = vsel %vm1572, %v4198, %v4202
      %v4204 = vshrl.u32 %v1563, 16
      %v4206 = vor.u32 %v4204, %v4202
      %v4208 = vshrl.u32 %v1564, 16
      %v4210 = vshll.u32 %v1564, 16
      %v4212 = vrot.slane %v4210, 1
      %v4213 = vor.u32 %v4208, %v4212
      %v4215 = vshll.u32 %v1565, 16
      %v4217 = vrot.slane %v4215, 1
      %v4218 = vsel %vm1572, %v4213, %v4217
      %v4219 = vshrl.u32 %v1565, 16
      %v4221 = vor.u32 %v4219, %v4217
      %v4223 = vshrl.u32 %v1566, 16
      %v4225 = vshll.u32 %v1566, 16
      %v4227 = vrot.slane %v4225, 1
      %v4228 = vor.u32 %v4223, %v4227
      %v4230 = vshll.u32 %v1567, 16
      %v4232 = vrot.slane %v4230, 1
      %v4233 = vsel %vm1572, %v4228, %v4232
      %v4234 = vshrl.u32 %v1567, 16
      %v4236 = vor.u32 %v4234, %v4232
      %v4238 = vshrl.u32 %v1568, 16
      %v4240 = vshll.u32 %v1568, 16
      %v4242 = vrot.slane %v4240, 1
      %v4243 = vor.u32 %v4238, %v4242
      %v4245 = vshll.u32 %v1569, 16
      %v4247 = vrot.slane %v4245, 1
      %v4248 = vsel %vm1572, %v4243, %v4247
      %v4249 = vshrl.u32 %v1569, 16
      %v4251 = vor.u32 %v4249, %v4247
      %v4253 = vshrl.u32 %v1570, 16
      %v4255 = vshll.u32 %v1570, 16
      %v4257 = vrot.slane %v4255, 1
      %v4258 = vor.u32 %v4253, %v4257
      %v4260 = vshll.u32 %v1571, 16
      %v4262 = vrot.slane %v4260, 1
      %v4263 = vsel %vm1572, %v4258, %v4262
      %v4264 = vshrl.u32 %v1571, 16
      %v4266 = vor.u32 %v4264, %v4262
      %v4299 = vmax.bf16 %v1540, %v4038
      %v4300 = vmax.bf16 %v1541, %v4041
      %v4301 = vmax.bf16 %v1542, %v4053
      %v4302 = vmax.bf16 %v1543, %v4056
      %v4303 = vmax.bf16 %v1544, %v4068
      %v4304 = vmax.bf16 %v1545, %v4071
      %v4305 = vmax.bf16 %v1546, %v4083
      %v4306 = vmax.bf16 %v1547, %v4086
      %v4307 = vmax.bf16 %v1548, %v4098
      %v4308 = vmax.bf16 %v1549, %v4101
      %v4309 = vmax.bf16 %v1550, %v4113
      %v4310 = vmax.bf16 %v1551, %v4116
      %v4311 = vmax.bf16 %v1552, %v4128
      %v4312 = vmax.bf16 %v1553, %v4131
      %v4313 = vmax.bf16 %v1554, %v4143
      %v4314 = vmax.bf16 %v1555, %v4146
      %v4315 = vmax.bf16 %v1556, %v4158
      %v4316 = vmax.bf16 %v1557, %v4161
      %v4317 = vmax.bf16 %v1558, %v4173
      %v4318 = vmax.bf16 %v1559, %v4176
      %v4319 = vmax.bf16 %v1560, %v4188
      %v4320 = vmax.bf16 %v1561, %v4191
      %v4321 = vmax.bf16 %v1562, %v4203
      %v4322 = vmax.bf16 %v1563, %v4206
      %v4323 = vmax.bf16 %v1564, %v4218
      %v4324 = vmax.bf16 %v1565, %v4221
      %v4325 = vmax.bf16 %v1566, %v4233
      %v4326 = vmax.bf16 %v1567, %v4236
      %v4327 = vmax.bf16 %v1568, %v4248
      %v4328 = vmax.bf16 %v1569, %v4251
      %v4329 = vmax.bf16 %v1570, %v4263
      %v4330 = vmax.bf16 %v1571, %v4266
      %v4363 = vrot.slane %v1540, 1
      %v4364 = vrot.slane %v1541, 1
      %v4365 = vsel %vm1909, %v4363, %v4364
      %v4366 = vrot.slane %v1542, 1
      %v4367 = vrot.slane %v1543, 1
      %v4368 = vsel %vm1909, %v4366, %v4367
      %v4369 = vrot.slane %v1544, 1
      %v4370 = vrot.slane %v1545, 1
      %v4371 = vsel %vm1909, %v4369, %v4370
      %v4372 = vrot.slane %v1546, 1
      %v4373 = vrot.slane %v1547, 1
      %v4374 = vsel %vm1909, %v4372, %v4373
      %v4375 = vrot.slane %v1548, 1
      %v4376 = vrot.slane %v1549, 1
      %v4377 = vsel %vm1909, %v4375, %v4376
      %v4378 = vrot.slane %v1550, 1
      %v4379 = vrot.slane %v1551, 1
      %v4380 = vsel %vm1909, %v4378, %v4379
      %v4381 = vrot.slane %v1552, 1
      %v4382 = vrot.slane %v1553, 1
      %v4383 = vsel %vm1909, %v4381, %v4382
      %v4384 = vrot.slane %v1554, 1
      %v4385 = vrot.slane %v1555, 1
      %v4386 = vsel %vm1909, %v4384, %v4385
      %v4387 = vrot.slane %v1556, 1
      %v4388 = vrot.slane %v1557, 1
      %v4389 = vsel %vm1909, %v4387, %v4388
      %v4390 = vrot.slane %v1558, 1
      %v4391 = vrot.slane %v1559, 1
      %v4392 = vsel %vm1909, %v4390, %v4391
      %v4393 = vrot.slane %v1560, 1
      %v4394 = vrot.slane %v1561, 1
      %v4395 = vsel %vm1909, %v4393, %v4394
      %v4396 = vrot.slane %v1562, 1
      %v4397 = vrot.slane %v1563, 1
      %v4398 = vsel %vm1909, %v4396, %v4397
      %v4399 = vrot.slane %v1564, 1
      %v4400 = vrot.slane %v1565, 1
      %v4401 = vsel %vm1909, %v4399, %v4400
      %v4402 = vrot.slane %v1566, 1
      %v4403 = vrot.slane %v1567, 1
      %v4404 = vsel %vm1909, %v4402, %v4403
      %v4405 = vrot.slane %v1568, 1
      %v4406 = vrot.slane %v1569, 1
      %v4407 = vsel %vm1909, %v4405, %v4406
      %v4408 = vrot.slane %v1570, 1
      %v4409 = vrot.slane %v1571, 1
      %v4410 = vsel %vm1909, %v4408, %v4409
      %v4443 = vmax.bf16 %v4299, %v4365
      %v4444 = vmax.bf16 %v4300, %v4364
      %v4445 = vmax.bf16 %v4301, %v4368
      %v4446 = vmax.bf16 %v4302, %v4367
      %v4447 = vmax.bf16 %v4303, %v4371
      %v4448 = vmax.bf16 %v4304, %v4370
      %v4449 = vmax.bf16 %v4305, %v4374
      %v4450 = vmax.bf16 %v4306, %v4373
      %v4451 = vmax.bf16 %v4307, %v4377
      %v4452 = vmax.bf16 %v4308, %v4376
      %v4453 = vmax.bf16 %v4309, %v4380
      %v4454 = vmax.bf16 %v4310, %v4379
      %v4455 = vmax.bf16 %v4311, %v4383
      %v4456 = vmax.bf16 %v4312, %v4382
      %v4457 = vmax.bf16 %v4313, %v4386
      %v4458 = vmax.bf16 %v4314, %v4385
      %v4459 = vmax.bf16 %v4315, %v4389
      %v4460 = vmax.bf16 %v4316, %v4388
      %v4461 = vmax.bf16 %v4317, %v4392
      %v4462 = vmax.bf16 %v4318, %v4391
      %v4463 = vmax.bf16 %v4319, %v4395
      %v4464 = vmax.bf16 %v4320, %v4394
      %v4465 = vmax.bf16 %v4321, %v4398
      %v4466 = vmax.bf16 %v4322, %v4397
      %v4467 = vmax.bf16 %v4323, %v4401
      %v4468 = vmax.bf16 %v4324, %v4400
      %v4469 = vmax.bf16 %v4325, %v4404
      %v4470 = vmax.bf16 %v4326, %v4403
      %v4471 = vmax.bf16 %v4327, %v4407
      %v4472 = vmax.bf16 %v4328, %v4406
      %v4473 = vmax.bf16 %v4329, %v4410
      %v4474 = vmax.bf16 %v4330, %v4409
      %v4475 = vrot.slane %v4028, 1
      %v4476 = vrot.slane %v4030, 2
      %v4477 = vor.u32 %v4475, %v4476
      %v4478 = vrot.slane %v4039, 1
      %v4479 = vrot.slane %v4035, 2
      %v4480 = vor.u32 %v4478, %v4479
      %v4481 = vsel %vm2022, %v4477, %v4480
      %v4482 = vrot.slane %v4043, 1
      %v4483 = vrot.slane %v4045, 2
      %v4484 = vor.u32 %v4482, %v4483
      %v4485 = vrot.slane %v4054, 1
      %v4486 = vrot.slane %v4050, 2
      %v4487 = vor.u32 %v4485, %v4486
      %v4488 = vsel %vm2022, %v4484, %v4487
      %v4489 = vrot.slane %v4058, 1
      %v4490 = vrot.slane %v4060, 2
      %v4491 = vor.u32 %v4489, %v4490
      %v4492 = vrot.slane %v4069, 1
      %v4493 = vrot.slane %v4065, 2
      %v4494 = vor.u32 %v4492, %v4493
      %v4495 = vsel %vm2022, %v4491, %v4494
      %v4496 = vrot.slane %v4073, 1
      %v4497 = vrot.slane %v4075, 2
      %v4498 = vor.u32 %v4496, %v4497
      %v4499 = vrot.slane %v4084, 1
      %v4500 = vrot.slane %v4080, 2
      %v4501 = vor.u32 %v4499, %v4500
      %v4502 = vsel %vm2022, %v4498, %v4501
      %v4503 = vrot.slane %v4088, 1
      %v4504 = vrot.slane %v4090, 2
      %v4505 = vor.u32 %v4503, %v4504
      %v4506 = vrot.slane %v4099, 1
      %v4507 = vrot.slane %v4095, 2
      %v4508 = vor.u32 %v4506, %v4507
      %v4509 = vsel %vm2022, %v4505, %v4508
      %v4510 = vrot.slane %v4103, 1
      %v4511 = vrot.slane %v4105, 2
      %v4512 = vor.u32 %v4510, %v4511
      %v4513 = vrot.slane %v4114, 1
      %v4514 = vrot.slane %v4110, 2
      %v4515 = vor.u32 %v4513, %v4514
      %v4516 = vsel %vm2022, %v4512, %v4515
      %v4517 = vrot.slane %v4118, 1
      %v4518 = vrot.slane %v4120, 2
      %v4519 = vor.u32 %v4517, %v4518
      %v4520 = vrot.slane %v4129, 1
      %v4521 = vrot.slane %v4125, 2
      %v4522 = vor.u32 %v4520, %v4521
      %v4523 = vsel %vm2022, %v4519, %v4522
      %v4524 = vrot.slane %v4133, 1
      %v4525 = vrot.slane %v4135, 2
      %v4526 = vor.u32 %v4524, %v4525
      %v4527 = vrot.slane %v4144, 1
      %v4528 = vrot.slane %v4140, 2
      %v4529 = vor.u32 %v4527, %v4528
      %v4530 = vsel %vm2022, %v4526, %v4529
      %v4531 = vrot.slane %v4148, 1
      %v4532 = vrot.slane %v4150, 2
      %v4533 = vor.u32 %v4531, %v4532
      %v4534 = vrot.slane %v4159, 1
      %v4535 = vrot.slane %v4155, 2
      %v4536 = vor.u32 %v4534, %v4535
      %v4537 = vsel %vm2022, %v4533, %v4536
      %v4538 = vrot.slane %v4163, 1
      %v4539 = vrot.slane %v4165, 2
      %v4540 = vor.u32 %v4538, %v4539
      %v4541 = vrot.slane %v4174, 1
      %v4542 = vrot.slane %v4170, 2
      %v4543 = vor.u32 %v4541, %v4542
      %v4544 = vsel %vm2022, %v4540, %v4543
      %v4545 = vrot.slane %v4178, 1
      %v4546 = vrot.slane %v4180, 2
      %v4547 = vor.u32 %v4545, %v4546
      %v4548 = vrot.slane %v4189, 1
      %v4549 = vrot.slane %v4185, 2
      %v4550 = vor.u32 %v4548, %v4549
      %v4551 = vsel %vm2022, %v4547, %v4550
      %v4552 = vrot.slane %v4193, 1
      %v4553 = vrot.slane %v4195, 2
      %v4554 = vor.u32 %v4552, %v4553
      %v4555 = vrot.slane %v4204, 1
      %v4556 = vrot.slane %v4200, 2
      %v4557 = vor.u32 %v4555, %v4556
      %v4558 = vsel %vm2022, %v4554, %v4557
      %v4559 = vrot.slane %v4208, 1
      %v4560 = vrot.slane %v4210, 2
      %v4561 = vor.u32 %v4559, %v4560
      %v4562 = vrot.slane %v4219, 1
      %v4563 = vrot.slane %v4215, 2
      %v4564 = vor.u32 %v4562, %v4563
      %v4565 = vsel %vm2022, %v4561, %v4564
      %v4566 = vrot.slane %v4223, 1
      %v4567 = vrot.slane %v4225, 2
      %v4568 = vor.u32 %v4566, %v4567
      %v4569 = vrot.slane %v4234, 1
      %v4570 = vrot.slane %v4230, 2
      %v4571 = vor.u32 %v4569, %v4570
      %v4572 = vsel %vm2022, %v4568, %v4571
      %v4573 = vrot.slane %v4238, 1
      %v4574 = vrot.slane %v4240, 2
      %v4575 = vor.u32 %v4573, %v4574
      %v4576 = vrot.slane %v4249, 1
      %v4577 = vrot.slane %v4245, 2
      %v4578 = vor.u32 %v4576, %v4577
      %v4579 = vsel %vm2022, %v4575, %v4578
      %v4580 = vrot.slane %v4253, 1
      %v4581 = vrot.slane %v4255, 2
      %v4582 = vor.u32 %v4580, %v4581
      %v4583 = vrot.slane %v4264, 1
      %v4584 = vrot.slane %v4260, 2
      %v4585 = vor.u32 %v4583, %v4584
      %v4586 = vsel %vm2022, %v4582, %v4585
      %v4619 = vmax.bf16 %v4443, %v4481
      %v4620 = vmax.bf16 %v4444, %v4480
      %v4621 = vmax.bf16 %v4445, %v4488
      %v4622 = vmax.bf16 %v4446, %v4487
      %v4623 = vmax.bf16 %v4447, %v4495
      %v4624 = vmax.bf16 %v4448, %v4494
      %v4625 = vmax.bf16 %v4449, %v4502
      %v4626 = vmax.bf16 %v4450, %v4501
      %v4627 = vmax.bf16 %v4451, %v4509
      %v4628 = vmax.bf16 %v4452, %v4508
      %v4629 = vmax.bf16 %v4453, %v4516
      %v4630 = vmax.bf16 %v4454, %v4515
      %v4631 = vmax.bf16 %v4455, %v4523
      %v4632 = vmax.bf16 %v4456, %v4522
      %v4633 = vmax.bf16 %v4457, %v4530
      %v4634 = vmax.bf16 %v4458, %v4529
      %v4635 = vmax.bf16 %v4459, %v4537
      %v4636 = vmax.bf16 %v4460, %v4536
      %v4637 = vmax.bf16 %v4461, %v4544
      %v4638 = vmax.bf16 %v4462, %v4543
      %v4639 = vmax.bf16 %v4463, %v4551
      %v4640 = vmax.bf16 %v4464, %v4550
      %v4641 = vmax.bf16 %v4465, %v4558
      %v4642 = vmax.bf16 %v4466, %v4557
      %v4643 = vmax.bf16 %v4467, %v4565
      %v4644 = vmax.bf16 %v4468, %v4564
      %v4645 = vmax.bf16 %v4469, %v4572
      %v4646 = vmax.bf16 %v4470, %v4571
      %v4647 = vmax.bf16 %v4471, %v4579
      %v4648 = vmax.bf16 %v4472, %v4578
      %v4649 = vmax.bf16 %v4473, %v4586
      %v4650 = vmax.bf16 %v4474, %v4585
      %v4651 = vrot.slane %v1540, 2
      %v4652 = vrot.slane %v1541, 2
      %v4653 = vsel %vm2199, %v4651, %v4652
      %v4654 = vrot.slane %v1542, 2
      %v4655 = vrot.slane %v1543, 2
      %v4656 = vsel %vm2199, %v4654, %v4655
      %v4657 = vrot.slane %v1544, 2
      %v4658 = vrot.slane %v1545, 2
      %v4659 = vsel %vm2199, %v4657, %v4658
      %v4660 = vrot.slane %v1546, 2
      %v4661 = vrot.slane %v1547, 2
      %v4662 = vsel %vm2199, %v4660, %v4661
      %v4663 = vrot.slane %v1548, 2
      %v4664 = vrot.slane %v1549, 2
      %v4665 = vsel %vm2199, %v4663, %v4664
      %v4666 = vrot.slane %v1550, 2
      %v4667 = vrot.slane %v1551, 2
      %v4668 = vsel %vm2199, %v4666, %v4667
      %v4669 = vrot.slane %v1552, 2
      %v4670 = vrot.slane %v1553, 2
      %v4671 = vsel %vm2199, %v4669, %v4670
      %v4672 = vrot.slane %v1554, 2
      %v4673 = vrot.slane %v1555, 2
      %v4674 = vsel %vm2199, %v4672, %v4673
      %v4675 = vrot.slane %v1556, 2
      %v4676 = vrot.slane %v1557, 2
      %v4677 = vsel %vm2199, %v4675, %v4676
      %v4678 = vrot.slane %v1558, 2
      %v4679 = vrot.slane %v1559, 2
      %v4680 = vsel %vm2199, %v4678, %v4679
      %v4681 = vrot.slane %v1560, 2
      %v4682 = vrot.slane %v1561, 2
      %v4683 = vsel %vm2199, %v4681, %v4682
      %v4684 = vrot.slane %v1562, 2
      %v4685 = vrot.slane %v1563, 2
      %v4686 = vsel %vm2199, %v4684, %v4685
      %v4687 = vrot.slane %v1564, 2
      %v4688 = vrot.slane %v1565, 2
      %v4689 = vsel %vm2199, %v4687, %v4688
      %v4690 = vrot.slane %v1566, 2
      %v4691 = vrot.slane %v1567, 2
      %v4692 = vsel %vm2199, %v4690, %v4691
      %v4693 = vrot.slane %v1568, 2
      %v4694 = vrot.slane %v1569, 2
      %v4695 = vsel %vm2199, %v4693, %v4694
      %v4696 = vrot.slane %v1570, 2
      %v4697 = vrot.slane %v1571, 2
      %v4698 = vsel %vm2199, %v4696, %v4697
      %v4731 = vmax.bf16 %v4619, %v4653
      %v4732 = vmax.bf16 %v4620, %v4652
      %v4733 = vmax.bf16 %v4621, %v4656
      %v4734 = vmax.bf16 %v4622, %v4655
      %v4735 = vmax.bf16 %v4623, %v4659
      %v4736 = vmax.bf16 %v4624, %v4658
      %v4737 = vmax.bf16 %v4625, %v4662
      %v4738 = vmax.bf16 %v4626, %v4661
      %v4739 = vmax.bf16 %v4627, %v4665
      %v4740 = vmax.bf16 %v4628, %v4664
      %v4741 = vmax.bf16 %v4629, %v4668
      %v4742 = vmax.bf16 %v4630, %v4667
      %v4743 = vmax.bf16 %v4631, %v4671
      %v4744 = vmax.bf16 %v4632, %v4670
      %v4745 = vmax.bf16 %v4633, %v4674
      %v4746 = vmax.bf16 %v4634, %v4673
      %v4747 = vmax.bf16 %v4635, %v4677
      %v4748 = vmax.bf16 %v4636, %v4676
      %v4749 = vmax.bf16 %v4637, %v4680
      %v4750 = vmax.bf16 %v4638, %v4679
      %v4751 = vmax.bf16 %v4639, %v4683
      %v4752 = vmax.bf16 %v4640, %v4682
      %v4753 = vmax.bf16 %v4641, %v4686
      %v4754 = vmax.bf16 %v4642, %v4685
      %v4755 = vmax.bf16 %v4643, %v4689
      %v4756 = vmax.bf16 %v4644, %v4688
      %v4757 = vmax.bf16 %v4645, %v4692
      %v4758 = vmax.bf16 %v4646, %v4691
      %v4759 = vmax.bf16 %v4647, %v4695
      %v4760 = vmax.bf16 %v4648, %v4694
      %v4761 = vmax.bf16 %v4649, %v4698
      %v4762 = vmax.bf16 %v4650, %v4697
      %v4795 = vrot.slane %v4731, 2
      %v4796 = vrot.slane %v4732, 2
      %v4797 = vsel %vm2199, %v4795, %v4796
      %v4798 = vrot.slane %v4733, 2
      %v4799 = vrot.slane %v4734, 2
      %v4800 = vsel %vm2199, %v4798, %v4799
      %v4801 = vrot.slane %v4735, 2
      %v4802 = vrot.slane %v4736, 2
      %v4803 = vsel %vm2199, %v4801, %v4802
      %v4804 = vrot.slane %v4737, 2
      %v4805 = vrot.slane %v4738, 2
      %v4806 = vsel %vm2199, %v4804, %v4805
      %v4807 = vrot.slane %v4739, 2
      %v4808 = vrot.slane %v4740, 2
      %v4809 = vsel %vm2199, %v4807, %v4808
      %v4810 = vrot.slane %v4741, 2
      %v4811 = vrot.slane %v4742, 2
      %v4812 = vsel %vm2199, %v4810, %v4811
      %v4813 = vrot.slane %v4743, 2
      %v4814 = vrot.slane %v4744, 2
      %v4815 = vsel %vm2199, %v4813, %v4814
      %v4816 = vrot.slane %v4745, 2
      %v4817 = vrot.slane %v4746, 2
      %v4818 = vsel %vm2199, %v4816, %v4817
      %v4819 = vrot.slane %v4747, 2
      %v4820 = vrot.slane %v4748, 2
      %v4821 = vsel %vm2199, %v4819, %v4820
      %v4822 = vrot.slane %v4749, 2
      %v4823 = vrot.slane %v4750, 2
      %v4824 = vsel %vm2199, %v4822, %v4823
      %v4825 = vrot.slane %v4751, 2
      %v4826 = vrot.slane %v4752, 2
      %v4827 = vsel %vm2199, %v4825, %v4826
      %v4828 = vrot.slane %v4753, 2
      %v4829 = vrot.slane %v4754, 2
      %v4830 = vsel %vm2199, %v4828, %v4829
      %v4831 = vrot.slane %v4755, 2
      %v4832 = vrot.slane %v4756, 2
      %v4833 = vsel %vm2199, %v4831, %v4832
      %v4834 = vrot.slane %v4757, 2
      %v4835 = vrot.slane %v4758, 2
      %v4836 = vsel %vm2199, %v4834, %v4835
      %v4837 = vrot.slane %v4759, 2
      %v4838 = vrot.slane %v4760, 2
      %v4839 = vsel %vm2199, %v4837, %v4838
      %v4840 = vrot.slane %v4761, 2
      %v4841 = vrot.slane %v4762, 2
      %v4842 = vsel %vm2199, %v4840, %v4841
      %v4875 = vmax.bf16 %v4731, %v4797
      %v4876 = vmax.bf16 %v4732, %v4796
      %v4877 = vmax.bf16 %v4733, %v4800
      %v4878 = vmax.bf16 %v4734, %v4799
      %v4879 = vmax.bf16 %v4735, %v4803
      %v4880 = vmax.bf16 %v4736, %v4802
      %v4881 = vmax.bf16 %v4737, %v4806
      %v4882 = vmax.bf16 %v4738, %v4805
      %v4883 = vmax.bf16 %v4739, %v4809
      %v4884 = vmax.bf16 %v4740, %v4808
      %v4885 = vmax.bf16 %v4741, %v4812
      %v4886 = vmax.bf16 %v4742, %v4811
      %v4887 = vmax.bf16 %v4743, %v4815
      %v4888 = vmax.bf16 %v4744, %v4814
      %v4889 = vmax.bf16 %v4745, %v4818
      %v4890 = vmax.bf16 %v4746, %v4817
      %v4891 = vmax.bf16 %v4747, %v4821
      %v4892 = vmax.bf16 %v4748, %v4820
      %v4893 = vmax.bf16 %v4749, %v4824
      %v4894 = vmax.bf16 %v4750, %v4823
      %v4895 = vmax.bf16 %v4751, %v4827
      %v4896 = vmax.bf16 %v4752, %v4826
      %v4897 = vmax.bf16 %v4753, %v4830
      %v4898 = vmax.bf16 %v4754, %v4829
      %v4899 = vmax.bf16 %v4755, %v4833
      %v4900 = vmax.bf16 %v4756, %v4832
      %v4901 = vmax.bf16 %v4757, %v4836
      %v4902 = vmax.bf16 %v4758, %v4835
      %v4903 = vmax.bf16 %v4759, %v4839
      %v4904 = vmax.bf16 %v4760, %v4838
      %v4905 = vmax.bf16 %v4761, %v4842
      %v4906 = vmax.bf16 %v4762, %v4841
      %vm4907 = vcmask 1043456
      %v4908 = vrot.slane %v4731, 4
      %v4909 = vrot.slane %v4732, 4
      %v4910 = vsel %vm4907, %v4908, %v4909
      %v4911 = vrot.slane %v4733, 4
      %v4912 = vrot.slane %v4734, 4
      %v4913 = vsel %vm4907, %v4911, %v4912
      %v4914 = vrot.slane %v4735, 4
      %v4915 = vrot.slane %v4736, 4
      %v4916 = vsel %vm4907, %v4914, %v4915
      %v4917 = vrot.slane %v4737, 4
      %v4918 = vrot.slane %v4738, 4
      %v4919 = vsel %vm4907, %v4917, %v4918
      %v4920 = vrot.slane %v4739, 4
      %v4921 = vrot.slane %v4740, 4
      %v4922 = vsel %vm4907, %v4920, %v4921
      %v4923 = vrot.slane %v4741, 4
      %v4924 = vrot.slane %v4742, 4
      %v4925 = vsel %vm4907, %v4923, %v4924
      %v4926 = vrot.slane %v4743, 4
      %v4927 = vrot.slane %v4744, 4
      %v4928 = vsel %vm4907, %v4926, %v4927
      %v4929 = vrot.slane %v4745, 4
      %v4930 = vrot.slane %v4746, 4
      %v4931 = vsel %vm4907, %v4929, %v4930
      %v4932 = vrot.slane %v4747, 4
      %v4933 = vrot.slane %v4748, 4
      %v4934 = vsel %vm4907, %v4932, %v4933
      %v4935 = vrot.slane %v4749, 4
      %v4936 = vrot.slane %v4750, 4
      %v4937 = vsel %vm4907, %v4935, %v4936
      %v4938 = vrot.slane %v4751, 4
      %v4939 = vrot.slane %v4752, 4
      %v4940 = vsel %vm4907, %v4938, %v4939
      %v4941 = vrot.slane %v4753, 4
      %v4942 = vrot.slane %v4754, 4
      %v4943 = vsel %vm4907, %v4941, %v4942
      %v4944 = vrot.slane %v4755, 4
      %v4945 = vrot.slane %v4756, 4
      %v4946 = vsel %vm4907, %v4944, %v4945
      %v4947 = vrot.slane %v4757, 4
      %v4948 = vrot.slane %v4758, 4
      %v4949 = vsel %vm4907, %v4947, %v4948
      %v4950 = vrot.slane %v4759, 4
      %v4951 = vrot.slane %v4760, 4
      %v4952 = vsel %vm4907, %v4950, %v4951
      %v4953 = vrot.slane %v4761, 4
      %v4954 = vrot.slane %v4762, 4
      %v4955 = vsel %vm4907, %v4953, %v4954
      %v4988 = vmax.bf16 %v4875, %v4910
      %v4989 = vmax.bf16 %v4876, %v4909
      %v4990 = vmax.bf16 %v4877, %v4913
      %v4991 = vmax.bf16 %v4878, %v4912
      %v4992 = vmax.bf16 %v4879, %v4916
      %v4993 = vmax.bf16 %v4880, %v4915
      %v4994 = vmax.bf16 %v4881, %v4919
      %v4995 = vmax.bf16 %v4882, %v4918
      %v4996 = vmax.bf16 %v4883, %v4922
      %v4997 = vmax.bf16 %v4884, %v4921
      %v4998 = vmax.bf16 %v4885, %v4925
      %v4999 = vmax.bf16 %v4886, %v4924
      %v5000 = vmax.bf16 %v4887, %v4928
      %v5001 = vmax.bf16 %v4888, %v4927
      %v5002 = vmax.bf16 %v4889, %v4931
      %v5003 = vmax.bf16 %v4890, %v4930
      %v5004 = vmax.bf16 %v4891, %v4934
      %v5005 = vmax.bf16 %v4892, %v4933
      %v5006 = vmax.bf16 %v4893, %v4937
      %v5007 = vmax.bf16 %v4894, %v4936
      %v5008 = vmax.bf16 %v4895, %v4940
      %v5009 = vmax.bf16 %v4896, %v4939
      %v5010 = vmax.bf16 %v4897, %v4943
      %v5011 = vmax.bf16 %v4898, %v4942
      %v5012 = vmax.bf16 %v4899, %v4946
      %v5013 = vmax.bf16 %v4900, %v4945
      %v5014 = vmax.bf16 %v4901, %v4949
      %v5015 = vmax.bf16 %v4902, %v4948
      %v5016 = vmax.bf16 %v4903, %v4952
      %v5017 = vmax.bf16 %v4904, %v4951
      %v5018 = vmax.bf16 %v4905, %v4955
      %v5019 = vmax.bf16 %v4906, %v4954
      %v5052 = vrot.slane %v4988, 1
      %v5053 = vrot.slane %v4989, 1
      %v5054 = vsel %vm1909, %v5052, %v5053
      %v5055 = vrot.slane %v4990, 1
      %v5056 = vrot.slane %v4991, 1
      %v5057 = vsel %vm1909, %v5055, %v5056
      %v5058 = vrot.slane %v4992, 1
      %v5059 = vrot.slane %v4993, 1
      %v5060 = vsel %vm1909, %v5058, %v5059
      %v5061 = vrot.slane %v4994, 1
      %v5062 = vrot.slane %v4995, 1
      %v5063 = vsel %vm1909, %v5061, %v5062
      %v5064 = vrot.slane %v4996, 1
      %v5065 = vrot.slane %v4997, 1
      %v5066 = vsel %vm1909, %v5064, %v5065
      %v5067 = vrot.slane %v4998, 1
      %v5068 = vrot.slane %v4999, 1
      %v5069 = vsel %vm1909, %v5067, %v5068
      %v5070 = vrot.slane %v5000, 1
      %v5071 = vrot.slane %v5001, 1
      %v5072 = vsel %vm1909, %v5070, %v5071
      %v5073 = vrot.slane %v5002, 1
      %v5074 = vrot.slane %v5003, 1
      %v5075 = vsel %vm1909, %v5073, %v5074
      %v5076 = vrot.slane %v5004, 1
      %v5077 = vrot.slane %v5005, 1
      %v5078 = vsel %vm1909, %v5076, %v5077
      %v5079 = vrot.slane %v5006, 1
      %v5080 = vrot.slane %v5007, 1
      %v5081 = vsel %vm1909, %v5079, %v5080
      %v5082 = vrot.slane %v5008, 1
      %v5083 = vrot.slane %v5009, 1
      %v5084 = vsel %vm1909, %v5082, %v5083
      %v5085 = vrot.slane %v5010, 1
      %v5086 = vrot.slane %v5011, 1
      %v5087 = vsel %vm1909, %v5085, %v5086
      %v5088 = vrot.slane %v5012, 1
      %v5089 = vrot.slane %v5013, 1
      %v5090 = vsel %vm1909, %v5088, %v5089
      %v5091 = vrot.slane %v5014, 1
      %v5092 = vrot.slane %v5015, 1
      %v5093 = vsel %vm1909, %v5091, %v5092
      %v5094 = vrot.slane %v5016, 1
      %v5095 = vrot.slane %v5017, 1
      %v5096 = vsel %vm1909, %v5094, %v5095
      %v5097 = vrot.slane %v5018, 1
      %v5098 = vrot.slane %v5019, 1
      %v5099 = vsel %vm1909, %v5097, %v5098
      %v5100 = vrot.slane %v2395, 3
      %v5102 = vsel %vm927, %v5054, 0
      %v5105 = vsel %vm927, %v5057, 0
      %v5108 = vsel %vm927, %v5060, 0
      %v5111 = vsel %vm927, %v5063, 0
      %v5114 = vsel %vm927, %v5066, 0
      %v5117 = vsel %vm927, %v5069, 0
      %v5120 = vsel %vm927, %v5072, 0
      %v5123 = vsel %vm927, %v5075, 0
      %v5126 = vsel %vm927, %v5078, 0
      %v5129 = vsel %vm927, %v5081, 0
      %v5132 = vsel %vm927, %v5084, 0
      %v5135 = vsel %vm927, %v5087, 0
      %v5138 = vsel %vm927, %v5090, 0
      %v5141 = vsel %vm927, %v5093, 0
      %v5144 = vsel %vm927, %v5096, 0
      %v5147 = vsel %vm927, %v5099, 0
      %v5150 = vsel %vm2445, %v5100, 0
      %5152 = vmatprep.subr.bf16.mxu0 0
      %5153 = vmatpush1.bf16.msra.mxu0 %v5150
      %5154 = vmatprep.subr.bf16.mxu0 0
      %5155 = vmatpush1.bf16.msra.mxu0 0
      %5156 = vmatprep.subr.bf16.mxu0 0
      %5157 = vmatpush1.bf16.msra.mxu0 0
      %5158 = vmatprep.subr.bf16.mxu0 0
      %5159 = vmatpush1.bf16.msra.mxu0 0
      %5160 = vmatprep.subr.bf16.mxu0 0
      %5161 = vmatpush1.bf16.msra.mxu0 0
      %5162 = vmatprep.subr.bf16.mxu0 0
      %5163 = vmatpush1.bf16.msra.mxu0 0
      %5164 = vmatprep.subr.bf16.mxu0 0
      %5165 = vmatpush1.bf16.msra.mxu0 0
      %5166 = vmatprep.subr.bf16.mxu0 0
      %5167 = vmatpush1.bf16.msra.mxu0 0
      %5168 = vmatprep.subr.bf16.mxu0 0
      %5169 = vmatpush1.bf16.msra.mxu0 0
      %5170 = vmatprep.subr.bf16.mxu0 0
      %5171 = vmatpush1.bf16.msra.mxu0 0
      %5172 = vmatprep.subr.bf16.mxu0 0
      %5173 = vmatpush1.bf16.msra.mxu0 0
      %5174 = vmatprep.subr.bf16.mxu0 0
      %5175 = vmatpush1.bf16.msra.mxu0 0
      %5176 = vmatprep.subr.bf16.mxu0 0
      %5177 = vmatpush1.bf16.msra.mxu0 0
      %5178 = vmatprep.subr.bf16.mxu0 0
      %5179 = vmatpush1.bf16.msra.mxu0 0
      %5180 = vmatprep.subr.bf16.mxu0 0
      %5181 = vmatpush1.bf16.msra.mxu0 0
      %5182 = vmatprep.subr.bf16.mxu0 0
      %5183 = vmatpush1.bf16.msra.mxu0 0
      %5184 = vmatprep.mubr.bf16.mxu0 0
      %5185 = vmatmul.mubr.bf16.gmra.mrb[0].mxu0 %v5102
      %v5186 = vpop.f32.mrb[0].mxu0
      %v5187 = vadd.f32 0.0, %v5186
      %v5188 = vpop.f32.mrb[0].mxu0
      %v5189 = vpop.f32.mrb[0].mxu0
      %v5190 = vadd.f32 0.0, %v5189
      %v5191 = vpop.f32.mrb[0].mxu0
      %5192 = vmatprep.mubr.bf16.mxu0 0
      %5193 = vmatmul.mubr.bf16.gmra.mrb[0].mxu0 %v5105
      %v5194 = vpop.f32.mrb[0].mxu0
      %v5195 = vadd.f32 0.0, %v5194
      %v5196 = vpop.f32.mrb[0].mxu0
      %v5197 = vpop.f32.mrb[0].mxu0
      %v5198 = vadd.f32 0.0, %v5197
      %v5199 = vpop.f32.mrb[0].mxu0
      %5200 = vmatprep.mubr.bf16.mxu0 0
      %5201 = vmatmul.mubr.bf16.gmra.mrb[0].mxu0 %v5108
      %v5202 = vpop.f32.mrb[0].mxu0
      %v5203 = vadd.f32 0.0, %v5202
      %v5204 = vpop.f32.mrb[0].mxu0
      %v5205 = vpop.f32.mrb[0].mxu0
      %v5206 = vadd.f32 0.0, %v5205
      %v5207 = vpop.f32.mrb[0].mxu0
      %5208 = vmatprep.mubr.bf16.mxu0 0
      %5209 = vmatmul.mubr.bf16.gmra.mrb[0].mxu0 %v5111
      %v5210 = vpop.f32.mrb[0].mxu0
      %v5211 = vadd.f32 0.0, %v5210
      %v5212 = vpop.f32.mrb[0].mxu0
      %v5213 = vpop.f32.mrb[0].mxu0
      %v5214 = vadd.f32 0.0, %v5213
      %v5215 = vpop.f32.mrb[0].mxu0
      %5216 = vmatprep.mubr.bf16.mxu0 0
      %5217 = vmatmul.mubr.bf16.gmra.mrb[0].mxu0 %v5114
      %v5218 = vpop.f32.mrb[0].mxu0
      %v5219 = vadd.f32 0.0, %v5218
      %v5220 = vpop.f32.mrb[0].mxu0
      %v5221 = vpop.f32.mrb[0].mxu0
      %v5222 = vadd.f32 0.0, %v5221
      %v5223 = vpop.f32.mrb[0].mxu0
      %5224 = vmatprep.mubr.bf16.mxu0 0
      %5225 = vmatmul.mubr.bf16.gmra.mrb[0].mxu0 %v5117
      %v5226 = vpop.f32.mrb[0].mxu0
      %v5227 = vadd.f32 0.0, %v5226
      %v5228 = vpop.f32.mrb[0].mxu0
      %v5229 = vpop.f32.mrb[0].mxu0
      %v5230 = vadd.f32 0.0, %v5229
      %v5231 = vpop.f32.mrb[0].mxu0
      %5232 = vmatprep.mubr.bf16.mxu0 0
      %5233 = vmatmul.mubr.bf16.gmra.mrb[0].mxu0 %v5120
      %v5234 = vpop.f32.mrb[0].mxu0
      %v5235 = vadd.f32 0.0, %v5234
      %v5236 = vpop.f32.mrb[0].mxu0
      %v5237 = vpop.f32.mrb[0].mxu0
      %v5238 = vadd.f32 0.0, %v5237
      %v5239 = vpop.f32.mrb[0].mxu0
      %5240 = vmatprep.mubr.bf16.mxu0 0
      %5241 = vmatmul.mubr.bf16.gmra.mrb[0].mxu0 %v5123
      %v5242 = vpop.f32.mrb[0].mxu0
      %v5243 = vadd.f32 0.0, %v5242
      %v5244 = vpop.f32.mrb[0].mxu0
      %v5245 = vpop.f32.mrb[0].mxu0
      %v5246 = vadd.f32 0.0, %v5245
      %v5247 = vpop.f32.mrb[0].mxu0
      %5248 = vmatprep.mubr.bf16.mxu0 0
      %5249 = vmatmul.mubr.bf16.gmra.mrb[0].mxu0 %v5126
      %v5250 = vpop.f32.mrb[0].mxu0
      %v5251 = vadd.f32 0.0, %v5250
      %v5252 = vpop.f32.mrb[0].mxu0
      %v5253 = vpop.f32.mrb[0].mxu0
      %v5254 = vadd.f32 0.0, %v5253
      %v5255 = vpop.f32.mrb[0].mxu0
      %5256 = vmatprep.mubr.bf16.mxu0 0
      %5257 = vmatmul.mubr.bf16.gmra.mrb[0].mxu0 %v5129
      %v5258 = vpop.f32.mrb[0].mxu0
      %v5259 = vadd.f32 0.0, %v5258
      %v5260 = vpop.f32.mrb[0].mxu0
      %v5261 = vpop.f32.mrb[0].mxu0
      %v5262 = vadd.f32 0.0, %v5261
      %v5263 = vpop.f32.mrb[0].mxu0
      %5264 = vmatprep.mubr.bf16.mxu0 0
      %5265 = vmatmul.mubr.bf16.gmra.mrb[0].mxu0 %v5132
      %v5266 = vpop.f32.mrb[0].mxu0
      %v5267 = vadd.f32 0.0, %v5266
      %v5268 = vpop.f32.mrb[0].mxu0
      %v5269 = vpop.f32.mrb[0].mxu0
      %v5270 = vadd.f32 0.0, %v5269
      %v5271 = vpop.f32.mrb[0].mxu0
      %5272 = vmatprep.mubr.bf16.mxu0 0
      %5273 = vmatmul.mubr.bf16.gmra.mrb[0].mxu0 %v5135
      %v5274 = vpop.f32.mrb[0].mxu0
      %v5275 = vadd.f32 0.0, %v5274
      %v5276 = vpop.f32.mrb[0].mxu0
      %v5277 = vpop.f32.mrb[0].mxu0
      %v5278 = vadd.f32 0.0, %v5277
      %v5279 = vpop.f32.mrb[0].mxu0
      %5280 = vmatprep.mubr.bf16.mxu0 0
      %5281 = vmatmul.mubr.bf16.gmra.mrb[0].mxu0 %v5138
      %v5282 = vpop.f32.mrb[0].mxu0
      %v5283 = vadd.f32 0.0, %v5282
      %v5284 = vpop.f32.mrb[0].mxu0
      %v5285 = vpop.f32.mrb[0].mxu0
      %v5286 = vadd.f32 0.0, %v5285
      %v5287 = vpop.f32.mrb[0].mxu0
      %5288 = vmatprep.mubr.bf16.mxu0 0
      %5289 = vmatmul.mubr.bf16.gmra.mrb[0].mxu0 %v5141
      %v5290 = vpop.f32.mrb[0].mxu0
      %v5291 = vadd.f32 0.0, %v5290
      %v5292 = vpop.f32.mrb[0].mxu0
      %v5293 = vpop.f32.mrb[0].mxu0
      %v5294 = vadd.f32 0.0, %v5293
      %v5295 = vpop.f32.mrb[0].mxu0
      %5296 = vmatprep.mubr.bf16.mxu0 0
      %5297 = vmatmul.mubr.bf16.gmra.mrb[0].mxu0 %v5144
      %v5298 = vpop.f32.mrb[0].mxu0
      %v5299 = vadd.f32 0.0, %v5298
      %v5300 = vpop.f32.mrb[0].mxu0
      %v5301 = vpop.f32.mrb[0].mxu0
      %v5302 = vadd.f32 0.0, %v5301
      %v5303 = vpop.f32.mrb[0].mxu0
      %5304 = vmatprep.mubr.bf16.mxu0 0
      %5305 = vmatmul.mubr.bf16.gmra.mrb[0].mxu0 %v5147
      %v5306 = vpop.f32.mrb[0].mxu0
      %v5307 = vadd.f32 0.0, %v5306
      %v5308 = vpop.f32.mrb[0].mxu0
      %v5309 = vpop.f32.mrb[0].mxu0
      %v5310 = vadd.f32 0.0, %v5309
      %v5311 = vpop.f32.mrb[0].mxu0
      %5312 = vdwg.mxu0
      %v5313 = vadd.f32 %v3995, %v5187
      %v5314 = vadd.f32 %v3996, %v5190
      %v5315 = vadd.f32 %v3997, %v5195
      %v5316 = vadd.f32 %v3998, %v5198
      %v5317 = vadd.f32 %v3999, %v5203
      %v5318 = vadd.f32 %v4000, %v5206
      %v5319 = vadd.f32 %v4001, %v5211
      %v5320 = vadd.f32 %v4002, %v5214
      %v5321 = vadd.f32 %v4003, %v5219
      %v5322 = vadd.f32 %v4004, %v5222
      %v5323 = vadd.f32 %v4005, %v5227
      %v5324 = vadd.f32 %v4006, %v5230
      %v5325 = vadd.f32 %v4007, %v5235
      %v5326 = vadd.f32 %v4008, %v5238
      %v5327 = vadd.f32 %v4009, %v5243
      %v5328 = vadd.f32 %v4010, %v5246
      %v5329 = vadd.f32 %v4011, %v5251
      %v5330 = vadd.f32 %v4012, %v5254
      %v5331 = vadd.f32 %v4013, %v5259
      %v5332 = vadd.f32 %v4014, %v5262
      %v5333 = vadd.f32 %v4015, %v5267
      %v5334 = vadd.f32 %v4016, %v5270
      %v5335 = vadd.f32 %v4017, %v5275
      %v5336 = vadd.f32 %v4018, %v5278
      %v5337 = vadd.f32 %v4019, %v5283
      %v5338 = vadd.f32 %v4020, %v5286
      %v5339 = vadd.f32 %v4021, %v5291
      %v5340 = vadd.f32 %v4022, %v5294
      %v5341 = vadd.f32 %v4023, %v5299
      %v5342 = vadd.f32 %v4024, %v5302
      %v5343 = vadd.f32 %v4025, %v5307
      %v5344 = vadd.f32 %v4026, %v5310
      %v5345 = vld [vmem:[%s5] sm:$0x1]
      %v5347 = vlaneseq
      %v5348 = vshrl.u32 %v5347, 7
      %v5349 = vsub.s32 0, %v5348
      %v5350 = vrot.slane %v5345, %v5349
      %v5352 = vmul.f32 %v5313, %v5350
      %v5353 = vmul.f32 %v5314, %v5350
      %v5354 = vmul.f32 %v5315, %v5350
      %v5355 = vmul.f32 %v5316, %v5350
      %v5356 = vmul.f32 %v5317, %v5350
      %v5357 = vmul.f32 %v5318, %v5350
      %v5358 = vmul.f32 %v5319, %v5350
      %v5359 = vmul.f32 %v5320, %v5350
      %v5360 = vmul.f32 %v5321, %v5350
      %v5361 = vmul.f32 %v5322, %v5350
      %v5362 = vmul.f32 %v5323, %v5350
      %v5363 = vmul.f32 %v5324, %v5350
      %v5364 = vmul.f32 %v5325, %v5350
      %v5365 = vmul.f32 %v5326, %v5350
      %v5366 = vmul.f32 %v5327, %v5350
      %v5367 = vmul.f32 %v5328, %v5350
      %v5368 = vmul.f32 %v5329, %v5350
      %v5369 = vmul.f32 %v5330, %v5350
      %v5370 = vmul.f32 %v5331, %v5350
      %v5371 = vmul.f32 %v5332, %v5350
      %v5372 = vmul.f32 %v5333, %v5350
      %v5373 = vmul.f32 %v5334, %v5350
      %v5374 = vmul.f32 %v5335, %v5350
      %v5375 = vmul.f32 %v5336, %v5350
      %v5376 = vmul.f32 %v5337, %v5350
      %v5377 = vmul.f32 %v5338, %v5350
      %v5378 = vmul.f32 %v5339, %v5350
      %v5379 = vmul.f32 %v5340, %v5350
      %v5380 = vmul.f32 %v5341, %v5350
      %v5381 = vmul.f32 %v5342, %v5350
      %v5382 = vmul.f32 %v5343, %v5350
      %v5383 = vmul.f32 %v5344, %v5350
      %v5384 = vld [vmem:[%s6] sm:$0x1]
      %v5386 = vlaneseq
      %v5387 = vshrl.u32 %v5386, 7
      %v5388 = vsub.s32 0, %v5387
      %v5389 = vrot.slane %v5384, %v5388
      %v5391 = vadd.f32 %v5352, %v5389
      %v5392 = vadd.f32 %v5353, %v5389
      %v5393 = vadd.f32 %v5354, %v5389
      %v5394 = vadd.f32 %v5355, %v5389
      %v5395 = vadd.f32 %v5356, %v5389
      %v5396 = vadd.f32 %v5357, %v5389
      %v5397 = vadd.f32 %v5358, %v5389
      %v5398 = vadd.f32 %v5359, %v5389
      %v5399 = vadd.f32 %v5360, %v5389
      %v5400 = vadd.f32 %v5361, %v5389
      %v5401 = vadd.f32 %v5362, %v5389
      %v5402 = vadd.f32 %v5363, %v5389
      %v5403 = vadd.f32 %v5364, %v5389
      %v5404 = vadd.f32 %v5365, %v5389
      %v5405 = vadd.f32 %v5366, %v5389
      %v5406 = vadd.f32 %v5367, %v5389
      %v5407 = vadd.f32 %v5368, %v5389
      %v5408 = vadd.f32 %v5369, %v5389
      %v5409 = vadd.f32 %v5370, %v5389
      %v5410 = vadd.f32 %v5371, %v5389
      %v5411 = vadd.f32 %v5372, %v5389
      %v5412 = vadd.f32 %v5373, %v5389
      %v5413 = vadd.f32 %v5374, %v5389
      %v5414 = vadd.f32 %v5375, %v5389
      %v5415 = vadd.f32 %v5376, %v5389
      %v5416 = vadd.f32 %v5377, %v5389
      %v5417 = vadd.f32 %v5378, %v5389
      %v5418 = vadd.f32 %v5379, %v5389
      %v5419 = vadd.f32 %v5380, %v5389
      %v5420 = vadd.f32 %v5381, %v5389
      %v5421 = vadd.f32 %v5382, %v5389
      %v5422 = vadd.f32 %v5383, %v5389
      %v5423 = vxor.u32 %v5391, 2147483648
      %v5424 = vxor.u32 %v5392, 2147483648
      %v5425 = vxor.u32 %v5393, 2147483648
      %v5426 = vxor.u32 %v5394, 2147483648
      %v5427 = vxor.u32 %v5395, 2147483648
      %v5428 = vxor.u32 %v5396, 2147483648
      %v5429 = vxor.u32 %v5397, 2147483648
      %v5430 = vxor.u32 %v5398, 2147483648
      %v5431 = vxor.u32 %v5399, 2147483648
      %v5432 = vxor.u32 %v5400, 2147483648
      %v5433 = vxor.u32 %v5401, 2147483648
      %v5434 = vxor.u32 %v5402, 2147483648
      %v5435 = vxor.u32 %v5403, 2147483648
      %v5436 = vxor.u32 %v5404, 2147483648
      %v5437 = vxor.u32 %v5405, 2147483648
      %v5438 = vxor.u32 %v5406, 2147483648
      %v5439 = vxor.u32 %v5407, 2147483648
      %v5440 = vxor.u32 %v5408, 2147483648
      %v5441 = vxor.u32 %v5409, 2147483648
      %v5442 = vxor.u32 %v5410, 2147483648
      %v5443 = vxor.u32 %v5411, 2147483648
      %v5444 = vxor.u32 %v5412, 2147483648
      %v5445 = vxor.u32 %v5413, 2147483648
      %v5446 = vxor.u32 %v5414, 2147483648
      %v5447 = vxor.u32 %v5415, 2147483648
      %v5448 = vxor.u32 %v5416, 2147483648
      %v5449 = vxor.u32 %v5417, 2147483648
      %v5450 = vxor.u32 %v5418, 2147483648
      %v5451 = vxor.u32 %v5419, 2147483648
      %v5452 = vxor.u32 %v5420, 2147483648
      %v5453 = vxor.u32 %v5421, 2147483648
      %v5454 = vxor.u32 %v5422, 2147483648
      %v5455 = vmul.f32 %v5423, 1.442695
      %v5456 = vpow.pop %v5455
      %v5457 = vmul.f32 %v5424, 1.442695
      %v5458 = vpow.pop %v5457
      %v5459 = vmul.f32 %v5425, 1.442695
      %v5460 = vpow.pop %v5459
      %v5461 = vmul.f32 %v5426, 1.442695
      %v5462 = vpow.pop %v5461
      %v5463 = vmul.f32 %v5427, 1.442695
      %v5464 = vpow.pop %v5463
      %v5465 = vmul.f32 %v5428, 1.442695
      %v5466 = vpow.pop %v5465
      %v5467 = vmul.f32 %v5429, 1.442695
      %v5468 = vpow.pop %v5467
      %v5469 = vmul.f32 %v5430, 1.442695
      %v5470 = vpow.pop %v5469
      %v5471 = vmul.f32 %v5431, 1.442695
      %v5472 = vpow.pop %v5471
      %v5473 = vmul.f32 %v5432, 1.442695
      %v5474 = vpow.pop %v5473
      %v5475 = vmul.f32 %v5433, 1.442695
      %v5476 = vpow.pop %v5475
      %v5477 = vmul.f32 %v5434, 1.442695
      %v5478 = vpow.pop %v5477
      %v5479 = vmul.f32 %v5435, 1.442695
      %v5480 = vpow.pop %v5479
      %v5481 = vmul.f32 %v5436, 1.442695
      %v5482 = vpow.pop %v5481
      %v5483 = vmul.f32 %v5437, 1.442695
      %v5484 = vpow.pop %v5483
      %v5485 = vmul.f32 %v5438, 1.442695
      %v5486 = vpow.pop %v5485
      %v5487 = vmul.f32 %v5439, 1.442695
      %v5488 = vpow.pop %v5487
      %v5489 = vmul.f32 %v5440, 1.442695
      %v5490 = vpow.pop %v5489
      %v5491 = vmul.f32 %v5441, 1.442695
      %v5492 = vpow.pop %v5491
      %v5493 = vmul.f32 %v5442, 1.442695
      %v5494 = vpow.pop %v5493
      %v5495 = vmul.f32 %v5443, 1.442695
      %v5496 = vpow.pop %v5495
      %v5497 = vmul.f32 %v5444, 1.442695
      %v5498 = vpow.pop %v5497
      %v5499 = vmul.f32 %v5445, 1.442695
      %v5500 = vpow.pop %v5499
      %v5501 = vmul.f32 %v5446, 1.442695
      %v5502 = vpow.pop %v5501
      %v5503 = vmul.f32 %v5447, 1.442695
      %v5504 = vpow.pop %v5503
      %v5505 = vmul.f32 %v5448, 1.442695
      %v5506 = vpow.pop %v5505
      %v5507 = vmul.f32 %v5449, 1.442695
      %v5508 = vpow.pop %v5507
      %v5509 = vmul.f32 %v5450, 1.442695
      %v5510 = vpow.pop %v5509
      %v5511 = vmul.f32 %v5451, 1.442695
      %v5512 = vpow.pop %v5511
      %v5513 = vmul.f32 %v5452, 1.442695
      %v5514 = vpow.pop %v5513
      %v5515 = vmul.f32 %v5453, 1.442695
      %v5516 = vpow.pop %v5515
      %v5517 = vmul.f32 %v5454, 1.442695
      %v5518 = vpow.pop %v5517
      %v5519 = vadd.f32 %v5456, 1.0
      %v5520 = vadd.f32 %v5458, 1.0
      %v5521 = vadd.f32 %v5460, 1.0
      %v5522 = vadd.f32 %v5462, 1.0
      %v5523 = vadd.f32 %v5464, 1.0
      %v5524 = vadd.f32 %v5466, 1.0
      %v5525 = vadd.f32 %v5468, 1.0
      %v5526 = vadd.f32 %v5470, 1.0
      %v5527 = vadd.f32 %v5472, 1.0
      %v5528 = vadd.f32 %v5474, 1.0
      %v5529 = vadd.f32 %v5476, 1.0
      %v5530 = vadd.f32 %v5478, 1.0
      %v5531 = vadd.f32 %v5480, 1.0
      %v5532 = vadd.f32 %v5482, 1.0
      %v5533 = vadd.f32 %v5484, 1.0
      %v5534 = vadd.f32 %v5486, 1.0
      %v5535 = vadd.f32 %v5488, 1.0
      %v5536 = vadd.f32 %v5490, 1.0
      %v5537 = vadd.f32 %v5492, 1.0
      %v5538 = vadd.f32 %v5494, 1.0
      %v5539 = vadd.f32 %v5496, 1.0
      %v5540 = vadd.f32 %v5498, 1.0
      %v5541 = vadd.f32 %v5500, 1.0
      %v5542 = vadd.f32 %v5502, 1.0
      %v5543 = vadd.f32 %v5504, 1.0
      %v5544 = vadd.f32 %v5506, 1.0
      %v5545 = vadd.f32 %v5508, 1.0
      %v5546 = vadd.f32 %v5510, 1.0
      %v5547 = vadd.f32 %v5512, 1.0
      %v5548 = vadd.f32 %v5514, 1.0
      %v5549 = vadd.f32 %v5516, 1.0
      %v5550 = vadd.f32 %v5518, 1.0
      %v5551 = vrcp.pop %v5519
      %v5552 = vmul.f32 1.0, %v5551
      %v5553 = vrcp.pop %v5520
      %v5554 = vmul.f32 1.0, %v5553
      %v5555 = vrcp.pop %v5521
      %v5556 = vmul.f32 1.0, %v5555
      %v5557 = vrcp.pop %v5522
      %v5558 = vmul.f32 1.0, %v5557
      %v5559 = vrcp.pop %v5523
      %v5560 = vmul.f32 1.0, %v5559
      %v5561 = vrcp.pop %v5524
      %v5562 = vmul.f32 1.0, %v5561
      %v5563 = vrcp.pop %v5525
      %v5564 = vmul.f32 1.0, %v5563
      %v5565 = vrcp.pop %v5526
      %v5566 = vmul.f32 1.0, %v5565
      %v5567 = vrcp.pop %v5527
      %v5568 = vmul.f32 1.0, %v5567
      %v5569 = vrcp.pop %v5528
      %v5570 = vmul.f32 1.0, %v5569
      %v5571 = vrcp.pop %v5529
      %v5572 = vmul.f32 1.0, %v5571
      %v5573 = vrcp.pop %v5530
      %v5574 = vmul.f32 1.0, %v5573
      %v5575 = vrcp.pop %v5531
      %v5576 = vmul.f32 1.0, %v5575
      %v5577 = vrcp.pop %v5532
      %v5578 = vmul.f32 1.0, %v5577
      %v5579 = vrcp.pop %v5533
      %v5580 = vmul.f32 1.0, %v5579
      %v5581 = vrcp.pop %v5534
      %v5582 = vmul.f32 1.0, %v5581
      %v5583 = vrcp.pop %v5535
      %v5584 = vmul.f32 1.0, %v5583
      %v5585 = vrcp.pop %v5536
      %v5586 = vmul.f32 1.0, %v5585
      %v5587 = vrcp.pop %v5537
      %v5588 = vmul.f32 1.0, %v5587
      %v5589 = vrcp.pop %v5538
      %v5590 = vmul.f32 1.0, %v5589
      %v5591 = vrcp.pop %v5539
      %v5592 = vmul.f32 1.0, %v5591
      %v5593 = vrcp.pop %v5540
      %v5594 = vmul.f32 1.0, %v5593
      %v5595 = vrcp.pop %v5541
      %v5596 = vmul.f32 1.0, %v5595
      %v5597 = vrcp.pop %v5542
      %v5598 = vmul.f32 1.0, %v5597
      %v5599 = vrcp.pop %v5543
      %v5600 = vmul.f32 1.0, %v5599
      %v5601 = vrcp.pop %v5544
      %v5602 = vmul.f32 1.0, %v5601
      %v5603 = vrcp.pop %v5545
      %v5604 = vmul.f32 1.0, %v5603
      %v5605 = vrcp.pop %v5546
      %v5606 = vmul.f32 1.0, %v5605
      %v5607 = vrcp.pop %v5547
      %v5608 = vmul.f32 1.0, %v5607
      %v5609 = vrcp.pop %v5548
      %v5610 = vmul.f32 1.0, %v5609
      %v5611 = vrcp.pop %v5549
      %v5612 = vmul.f32 1.0, %v5611
      %v5613 = vrcp.pop %v5550
      %v5614 = vmul.f32 1.0, %v5613
      %v5615 = vmul.f32 %v5391, %v5552
      %v5616 = vmul.f32 %v5392, %v5554
      %v5617 = vmul.f32 %v5393, %v5556
      %v5618 = vmul.f32 %v5394, %v5558
      %v5619 = vmul.f32 %v5395, %v5560
      %v5620 = vmul.f32 %v5396, %v5562
      %v5621 = vmul.f32 %v5397, %v5564
      %v5622 = vmul.f32 %v5398, %v5566
      %v5623 = vmul.f32 %v5399, %v5568
      %v5624 = vmul.f32 %v5400, %v5570
      %v5625 = vmul.f32 %v5401, %v5572
      %v5626 = vmul.f32 %v5402, %v5574
      %v5627 = vmul.f32 %v5403, %v5576
      %v5628 = vmul.f32 %v5404, %v5578
      %v5629 = vmul.f32 %v5405, %v5580
      %v5630 = vmul.f32 %v5406, %v5582
      %v5631 = vmul.f32 %v5407, %v5584
      %v5632 = vmul.f32 %v5408, %v5586
      %v5633 = vmul.f32 %v5409, %v5588
      %v5634 = vmul.f32 %v5410, %v5590
      %v5635 = vmul.f32 %v5411, %v5592
      %v5636 = vmul.f32 %v5412, %v5594
      %v5637 = vmul.f32 %v5413, %v5596
      %v5638 = vmul.f32 %v5414, %v5598
      %v5639 = vmul.f32 %v5415, %v5600
      %v5640 = vmul.f32 %v5416, %v5602
      %v5641 = vmul.f32 %v5417, %v5604
      %v5642 = vmul.f32 %v5418, %v5606
      %v5643 = vmul.f32 %v5419, %v5608
      %v5644 = vmul.f32 %v5420, %v5610
      %v5645 = vmul.f32 %v5421, %v5612
      %v5646 = vmul.f32 %v5422, %v5614
      %5647 = vst.msk [vmem:[%s278] sm:$0xff] %vm394, %v5615
      %5648 = vst.msk [vmem:[%s278 + $0x8] sm:$0xff] %vm394, %v5616
      %5649 = vst.msk [vmem:[%s278 + $0x10] sm:$0xff] %vm394, %v5617
      %5650 = vst.msk [vmem:[%s278 + $0x18] sm:$0xff] %vm394, %v5618
      %5651 = vst.msk [vmem:[%s278 + $0x20] sm:$0xff] %vm394, %v5619
      %5652 = vst.msk [vmem:[%s278 + $0x28] sm:$0xff] %vm394, %v5620
      %5653 = vst.msk [vmem:[%s278 + $0x30] sm:$0xff] %vm394, %v5621
      %5654 = vst.msk [vmem:[%s278 + $0x38] sm:$0xff] %vm394, %v5622
      %5655 = vst.msk [vmem:[%s278 + $0x40] sm:$0xff] %vm394, %v5623
      %5656 = vst.msk [vmem:[%s278 + $0x48] sm:$0xff] %vm394, %v5624
      %5657 = vst.msk [vmem:[%s278 + $0x50] sm:$0xff] %vm394, %v5625
      %5658 = vst.msk [vmem:[%s278 + $0x58] sm:$0xff] %vm394, %v5626
      %5659 = vst.msk [vmem:[%s278 + $0x60] sm:$0xff] %vm394, %v5627
      %5660 = vst.msk [vmem:[%s278 + $0x68] sm:$0xff] %vm394, %v5628
      %5661 = vst.msk [vmem:[%s278 + $0x70] sm:$0xff] %vm394, %v5629
      %5662 = vst.msk [vmem:[%s278 + $0x78] sm:$0xff] %vm394, %v5630
      %5663 = vst.msk [vmem:[%s278 + $0x80] sm:$0xff] %vm394, %v5631
      %5664 = vst.msk [vmem:[%s278 + $0x88] sm:$0xff] %vm394, %v5632
      %5665 = vst.msk [vmem:[%s278 + $0x90] sm:$0xff] %vm394, %v5633
      %5666 = vst.msk [vmem:[%s278 + $0x98] sm:$0xff] %vm394, %v5634
      %5667 = vst.msk [vmem:[%s278 + $0xa0] sm:$0xff] %vm394, %v5635
      %5668 = vst.msk [vmem:[%s278 + $0xa8] sm:$0xff] %vm394, %v5636
      %5669 = vst.msk [vmem:[%s278 + $0xb0] sm:$0xff] %vm394, %v5637
      %5670 = vst.msk [vmem:[%s278 + $0xb8] sm:$0xff] %vm394, %v5638
      %5671 = vst.msk [vmem:[%s278 + $0xc0] sm:$0xff] %vm394, %v5639
      %5672 = vst.msk [vmem:[%s278 + $0xc8] sm:$0xff] %vm394, %v5640
      %5673 = vst.msk [vmem:[%s278 + $0xd0] sm:$0xff] %vm394, %v5641
      %5674 = vst.msk [vmem:[%s278 + $0xd8] sm:$0xff] %vm394, %v5642
      %5675 = vst.msk [vmem:[%s278 + $0xe0] sm:$0xff] %vm394, %v5643
      %5676 = vst.msk [vmem:[%s278 + $0xe8] sm:$0xff] %vm394, %v5644
      %5677 = vst.msk [vmem:[%s278 + $0xf0] sm:$0xff] %vm394, %v5645
      %5678 = vst.msk [vmem:[%s278 + $0xf8] sm:$0xff] %vm394, %v5646
      %p5679 = scmp.lt.s32.totalorder %s18, 1
      %s5680 = scalar_select %p5679, %s18, 1
      %s5681 = smul.addr %s5680, 32
      %s5682 = smul.addr %s5681, 8
      %s5683 = scalar_lea.vmem %s7, %s5682
      // Predicated region
      $region49: #{spp_block.1} parent=47 // pred_check
        %p5684 = pneg %p188
      $region50: #{spp_block.1} parent=47 // pred_check_branch
        %5686 = sbr.rel (%p5684) target = $region52
      $region51: #{spp_block.1} parent=47 // pred_region
        _
      $region52: #{spp_block.1} parent=47 // pred_fallthru
        _
    $region48: #{spp_block.1} parent=5 // pred_fallthru
      _
    %p5687 = scmp.le.s32.totalorder 2, %s13
    // Predicated region
    $region53: #{spp_block.1} parent=5 // pred_check
      %p5688 = pneg %p5687
    $region54: #{spp_block.1} parent=5 // pred_check_branch
      %5690 = sbr.rel (%p5688) target = $region56
    $region55: #{spp_block.1} parent=5 // pred_region
      %s5691 = ssub.s32 %s13, 2
      // Predicated region
      $region57: #{spp_block.1} parent=55 // pred_check
        %p5692 = pneg %p194
      $region58: #{spp_block.1} parent=55 // pred_check_branch
        %5694 = sbr.rel (%p5692) target = $region60
      $region59: #{spp_block.1} parent=55 // pred_region
        %p5695 = scmp.lt.s32.totalorder %s19, 1
        %s5696 = scalar_select %p5695, %s19, 1
        %s5697 = smul.addr %s5696, 32
        %s5698 = smul.addr %s5697, 8
        %s5699 = scalar_lea.vmem %s7, %s5698
      $region60: #{spp_block.1} parent=55 // pred_fallthru
        _
    $region56: #{spp_block.1} parent=5 // pred_fallthru
      _
  $region6: #{spp_block.1} parent=0 // loop_footer
    %s17 = sadd.s32 1, %s13
  $region7: #{spp_block.1} parent=0 // loop_footer_branch
    %12 = sbr.rel target = $region3
  $region8: #{spp_block.1} parent=0 // loop_exit
    _

</llo_original>
